<compile_context>
chip_gen: v7x
topology: tpu7x:2x2x1
jax: 0.10.0
libtpu: 0.0.40
codegen_flags: <defaults>
</compile_context>

<pallas_src>
import jax
import jax.numpy as jnp
from jax.experimental import pallas as pl
from jax.experimental.pallas import tpu as pltpu


def _round_up(n, m):
    return ((n + m - 1) // m) * m


# ----------------------------------------------------------------------------
# Kernel
# ----------------------------------------------------------------------------
def _make_deepdep_kernel(dm, df, latent_dim, pa, pb):
    L = latent_dim
    bf16, f32 = jnp.bfloat16, jnp.float32

    def dense(x_bf16, w_ref, b_ref):
        # bf16 operands -> MXU, f32 accumulation; bias add in f32.
        return jnp.dot(x_bf16, w_ref[...], preferred_element_type=f32) + b_ref[...]

    def relu_bf16(y_f32):
        # cast once at the ReLU: result only feeds the next MXU matmul.
        return jnp.maximum(y_f32, 0.0).astype(bf16)

    def vae(x_f32, eps_f32, w):
        (w1, b1, w2, b2, w3, b3, w4, b4, w5, b5, w6, b6) = w
        h1 = relu_bf16(dense(x_f32.astype(bf16), w1, b1))
        h2 = relu_bf16(dense(h1, w2, b2))
        mulv = dense(h2, w3, b3)                 # fused (mu || logvar) head, f32
        mu, logvar = mulv[:, :L], mulv[:, L:]
        # reparameterize: z = mu + eps * exp(0.5 * logvar)   (f32: VPU + EUP)
        z = mu + eps_f32 * jnp.exp(0.5 * logvar)
        h3 = relu_bf16(dense(z.astype(bf16), w4, b4))
        h4 = relu_bf16(dense(h3, w5, b5))
        recon = dense(h4, w6, b6)                # f32 here; stored bf16 in slab B
        return recon, mulv, mu

    def kernel(xin_ref, *refs):
        mut_w = refs[0:12]
        fp_w = refs[12:24]
        (wm1_m, wm1_f, bm1, wm2, bm2, w_out_row, b_out) = refs[24:31]
        outA_ref, outB_ref = refs[31], refs[32]

        # one lane-dense load; slice the packed input at static lane offsets.
        xin = xin_ref[...]
        x_m = xin[:, 0:dm]
        x_f = xin[:, dm:dm + df]
        eps_m = xin[:, dm + df:dm + df + L]
        eps_f = xin[:, dm + df + L:dm + df + 2 * L]

        recon_m, mulv_m, mu_m = vae(x_m, eps_m, mut_w)
        recon_f, mulv_f, mu_f = vae(x_f, eps_f, fp_w)

        # merged = relu(cat(mu_mut, mu_fprint) @ W_m1 + b_m1), computed as two
        # row-block matmuls so no cross-lane concatenate of activations is needed.
        merged = (jnp.dot(mu_m.astype(bf16), wm1_m[...], preferred_element_type=f32)
                  + jnp.dot(mu_f.astype(bf16), wm1_f[...], preferred_element_type=f32)
                  + bm1[...])
        merged = relu_bf16(merged)
        merged = jnp.maximum(dense(merged, wm2, bm2), 0.0)          # f32
        # fc_out has a single output column: lane reduction instead of an MXU matmul.
        out = jnp.sum(merged.astype(bf16).astype(f32) * w_out_row[...],
                      axis=-1, keepdims=True) + b_out[...]

        bb = out.shape[0]
        # slab A (f32): [out | mu_m logvar_m | mu_f logvar_f | zero pad]  -> one full store
        pieces_a = [out, mulv_m, mulv_f]
        pad_a = pa - (1 + mulv_m.shape[1] + mulv_f.shape[1])
        if pad_a:
            pieces_a.append(jnp.zeros((bb, pad_a), f32))
        outA_ref[...] = jnp.concatenate(pieces_a, axis=1)

        # slab B (bf16): [recon_mut | recon_fprint | zero pad]            -> one full store
        pieces_b = [recon_m, recon_f]
        pad_b = pb - (recon_m.shape[1] + recon_f.shape[1])
        if pad_b:
            pieces_b.append(jnp.zeros((bb, pad_b), f32))
        outB_ref[...] = jnp.concatenate(pieces_b, axis=1).astype(bf16)

    return kernel


# ----------------------------------------------------------------------------
# Wrapper
# ----------------------------------------------------------------------------
def _choose_block_b(batch, block_b):
    # aim for >= ~8 grid steps (pipelining + >=4 tiles per TC under megacore sharding)
    target = _round_up(max(pl.cdiv(batch, 8), 1), 8)
    return max(8, min(_round_up(block_b, 8), target))


def deepdep_forward(mut, fprint, eps_mut, eps_fprint, params, *, block_b=1024):
    """Full DeepDEP forward. Returns (output, (recon_mut, mu_mut, logvar_mut),
    (recon_fprint, mu_fprint, logvar_fprint)); torch's forward returns only `output`.
    recon_* are stored/returned in bf16. Production consumers should read the two
    packed slabs directly; the per-array views below are thin lane slices."""
    B, dm = mut.shape
    _, df = fprint.shape
    L = params["mut_w31"].shape[1]
    assert params["mut_w32"].shape[1] == L and params["fp_w31"].shape[1] == L
    assert params["w_m1"].shape[0] == 2 * L, "merged dim must equal 2 * latent_dim"
    f32, bf16 = jnp.float32, jnp.bfloat16

    # --- packed input slab: [mut | fprint | eps_mut | eps_fprint], padded to 128 lanes
    xin = jnp.concatenate([mut, fprint, eps_mut, eps_fprint], axis=1).astype(f32)
    in_cols = dm + df + 2 * L
    pin = _round_up(in_cols, 128)
    if pin != in_cols:
        xin = jnp.pad(xin, ((0, 0), (0, pin - in_cols)))

    # --- packed output widths
    pa = _round_up(1 + 4 * L, 128)    # f32: out | mulv_mut | mulv_fprint
    pb = _round_up(dm + df, 128)      # bf16: recon_mut | recon_fprint

    def vae_weight_list(prefix):
        g = lambda k: params[f"{prefix}_{k}"]
        # fuse the two latent heads into one matmul: columns are (mu || logvar)
        w3 = jnp.concatenate([g("w31"), g("w32")], axis=1)
        b3 = jnp.concatenate([g("b31"), g("b32")], axis=1)
        assert w3.shape[1] == 2 * L and b3.shape[1] == 2 * L
        return [g("w1"), g("b1"), g("w2"), g("b2"), w3, b3,
                g("w4"), g("b4"), g("w5"), g("b5"), g("w6"), g("b6")]

    w_m1 = params["w_m1"]
    w_out_row = params["w_out"].T.astype(f32)          # [1, 2L], exact bf16 values
    head_weights = [w_m1[:L], w_m1[L:], params["b_m1"],
                    params["w_m2"], params["b_m2"], w_out_row, params["b_out"]]
    weight_inputs = vae_weight_list("mut") + vae_weight_list("fp") + head_weights

    bb = _choose_block_b(B, block_b)
    grid_n = pl.cdiv(B, bb)            # ragged last tile handled by Pallas masking

    row_map = lambda i: (i, 0)         # batch-tiled operands
    rep_map = lambda i: (0, 0)         # weights/biases: same block every step -> resident

    in_specs = ([pl.BlockSpec((bb, pin), row_map)]
                + [pl.BlockSpec(a.shape, rep_map) for a in weight_inputs])
    out_shapes = (jax.ShapeDtypeStruct((B, pa), f32),
                  jax.ShapeDtypeStruct((B, pb), bf16))
    out_specs = (pl.BlockSpec((bb, pa), row_map),
                 pl.BlockSpec((bb, pb), row_map))

    # VMEM budget: resident weights once + double-buffered per-tile I/O + headroom,
    # capped at 75% of this generation's physical VMEM.
    weight_bytes = sum(a.size * a.dtype.itemsize for a in weight_inputs)
    tile_in_bytes = bb * pin * 4
    tile_out_bytes = bb * pa * 4 + bb * pb * 2
    need = weight_bytes + 2 * (tile_in_bytes + tile_out_bytes) + (4 << 20)
    try:
        cap = getattr(pltpu.get_tpu_info(), "vmem_capacity_bytes", 64 << 20)
    except Exception:  # noqa: BLE001 - interpret mode / no hw info
        cap = 64 << 20
    vmem_limit = int(min(max(need, 16 << 20), int(cap * 0.75)))

    # with too few tiles, sharding across v7x's 2 TCs would leave no pipelining per core
    semantics = ("parallel",) if grid_n >= 4 else ("arbitrary",)

    outA, outB = pl.pallas_call(
        _make_deepdep_kernel(dm, df, L, pa, pb),
        out_shape=out_shapes,
        grid_spec=pltpu.PrefetchScalarGridSpec(
            num_scalar_prefetch=0,
            grid=(grid_n,),
            in_specs=in_specs,
            out_specs=out_specs),
        compiler_params=pltpu.CompilerParams(
            dimension_semantics=semantics,
            vmem_limit_bytes=vmem_limit),
    )(xin, *weight_inputs)

    output = outA[:, 0:1]
    mu_mut = outA[:, 1:1 + L]
    logvar_mut = outA[:, 1 + L:1 + 2 * L]
    mu_fp = outA[:, 1 + 2 * L:1 + 3 * L]
    logvar_fp = outA[:, 1 + 3 * L:1 + 4 * L]
    recon_mut = outB[:, :dm]
    recon_fp = outB[:, dm:dm + df]
    return output, (recon_mut, mu_mut, logvar_mut), (recon_fp, mu_fp, logvar_fp)


# ----------------------------------------------------------------------------
# Parameters (deterministic, torch.nn.Linear-style init; weights stored [in, out])
# ----------------------------------------------------------------------------
def init_deepdep_params(key, dims_mut, fprint_dim, first_layer_dim,
                        second_layer_dim, latent_dim, dense_layer_dim,
                        weight_dtype=jnp.bfloat16):
    assert dense_layer_dim == 2 * latent_dim, "merged dim must equal 2 * latent_dim"

    def linear(k, d_in, d_out):
        kw, kb = jax.random.split(k)
        s = 1.0 / float(d_in) ** 0.5
        w = jax.random.uniform(kw, (d_in, d_out), jnp.float32, -s, s).astype(weight_dtype)
        b = jax.random.uniform(kb, (1, d_out), jnp.float32, -s, s)   # biases stay f32
        return w, b

    params = {}

    def add_vae(prefix, input_dim, k):
        dims = {"1": (input_dim, first_layer_dim),
                "2": (first_layer_dim, second_layer_dim),
                "31": (second_layer_dim, latent_dim),
                "32": (second_layer_dim, latent_dim),
                "4": (latent_dim, second_layer_dim),
                "5": (second_layer_dim, first_layer_dim),
                "6": (first_layer_dim, input_dim)}
        for name, (di, do) in dims.items():
            k, sub = jax.random.split(k)
            w, b = linear(sub, di, do)
            params[f"{prefix}_w{name}"] = w
            params[f"{prefix}_b{name}"] = b
        return k

    key = add_vae("mut", dims_mut, key)
    key = add_vae("fp", fprint_dim, key)
    for name, (di, do) in {"m1": (dense_layer_dim, dense_layer_dim),
                           "m2": (dense_layer_dim, dense_layer_dim),
                           "out": (dense_layer_dim, 1)}.items():
        key, sub = jax.random.split(key)
        w, b = linear(sub, di, do)
        params[f"w_{name}"] = w
        params[f"b_{name}"] = b
    return params


# ----------------------------------------------------------------------------
# Pure-JAX reference (dot_dtype=bf16 mirrors the kernel's matmul precision)
# ----------------------------------------------------------------------------
def _reference_forward(mut, fprint, eps_mut, eps_fprint, params, dot_dtype=jnp.float32):
    def dense(x, w, b, relu=False):
        y = jnp.dot(x.astype(dot_dtype), w.astype(dot_dtype),
                    preferred_element_type=jnp.float32) + b
        return jnp.maximum(y, 0.0) if relu else y

    def vae(x, eps, p):
        g = lambda k: params[f"{p}_{k}"]
        h1 = dense(x, g("w1"), g("b1"), True)
        h2 = dense(h1, g("w2"), g("b2"), True)
        mu = dense(h2, g("w31"), g("b31"))
        logvar = dense(h2, g("w32"), g("b32"))
        z = mu + eps * jnp.exp(0.5 * logvar)
        h3 = dense(z, g("w4"), g("b4"), True)
        h4 = dense(h3, g("w5"), g("b5"), True)
        recon = dense(h4, g("w6"), g("b6"))
        return recon, mu, logvar

    rm, mum, lvm = vae(mut, eps_mut, "mut")
    rf, muf, lvf = vae(fprint, eps_fprint, "fp")
    merged = jnp.concatenate([mum, muf], axis=1)
    merged = dense(merged, params["w_m1"], params["b_m1"], True)
    merged = dense(merged, params["w_m2"], params["b_m2"], True)
    out = dense(merged, params["w_out"], params["b_out"])
    return out, (rm, mum, lvm), (rf, muf, lvf)


if __name__ == "__main__":
    # Small shapes consistent with DeepDEP(dims_mut, fprint_dim, dense_layer_dim);
    # the real model uses VAE(*, 1000, 100, 50) with dense = 100 — scaled-down analog.
    batch = 500                 # deliberately not a tile multiple: exercises ragged last tile
    dims_mut = 40
    fprint_dim = 24
    first_layer_dim = 64
    second_layer_dim = 32
    latent_dim = 16
    dense_layer_dim = 2 * latent_dim

    key = jax.random.PRNGKey(0)
    key, kmut, kfp, kem, kef, kp = jax.random.split(key, 6)

    mut = jax.random.normal(kmut, (batch, dims_mut), jnp.float32)
    fprint = jax.random.normal(kfp, (batch, fprint_dim), jnp.float32)
    # reparameterization noise (torch: randn_like), shared by kernel and reference
    eps_mut = jax.random.normal(kem, (batch, latent_dim), jnp.float32)
    eps_fprint = jax.random.normal(kef, (batch, latent_dim), jnp.float32)

    params = init_deepdep_params(kp, dims_mut, fprint_dim, first_layer_dim,
                                 second_layer_dim, latent_dim, dense_layer_dim)

    out, (recon_m, mu_m, lv_m), (recon_f, mu_f, lv_f) = deepdep_forward(
        mut, fprint, eps_mut, eps_fprint, params)
    jax.block_until_ready((out, recon_m, mu_m, lv_m, recon_f, mu_f, lv_f))

    assert out.shape == (batch, 1)
    assert recon_m.shape == (batch, dims_mut)
    assert mu_m.shape == (batch, latent_dim) and lv_m.shape == (batch, latent_dim)
    assert recon_f.shape == (batch, fprint_dim)
    assert mu_f.shape == (batch, latent_dim) and lv_f.shape == (batch, latent_dim)

    f32 = jnp.float32
    got = (out, recon_m.astype(f32), mu_m, lv_m, recon_f.astype(f32), mu_f, lv_f)
    # recon_* are stored in bf16 by design -> looser tolerance for those entries only
    is_recon = (False, True, False, False, True, False, False)

    # 1) exact-path check: reference uses the same bf16-operand / f32-accumulate contract
    r_bf = _reference_forward(mut, fprint, eps_mut, eps_fprint, params,
                              dot_dtype=jnp.bfloat16)
    want_bf = (r_bf[0], *r_bf[1], *r_bf[2])
    for g, w, rc in zip(got, want_bf, is_recon):
        tol = 2e-2 if rc else 5e-3
        assert jnp.allclose(g, w, atol=tol, rtol=tol), "bf16-path mismatch"

    # 2) fidelity check vs. full-f32 math (loose: bf16 matmul operands / bf16 recon storage)
    r_f32 = _reference_forward(mut, fprint, eps_mut, eps_fprint, params,
                               dot_dtype=jnp.float32)
    want_f32 = (r_f32[0], *r_f32[1], *r_f32[2])
    for g, w in zip(got, want_f32):
        assert jnp.allclose(g, w, atol=1e-1, rtol=1e-1), "f32 fidelity mismatch"

    print("KERNEL_OK")
</pallas_src>

<mosaic_0001>
module attributes {stable_mosaic.version = 11 : i64} {
  func.func @kernel(%arg0: i32, %arg1: memref<64x128xf32, #tpu.memory_space<vmem>>, %arg2: memref<40x64xbf16, #tpu.memory_space<vmem>>, %arg3: memref<1x64xf32, #tpu.memory_space<vmem>>, %arg4: memref<64x32xbf16, #tpu.memory_space<vmem>>, %arg5: memref<1x32xf32, #tpu.memory_space<vmem>>, %arg6: memref<32x32xbf16, #tpu.memory_space<vmem>>, %arg7: memref<1x32xf32, #tpu.memory_space<vmem>>, %arg8: memref<16x32xbf16, #tpu.memory_space<vmem>>, %arg9: memref<1x32xf32, #tpu.memory_space<vmem>>, %arg10: memref<32x64xbf16, #tpu.memory_space<vmem>>, %arg11: memref<1x64xf32, #tpu.memory_space<vmem>>, %arg12: memref<64x40xbf16, #tpu.memory_space<vmem>>, %arg13: memref<1x40xf32, #tpu.memory_space<vmem>>, %arg14: memref<24x64xbf16, #tpu.memory_space<vmem>>, %arg15: memref<1x64xf32, #tpu.memory_space<vmem>>, %arg16: memref<64x32xbf16, #tpu.memory_space<vmem>>, %arg17: memref<1x32xf32, #tpu.memory_space<vmem>>, %arg18: memref<32x32xbf16, #tpu.memory_space<vmem>>, %arg19: memref<1x32xf32, #tpu.memory_space<vmem>>, %arg20: memref<16x32xbf16, #tpu.memory_space<vmem>>, %arg21: memref<1x32xf32, #tpu.memory_space<vmem>>, %arg22: memref<32x64xbf16, #tpu.memory_space<vmem>>, %arg23: memref<1x64xf32, #tpu.memory_space<vmem>>, %arg24: memref<64x24xbf16, #tpu.memory_space<vmem>>, %arg25: memref<1x24xf32, #tpu.memory_space<vmem>>, %arg26: memref<16x32xbf16, #tpu.memory_space<vmem>>, %arg27: memref<16x32xbf16, #tpu.memory_space<vmem>>, %arg28: memref<1x32xf32, #tpu.memory_space<vmem>>, %arg29: memref<32x32xbf16, #tpu.memory_space<vmem>>, %arg30: memref<1x32xf32, #tpu.memory_space<vmem>>, %arg31: memref<1x32xf32, #tpu.memory_space<vmem>>, %arg32: memref<1x1xf32, #tpu.memory_space<vmem>>, %arg33: memref<64x128xf32, #tpu.memory_space<vmem>>, %arg34: memref<64x128xbf16, #tpu.memory_space<vmem>>) attributes {dimension_semantics = [#tpu.dimension_semantics<parallel>], iteration_bounds = array<i64: 8>, scalar_prefetch = 0 : i64, scratch_operands = 0 : i64, tpu.core_type = #tpu.core_type<tc>, window_params = [{transform_indices = @transform_0, window_bounds = array<i64: 64, 128>}, {pipeline_mode = #tpu.pipeline_mode<synchronous>, transform_indices = @transform_1, window_bounds = array<i64: 40, 64>}, {pipeline_mode = #tpu.pipeline_mode<synchronous>, transform_indices = @transform_2, window_bounds = array<i64: 1, 64>}, {pipeline_mode = #tpu.pipeline_mode<synchronous>, transform_indices = @transform_3, window_bounds = array<i64: 64, 32>}, {pipeline_mode = #tpu.pipeline_mode<synchronous>, transform_indices = @transform_4, window_bounds = array<i64: 1, 32>}, {pipeline_mode = #tpu.pipeline_mode<synchronous>, transform_indices = @transform_5, window_bounds = array<i64: 32, 32>}, {pipeline_mode = #tpu.pipeline_mode<synchronous>, transform_indices = @transform_6, window_bounds = array<i64: 1, 32>}, {pipeline_mode = #tpu.pipeline_mode<synchronous>, transform_indices = @transform_7, window_bounds = array<i64: 16, 32>}, {pipeline_mode = #tpu.pipeline_mode<synchronous>, transform_indices = @transform_8, window_bounds = array<i64: 1, 32>}, {pipeline_mode = #tpu.pipeline_mode<synchronous>, transform_indices = @transform_9, window_bounds = array<i64: 32, 64>}, {pipeline_mode = #tpu.pipeline_mode<synchronous>, transform_indices = @transform_10, window_bounds = array<i64: 1, 64>}, {pipeline_mode = #tpu.pipeline_mode<synchronous>, transform_indices = @transform_11, window_bounds = array<i64: 64, 40>}, {pipeline_mode = #tpu.pipeline_mode<synchronous>, transform_indices = @transform_12, window_bounds = array<i64: 1, 40>}, {pipeline_mode = #tpu.pipeline_mode<synchronous>, transform_indices = @transform_13, window_bounds = array<i64: 24, 64>}, {pipeline_mode = #tpu.pipeline_mode<synchronous>, transform_indices = @transform_14, window_bounds = array<i64: 1, 64>}, {pipeline_mode = #tpu.pipeline_mode<synchronous>, transform_indices = @transform_15, window_bounds = array<i64: 64, 32>}, {pipeline_mode = #tpu.pipeline_mode<synchronous>, transform_indices = @transform_16, window_bounds = array<i64: 1, 32>}, {pipeline_mode = #tpu.pipeline_mode<synchronous>, transform_indices = @transform_17, window_bounds = array<i64: 32, 32>}, {pipeline_mode = #tpu.pipeline_mode<synchronous>, transform_indices = @transform_18, window_bounds = array<i64: 1, 32>}, {pipeline_mode = #tpu.pipeline_mode<synchronous>, transform_indices = @transform_19, window_bounds = array<i64: 16, 32>}, {pipeline_mode = #tpu.pipeline_mode<synchronous>, transform_indices = @transform_20, window_bounds = array<i64: 1, 32>}, {pipeline_mode = #tpu.pipeline_mode<synchronous>, transform_indices = @transform_21, window_bounds = array<i64: 32, 64>}, {pipeline_mode = #tpu.pipeline_mode<synchronous>, transform_indices = @transform_22, window_bounds = array<i64: 1, 64>}, {pipeline_mode = #tpu.pipeline_mode<synchronous>, transform_indices = @transform_23, window_bounds = array<i64: 64, 24>}, {pipeline_mode = #tpu.pipeline_mode<synchronous>, transform_indices = @transform_24, window_bounds = array<i64: 1, 24>}, {pipeline_mode = #tpu.pipeline_mode<synchronous>, transform_indices = @transform_25, window_bounds = array<i64: 16, 32>}, {pipeline_mode = #tpu.pipeline_mode<synchronous>, transform_indices = @transform_26, window_bounds = array<i64: 16, 32>}, {pipeline_mode = #tpu.pipeline_mode<synchronous>, transform_indices = @transform_27, window_bounds = array<i64: 1, 32>}, {pipeline_mode = #tpu.pipeline_mode<synchronous>, transform_indices = @transform_28, window_bounds = array<i64: 32, 32>}, {pipeline_mode = #tpu.pipeline_mode<synchronous>, transform_indices = @transform_29, window_bounds = array<i64: 1, 32>}, {pipeline_mode = #tpu.pipeline_mode<synchronous>, transform_indices = @transform_30, window_bounds = array<i64: 1, 32>}, {pipeline_mode = #tpu.pipeline_mode<synchronous>, transform_indices = @transform_31, window_bounds = array<i64: 1, 1>}, {transform_indices = @transform_32, window_bounds = array<i64: 64, 128>}, {transform_indices = @transform_33, window_bounds = array<i64: 64, 128>}]} {
    %c0 = arith.constant 0 : index
    %c0_0 = arith.constant 0 : index
    %0 = vector.load %arg1[%c0, %c0_0] : memref<64x128xf32, #tpu.memory_space<vmem>>, vector<64x128xf32>
    %1 = vector.extract_strided_slice %0 {offsets = [0, 0], sizes = [64, 40], strides = [1, 1]} : vector<64x128xf32> to vector<64x40xf32>
    %2 = vector.extract_strided_slice %0 {offsets = [0, 40], sizes = [64, 24], strides = [1, 1]} : vector<64x128xf32> to vector<64x24xf32>
    %3 = vector.extract_strided_slice %0 {offsets = [0, 64], sizes = [64, 16], strides = [1, 1]} : vector<64x128xf32> to vector<64x16xf32>
    %4 = vector.extract_strided_slice %0 {offsets = [0, 80], sizes = [64, 16], strides = [1, 1]} : vector<64x128xf32> to vector<64x16xf32>
    %5 = arith.truncf %1 : vector<64x40xf32> to vector<64x40xbf16>
    %c0_1 = arith.constant 0 : index
    %c0_2 = arith.constant 0 : index
    %6 = vector.load %arg2[%c0_1, %c0_2] : memref<40x64xbf16, #tpu.memory_space<vmem>>, vector<40x64xbf16>
    %cst = arith.constant dense<0.000000e+00> : vector<64x64xf32>
    %7 = tpu.matmul %5, %6, %cst {dimension_numbers = #tpu.dot_dimension_numbers<[1], [0], [0], [1], [0, 0, 1, 1], [], []>} : vector<64x40xbf16>, vector<40x64xbf16>, vector<64x64xf32> -> vector<64x64xf32>
    %c0_3 = arith.constant 0 : index
    %c0_4 = arith.constant 0 : index
    %8 = vector.load %arg3[%c0_3, %c0_4] : memref<1x64xf32, #tpu.memory_space<vmem>>, vector<1x64xf32>
    %9 = vector.broadcast %8 : vector<1x64xf32> to vector<64x64xf32>
    %10 = arith.addf %7, %9 : vector<64x64xf32>
    %cst_5 = arith.constant 0.000000e+00 : f32
    %11 = vector.broadcast %cst_5 : f32 to vector<64x64xf32>
    %12 = arith.maximumf %10, %11 : vector<64x64xf32>
    %13 = arith.truncf %12 : vector<64x64xf32> to vector<64x64xbf16>
    %c0_6 = arith.constant 0 : index
    %c0_7 = arith.constant 0 : index
    %14 = vector.load %arg4[%c0_6, %c0_7] : memref<64x32xbf16, #tpu.memory_space<vmem>>, vector<64x32xbf16>
    %cst_8 = arith.constant dense<0.000000e+00> : vector<64x32xf32>
    %15 = tpu.matmul %13, %14, %cst_8 {dimension_numbers = #tpu.dot_dimension_numbers<[1], [0], [0], [1], [0, 0, 1, 1], [], []>} : vector<64x64xbf16>, vector<64x32xbf16>, vector<64x32xf32> -> vector<64x32xf32>
    %c0_9 = arith.constant 0 : index
    %c0_10 = arith.constant 0 : index
    %16 = vector.load %arg5[%c0_9, %c0_10] : memref<1x32xf32, #tpu.memory_space<vmem>>, vector<1x32xf32>
    %17 = vector.broadcast %16 : vector<1x32xf32> to vector<64x32xf32>
    %18 = arith.addf %15, %17 : vector<64x32xf32>
    %cst_11 = arith.constant 0.000000e+00 : f32
    %19 = vector.broadcast %cst_11 : f32 to vector<64x32xf32>
    %20 = arith.maximumf %18, %19 : vector<64x32xf32>
    %21 = arith.truncf %20 : vector<64x32xf32> to vector<64x32xbf16>
    %c0_12 = arith.constant 0 : index
    %c0_13 = arith.constant 0 : index
    %22 = vector.load %arg6[%c0_12, %c0_13] : memref<32x32xbf16, #tpu.memory_space<vmem>>, vector<32x32xbf16>
    %cst_14 = arith.constant dense<0.000000e+00> : vector<64x32xf32>
    %23 = tpu.matmul %21, %22, %cst_14 {dimension_numbers = #tpu.dot_dimension_numbers<[1], [0], [0], [1], [0, 0, 1, 1], [], []>} : vector<64x32xbf16>, vector<32x32xbf16>, vector<64x32xf32> -> vector<64x32xf32>
    %c0_15 = arith.constant 0 : index
    %c0_16 = arith.constant 0 : index
    %24 = vector.load %arg7[%c0_15, %c0_16] : memref<1x32xf32, #tpu.memory_space<vmem>>, vector<1x32xf32>
    %25 = vector.broadcast %24 : vector<1x32xf32> to vector<64x32xf32>
    %26 = arith.addf %23, %25 : vector<64x32xf32>
    %27 = vector.extract_strided_slice %26 {offsets = [0, 0], sizes = [64, 16], strides = [1, 1]} : vector<64x32xf32> to vector<64x16xf32>
    %28 = vector.extract_strided_slice %26 {offsets = [0, 16], sizes = [64, 16], strides = [1, 1]} : vector<64x32xf32> to vector<64x16xf32>
    %cst_17 = arith.constant 5.000000e-01 : f32
    %29 = vector.broadcast %cst_17 : f32 to vector<64x16xf32>
    %30 = arith.mulf %29, %28 : vector<64x16xf32>
    %31 = math.exp %30 : vector<64x16xf32>
    %32 = arith.mulf %3, %31 : vector<64x16xf32>
    %33 = arith.addf %27, %32 : vector<64x16xf32>
    %34 = arith.truncf %33 : vector<64x16xf32> to vector<64x16xbf16>
    %c0_18 = arith.constant 0 : index
    %c0_19 = arith.constant 0 : index
    %35 = vector.load %arg8[%c0_18, %c0_19] : memref<16x32xbf16, #tpu.memory_space<vmem>>, vector<16x32xbf16>
    %cst_20 = arith.constant dense<0.000000e+00> : vector<64x32xf32>
    %36 = tpu.matmul %34, %35, %cst_20 {dimension_numbers = #tpu.dot_dimension_numbers<[1], [0], [0], [1], [0, 0, 1, 1], [], []>} : vector<64x16xbf16>, vector<16x32xbf16>, vector<64x32xf32> -> vector<64x32xf32>
    %c0_21 = arith.constant 0 : index
    %c0_22 = arith.constant 0 : index
    %37 = vector.load %arg9[%c0_21, %c0_22] : memref<1x32xf32, #tpu.memory_space<vmem>>, vector<1x32xf32>
    %38 = vector.broadcast %37 : vector<1x32xf32> to vector<64x32xf32>
    %39 = arith.addf %36, %38 : vector<64x32xf32>
    %cst_23 = arith.constant 0.000000e+00 : f32
    %40 = vector.broadcast %cst_23 : f32 to vector<64x32xf32>
    %41 = arith.maximumf %39, %40 : vector<64x32xf32>
    %42 = arith.truncf %41 : vector<64x32xf32> to vector<64x32xbf16>
    %c0_24 = arith.constant 0 : index
    %c0_25 = arith.constant 0 : index
    %43 = vector.load %arg10[%c0_24, %c0_25] : memref<32x64xbf16, #tpu.memory_space<vmem>>, vector<32x64xbf16>
    %cst_26 = arith.constant dense<0.000000e+00> : vector<64x64xf32>
    %44 = tpu.matmul %42, %43, %cst_26 {dimension_numbers = #tpu.dot_dimension_numbers<[1], [0], [0], [1], [0, 0, 1, 1], [], []>} : vector<64x32xbf16>, vector<32x64xbf16>, vector<64x64xf32> -> vector<64x64xf32>
    %c0_27 = arith.constant 0 : index
    %c0_28 = arith.constant 0 : index
    %45 = vector.load %arg11[%c0_27, %c0_28] : memref<1x64xf32, #tpu.memory_space<vmem>>, vector<1x64xf32>
    %46 = vector.broadcast %45 : vector<1x64xf32> to vector<64x64xf32>
    %47 = arith.addf %44, %46 : vector<64x64xf32>
    %cst_29 = arith.constant 0.000000e+00 : f32
    %48 = vector.broadcast %cst_29 : f32 to vector<64x64xf32>
    %49 = arith.maximumf %47, %48 : vector<64x64xf32>
    %50 = arith.truncf %49 : vector<64x64xf32> to vector<64x64xbf16>
    %c0_30 = arith.constant 0 : index
    %c0_31 = arith.constant 0 : index
    %51 = vector.load %arg12[%c0_30, %c0_31] : memref<64x40xbf16, #tpu.memory_space<vmem>>, vector<64x40xbf16>
    %cst_32 = arith.constant dense<0.000000e+00> : vector<64x40xf32>
    %52 = tpu.matmul %50, %51, %cst_32 {dimension_numbers = #tpu.dot_dimension_numbers<[1], [0], [0], [1], [0, 0, 1, 1], [], []>} : vector<64x64xbf16>, vector<64x40xbf16>, vector<64x40xf32> -> vector<64x40xf32>
    %c0_33 = arith.constant 0 : index
    %c0_34 = arith.constant 0 : index
    %53 = vector.load %arg13[%c0_33, %c0_34] : memref<1x40xf32, #tpu.memory_space<vmem>>, vector<1x40xf32>
    %54 = vector.broadcast %53 : vector<1x40xf32> to vector<64x40xf32>
    %55 = arith.addf %52, %54 : vector<64x40xf32>
    %56 = arith.truncf %2 : vector<64x24xf32> to vector<64x24xbf16>
    %c0_35 = arith.constant 0 : index
    %c0_36 = arith.constant 0 : index
    %57 = vector.load %arg14[%c0_35, %c0_36] : memref<24x64xbf16, #tpu.memory_space<vmem>>, vector<24x64xbf16>
    %cst_37 = arith.constant dense<0.000000e+00> : vector<64x64xf32>
    %58 = tpu.matmul %56, %57, %cst_37 {dimension_numbers = #tpu.dot_dimension_numbers<[1], [0], [0], [1], [0, 0, 1, 1], [], []>} : vector<64x24xbf16>, vector<24x64xbf16>, vector<64x64xf32> -> vector<64x64xf32>
    %c0_38 = arith.constant 0 : index
    %c0_39 = arith.constant 0 : index
    %59 = vector.load %arg15[%c0_38, %c0_39] : memref<1x64xf32, #tpu.memory_space<vmem>>, vector<1x64xf32>
    %60 = vector.broadcast %59 : vector<1x64xf32> to vector<64x64xf32>
    %61 = arith.addf %58, %60 : vector<64x64xf32>
    %cst_40 = arith.constant 0.000000e+00 : f32
    %62 = vector.broadcast %cst_40 : f32 to vector<64x64xf32>
    %63 = arith.maximumf %61, %62 : vector<64x64xf32>
    %64 = arith.truncf %63 : vector<64x64xf32> to vector<64x64xbf16>
    %c0_41 = arith.constant 0 : index
    %c0_42 = arith.constant 0 : index
    %65 = vector.load %arg16[%c0_41, %c0_42] : memref<64x32xbf16, #tpu.memory_space<vmem>>, vector<64x32xbf16>
    %cst_43 = arith.constant dense<0.000000e+00> : vector<64x32xf32>
    %66 = tpu.matmul %64, %65, %cst_43 {dimension_numbers = #tpu.dot_dimension_numbers<[1], [0], [0], [1], [0, 0, 1, 1], [], []>} : vector<64x64xbf16>, vector<64x32xbf16>, vector<64x32xf32> -> vector<64x32xf32>
    %c0_44 = arith.constant 0 : index
    %c0_45 = arith.constant 0 : index
    %67 = vector.load %arg17[%c0_44, %c0_45] : memref<1x32xf32, #tpu.memory_space<vmem>>, vector<1x32xf32>
    %68 = vector.broadcast %67 : vector<1x32xf32> to vector<64x32xf32>
    %69 = arith.addf %66, %68 : vector<64x32xf32>
    %cst_46 = arith.constant 0.000000e+00 : f32
    %70 = vector.broadcast %cst_46 : f32 to vector<64x32xf32>
    %71 = arith.maximumf %69, %70 : vector<64x32xf32>
    %72 = arith.truncf %71 : vector<64x32xf32> to vector<64x32xbf16>
    %c0_47 = arith.constant 0 : index
    %c0_48 = arith.constant 0 : index
    %73 = vector.load %arg18[%c0_47, %c0_48] : memref<32x32xbf16, #tpu.memory_space<vmem>>, vector<32x32xbf16>
    %cst_49 = arith.constant dense<0.000000e+00> : vector<64x32xf32>
    %74 = tpu.matmul %72, %73, %cst_49 {dimension_numbers = #tpu.dot_dimension_numbers<[1], [0], [0], [1], [0, 0, 1, 1], [], []>} : vector<64x32xbf16>, vector<32x32xbf16>, vector<64x32xf32> -> vector<64x32xf32>
    %c0_50 = arith.constant 0 : index
    %c0_51 = arith.constant 0 : index
    %75 = vector.load %arg19[%c0_50, %c0_51] : memref<1x32xf32, #tpu.memory_space<vmem>>, vector<1x32xf32>
    %76 = vector.broadcast %75 : vector<1x32xf32> to vector<64x32xf32>
    %77 = arith.addf %74, %76 : vector<64x32xf32>
    %78 = vector.extract_strided_slice %77 {offsets = [0, 0], sizes = [64, 16], strides = [1, 1]} : vector<64x32xf32> to vector<64x16xf32>
    %79 = vector.extract_strided_slice %77 {offsets = [0, 16], sizes = [64, 16], strides = [1, 1]} : vector<64x32xf32> to vector<64x16xf32>
    %cst_52 = arith.constant 5.000000e-01 : f32
    %80 = vector.broadcast %cst_52 : f32 to vector<64x16xf32>
    %81 = arith.mulf %80, %79 : vector<64x16xf32>
    %82 = math.exp %81 : vector<64x16xf32>
    %83 = arith.mulf %4, %82 : vector<64x16xf32>
    %84 = arith.addf %78, %83 : vector<64x16xf32>
    %85 = arith.truncf %84 : vector<64x16xf32> to vector<64x16xbf16>
    %c0_53 = arith.constant 0 : index
    %c0_54 = arith.constant 0 : index
    %86 = vector.load %arg20[%c0_53, %c0_54] : memref<16x32xbf16, #tpu.memory_space<vmem>>, vector<16x32xbf16>
    %cst_55 = arith.constant dense<0.000000e+00> : vector<64x32xf32>
    %87 = tpu.matmul %85, %86, %cst_55 {dimension_numbers = #tpu.dot_dimension_numbers<[1], [0], [0], [1], [0, 0, 1, 1], [], []>} : vector<64x16xbf16>, vector<16x32xbf16>, vector<64x32xf32> -> vector<64x32xf32>
    %c0_56 = arith.constant 0 : index
    %c0_57 = arith.constant 0 : index
    %88 = vector.load %arg21[%c0_56, %c0_57] : memref<1x32xf32, #tpu.memory_space<vmem>>, vector<1x32xf32>
    %89 = vector.broadcast %88 : vector<1x32xf32> to vector<64x32xf32>
    %90 = arith.addf %87, %89 : vector<64x32xf32>
    %cst_58 = arith.constant 0.000000e+00 : f32
    %91 = vector.broadcast %cst_58 : f32 to vector<64x32xf32>
    %92 = arith.maximumf %90, %91 : vector<64x32xf32>
    %93 = arith.truncf %92 : vector<64x32xf32> to vector<64x32xbf16>
    %c0_59 = arith.constant 0 : index
    %c0_60 = arith.constant 0 : index
    %94 = vector.load %arg22[%c0_59, %c0_60] : memref<32x64xbf16, #tpu.memory_space<vmem>>, vector<32x64xbf16>
    %cst_61 = arith.constant dense<0.000000e+00> : vector<64x64xf32>
    %95 = tpu.matmul %93, %94, %cst_61 {dimension_numbers = #tpu.dot_dimension_numbers<[1], [0], [0], [1], [0, 0, 1, 1], [], []>} : vector<64x32xbf16>, vector<32x64xbf16>, vector<64x64xf32> -> vector<64x64xf32>
    %c0_62 = arith.constant 0 : index
    %c0_63 = arith.constant 0 : index
    %96 = vector.load %arg23[%c0_62, %c0_63] : memref<1x64xf32, #tpu.memory_space<vmem>>, vector<1x64xf32>
    %97 = vector.broadcast %96 : vector<1x64xf32> to vector<64x64xf32>
    %98 = arith.addf %95, %97 : vector<64x64xf32>
    %cst_64 = arith.constant 0.000000e+00 : f32
    %99 = vector.broadcast %cst_64 : f32 to vector<64x64xf32>
    %100 = arith.maximumf %98, %99 : vector<64x64xf32>
    %101 = arith.truncf %100 : vector<64x64xf32> to vector<64x64xbf16>
    %c0_65 = arith.constant 0 : index
    %c0_66 = arith.constant 0 : index
    %102 = vector.load %arg24[%c0_65, %c0_66] : memref<64x24xbf16, #tpu.memory_space<vmem>>, vector<64x24xbf16>
    %cst_67 = arith.constant dense<0.000000e+00> : vector<64x24xf32>
    %103 = tpu.matmul %101, %102, %cst_67 {dimension_numbers = #tpu.dot_dimension_numbers<[1], [0], [0], [1], [0, 0, 1, 1], [], []>} : vector<64x64xbf16>, vector<64x24xbf16>, vector<64x24xf32> -> vector<64x24xf32>
    %c0_68 = arith.constant 0 : index
    %c0_69 = arith.constant 0 : index
    %104 = vector.load %arg25[%c0_68, %c0_69] : memref<1x24xf32, #tpu.memory_space<vmem>>, vector<1x24xf32>
    %105 = vector.broadcast %104 : vector<1x24xf32> to vector<64x24xf32>
    %106 = arith.addf %103, %105 : vector<64x24xf32>
    %107 = arith.truncf %27 : vector<64x16xf32> to vector<64x16xbf16>
    %c0_70 = arith.constant 0 : index
    %c0_71 = arith.constant 0 : index
    %108 = vector.load %arg26[%c0_70, %c0_71] : memref<16x32xbf16, #tpu.memory_space<vmem>>, vector<16x32xbf16>
    %cst_72 = arith.constant dense<0.000000e+00> : vector<64x32xf32>
    %109 = tpu.matmul %107, %108, %cst_72 {dimension_numbers = #tpu.dot_dimension_numbers<[1], [0], [0], [1], [0, 0, 1, 1], [], []>} : vector<64x16xbf16>, vector<16x32xbf16>, vector<64x32xf32> -> vector<64x32xf32>
    %110 = arith.truncf %78 : vector<64x16xf32> to vector<64x16xbf16>
    %c0_73 = arith.constant 0 : index
    %c0_74 = arith.constant 0 : index
    %111 = vector.load %arg27[%c0_73, %c0_74] : memref<16x32xbf16, #tpu.memory_space<vmem>>, vector<16x32xbf16>
    %cst_75 = arith.constant dense<0.000000e+00> : vector<64x32xf32>
    %112 = tpu.matmul %110, %111, %cst_75 {dimension_numbers = #tpu.dot_dimension_numbers<[1], [0], [0], [1], [0, 0, 1, 1], [], []>} : vector<64x16xbf16>, vector<16x32xbf16>, vector<64x32xf32> -> vector<64x32xf32>
    %113 = arith.addf %109, %112 : vector<64x32xf32>
    %c0_76 = arith.constant 0 : index
    %c0_77 = arith.constant 0 : index
    %114 = vector.load %arg28[%c0_76, %c0_77] : memref<1x32xf32, #tpu.memory_space<vmem>>, vector<1x32xf32>
    %115 = vector.broadcast %114 : vector<1x32xf32> to vector<64x32xf32>
    %116 = arith.addf %113, %115 : vector<64x32xf32>
    %cst_78 = arith.constant 0.000000e+00 : f32
    %117 = vector.broadcast %cst_78 : f32 to vector<64x32xf32>
    %118 = arith.maximumf %116, %117 : vector<64x32xf32>
    %119 = arith.truncf %118 : vector<64x32xf32> to vector<64x32xbf16>
    %c0_79 = arith.constant 0 : index
    %c0_80 = arith.constant 0 : index
    %120 = vector.load %arg29[%c0_79, %c0_80] : memref<32x32xbf16, #tpu.memory_space<vmem>>, vector<32x32xbf16>
    %cst_81 = arith.constant dense<0.000000e+00> : vector<64x32xf32>
    %121 = tpu.matmul %119, %120, %cst_81 {dimension_numbers = #tpu.dot_dimension_numbers<[1], [0], [0], [1], [0, 0, 1, 1], [], []>} : vector<64x32xbf16>, vector<32x32xbf16>, vector<64x32xf32> -> vector<64x32xf32>
    %c0_82 = arith.constant 0 : index
    %c0_83 = arith.constant 0 : index
    %122 = vector.load %arg30[%c0_82, %c0_83] : memref<1x32xf32, #tpu.memory_space<vmem>>, vector<1x32xf32>
    %123 = vector.broadcast %122 : vector<1x32xf32> to vector<64x32xf32>
    %124 = arith.addf %121, %123 : vector<64x32xf32>
    %cst_84 = arith.constant 0.000000e+00 : f32
    %125 = vector.broadcast %cst_84 : f32 to vector<64x32xf32>
    %126 = arith.maximumf %124, %125 : vector<64x32xf32>
    %127 = arith.truncf %126 : vector<64x32xf32> to vector<64x32xbf16>
    %128 = arith.extf %127 : vector<64x32xbf16> to vector<64x32xf32>
    %c0_85 = arith.constant 0 : index
    %c0_86 = arith.constant 0 : index
    %129 = vector.load %arg31[%c0_85, %c0_86] : memref<1x32xf32, #tpu.memory_space<vmem>>, vector<1x32xf32>
    %130 = vector.broadcast %129 : vector<1x32xf32> to vector<64x32xf32>
    %131 = arith.mulf %128, %130 : vector<64x32xf32>
    %cst_87 = arith.constant dense<0.000000e+00> : vector<64xf32>
    %132 = vector.multi_reduction <add>, %131, %cst_87 [1] : vector<64x32xf32> to vector<64xf32>
    %133 = vector.shape_cast %132 : vector<64xf32> to vector<64x1xf32>
    %c0_88 = arith.constant 0 : index
    %c0_89 = arith.constant 0 : index
    %134 = vector.load %arg32[%c0_88, %c0_89] : memref<1x1xf32, #tpu.memory_space<vmem>>, vector<1x1xf32>
    %135 = vector.broadcast %134 : vector<1x1xf32> to vector<64x1xf32>
    %136 = arith.addf %133, %135 : vector<64x1xf32>
    %cst_90 = arith.constant 0.000000e+00 : f32
    %137 = vector.broadcast %cst_90 : f32 to vector<64x63xf32>
    %138 = tpu.concatenate %136, %26, %77, %137 in 1 : vector<64x1xf32>, vector<64x32xf32>, vector<64x32xf32>, vector<64x63xf32> -> vector<64x128xf32>
    %c0_91 = arith.constant 0 : index
    %c0_92 = arith.constant 0 : index
    %139 = vector.load %arg33[%c0_91, %c0_92] : memref<64x128xf32, #tpu.memory_space<vmem>>, vector<64x128xf32>
    tpu.vector_store %arg33[%c0_91, %c0_92], %138 {strides = array<i32>} : memref<64x128xf32, #tpu.memory_space<vmem>>, vector<64x128xf32>,
    %cst_93 = arith.constant 0.000000e+00 : f32
    %140 = vector.broadcast %cst_93 : f32 to vector<64x64xf32>
    %141 = tpu.concatenate %55, %106, %140 in 1 : vector<64x40xf32>, vector<64x24xf32>, vector<64x64xf32> -> vector<64x128xf32>
    %142 = arith.truncf %141 : vector<64x128xf32> to vector<64x128xbf16>
    %c0_94 = arith.constant 0 : index
    %c0_95 = arith.constant 0 : index
    %143 = vector.load %arg34[%c0_94, %c0_95] : memref<64x128xbf16, #tpu.memory_space<vmem>>, vector<64x128xbf16>
    tpu.vector_store %arg34[%c0_94, %c0_95], %142 {strides = array<i32>} : memref<64x128xbf16, #tpu.memory_space<vmem>>, vector<64x128xbf16>,
    return
  }
  func.func @transform_0(%arg0: i32) -> (i32, i32) {
    %c0_i32 = arith.constant 0 : i32
    %c0_i32_0 = arith.constant 0 : i32
    return %arg0, %c0_i32 : i32, i32
  }
  func.func @transform_1(%arg0: i32) -> (i32, i32) {
    %c0_i32 = arith.constant 0 : i32
    %c0_i32_0 = arith.constant 0 : i32
    %c0_i32_1 = arith.constant 0 : i32
    return %c0_i32, %c0_i32_0 : i32, i32
  }
  func.func @transform_2(%arg0: i32) -> (i32, i32) {
    %c0_i32 = arith.constant 0 : i32
    %c0_i32_0 = arith.constant 0 : i32
    %c0_i32_1 = arith.constant 0 : i32
    return %c0_i32, %c0_i32_0 : i32, i32
  }
  func.func @transform_3(%arg0: i32) -> (i32, i32) {
    %c0_i32 = arith.constant 0 : i32
    %c0_i32_0 = arith.constant 0 : i32
    %c0_i32_1 = arith.constant 0 : i32
    return %c0_i32, %c0_i32_0 : i32, i32
  }
  func.func @transform_4(%arg0: i32) -> (i32, i32) {
    %c0_i32 = arith.constant 0 : i32
    %c0_i32_0 = arith.constant 0 : i32
    %c0_i32_1 = arith.constant 0 : i32
    return %c0_i32, %c0_i32_0 : i32, i32
  }
  func.func @transform_5(%arg0: i32) -> (i32, i32) {
    %c0_i32 = arith.constant 0 : i32
    %c0_i32_0 = arith.constant 0 : i32
    %c0_i32_1 = arith.constant 0 : i32
    return %c0_i32, %c0_i32_0 : i32, i32
  }
  func.func @transform_6(%arg0: i32) -> (i32, i32) {
    %c0_i32 = arith.constant 0 : i32
    %c0_i32_0 = arith.constant 0 : i32
    %c0_i32_1 = arith.constant 0 : i32
    return %c0_i32, %c0_i32_0 : i32, i32
  }
  func.func @transform_7(%arg0: i32) -> (i32, i32) {
    %c0_i32 = arith.constant 0 : i32
    %c0_i32_0 = arith.constant 0 : i32
    %c0_i32_1 = arith.constant 0 : i32
    return %c0_i32, %c0_i32_0 : i32, i32
  }
  func.func @transform_8(%arg0: i32) -> (i32, i32) {
    %c0_i32 = arith.constant 0 : i32
    %c0_i32_0 = arith.constant 0 : i32
    %c0_i32_1 = arith.constant 0 : i32
    return %c0_i32, %c0_i32_0 : i32, i32
  }
  func.func @transform_9(%arg0: i32) -> (i32, i32) {
    %c0_i32 = arith.constant 0 : i32
    %c0_i32_0 = arith.constant 0 : i32
    %c0_i32_1 = arith.constant 0 : i32
    return %c0_i32, %c0_i32_0 : i32, i32
  }
  func.func @transform_10(%arg0: i32) -> (i32, i32) {
    %c0_i32 = arith.constant 0 : i32
    %c0_i32_0 = arith.constant 0 : i32
    %c0_i32_1 = arith.constant 0 : i32
    return %c0_i32, %c0_i32_0 : i32, i32
  }
  func.func @transform_11(%arg0: i32) -> (i32, i32) {
    %c0_i32 = arith.constant 0 : i32
    %c0_i32_0 = arith.constant 0 : i32
    %c0_i32_1 = arith.constant 0 : i32
    return %c0_i32, %c0_i32_0 : i32, i32
  }
  func.func @transform_12(%arg0: i32) -> (i32, i32) {
    %c0_i32 = arith.constant 0 : i32
    %c0_i32_0 = arith.constant 0 : i32
    %c0_i32_1 = arith.constant 0 : i32
    return %c0_i32, %c0_i32_0 : i32, i32
  }
  func.func @transform_13(%arg0: i32) -> (i32, i32) {
    %c0_i32 = arith.constant 0 : i32
    %c0_i32_0 = arith.constant 0 : i32
    %c0_i32_1 = arith.constant 0 : i32
    return %c0_i32, %c0_i32_0 : i32, i32
  }
  func.func @transform_14(%arg0: i32) -> (i32, i32) {
    %c0_i32 = arith.constant 0 : i32
    %c0_i32_0 = arith.constant 0 : i32
    %c0_i32_1 = arith.constant 0 : i32
    return %c0_i32, %c0_i32_0 : i32, i32
  }
  func.func @transform_15(%arg0: i32) -> (i32, i32) {
    %c0_i32 = arith.constant 0 : i32
    %c0_i32_0 = arith.constant 0 : i32
    %c0_i32_1 = arith.constant 0 : i32
    return %c0_i32, %c0_i32_0 : i32, i32
  }
  func.func @transform_16(%arg0: i32) -> (i32, i32) {
    %c0_i32 = arith.constant 0 : i32
    %c0_i32_0 = arith.constant 0 : i32
    %c0_i32_1 = arith.constant 0 : i32
    return %c0_i32, %c0_i32_0 : i32, i32
  }
  func.func @transform_17(%arg0: i32) -> (i32, i32) {
    %c0_i32 = arith.constant 0 : i32
    %c0_i32_0 = arith.constant 0 : i32
    %c0_i32_1 = arith.constant 0 : i32
    return %c0_i32, %c0_i32_0 : i32, i32
  }
  func.func @transform_18(%arg0: i32) -> (i32, i32) {
    %c0_i32 = arith.constant 0 : i32
    %c0_i32_0 = arith.constant 0 : i32
    %c0_i32_1 = arith.constant 0 : i32
    return %c0_i32, %c0_i32_0 : i32, i32
  }
  func.func @transform_19(%arg0: i32) -> (i32, i32) {
    %c0_i32 = arith.constant 0 : i32
    %c0_i32_0 = arith.constant 0 : i32
    %c0_i32_1 = arith.constant 0 : i32
    return %c0_i32, %c0_i32_0 : i32, i32
  }
  func.func @transform_20(%arg0: i32) -> (i32, i32) {
    %c0_i32 = arith.constant 0 : i32
    %c0_i32_0 = arith.constant 0 : i32
    %c0_i32_1 = arith.constant 0 : i32
    return %c0_i32, %c0_i32_0 : i32, i32
  }
  func.func @transform_21(%arg0: i32) -> (i32, i32) {
    %c0_i32 = arith.constant 0 : i32
    %c0_i32_0 = arith.constant 0 : i32
    %c0_i32_1 = arith.constant 0 : i32
    return %c0_i32, %c0_i32_0 : i32, i32
  }
  func.func @transform_22(%arg0: i32) -> (i32, i32) {
    %c0_i32 = arith.constant 0 : i32
    %c0_i32_0 = arith.constant 0 : i32
    %c0_i32_1 = arith.constant 0 : i32
    return %c0_i32, %c0_i32_0 : i32, i32
  }
  func.func @transform_23(%arg0: i32) -> (i32, i32) {
    %c0_i32 = arith.constant 0 : i32
    %c0_i32_0 = arith.constant 0 : i32
    %c0_i32_1 = arith.constant 0 : i32
    return %c0_i32, %c0_i32_0 : i32, i32
  }
  func.func @transform_24(%arg0: i32) -> (i32, i32) {
    %c0_i32 = arith.constant 0 : i32
    %c0_i32_0 = arith.constant 0 : i32
    %c0_i32_1 = arith.constant 0 : i32
    return %c0_i32, %c0_i32_0 : i32, i32
  }
  func.func @transform_25(%arg0: i32) -> (i32, i32) {
    %c0_i32 = arith.constant 0 : i32
    %c0_i32_0 = arith.constant 0 : i32
    %c0_i32_1 = arith.constant 0 : i32
    return %c0_i32, %c0_i32_0 : i32, i32
  }
  func.func @transform_26(%arg0: i32) -> (i32, i32) {
    %c0_i32 = arith.constant 0 : i32
    %c0_i32_0 = arith.constant 0 : i32
    %c0_i32_1 = arith.constant 0 : i32
    return %c0_i32, %c0_i32_0 : i32, i32
  }
  func.func @transform_27(%arg0: i32) -> (i32, i32) {
    %c0_i32 = arith.constant 0 : i32
    %c0_i32_0 = arith.constant 0 : i32
    %c0_i32_1 = arith.constant 0 : i32
    return %c0_i32, %c0_i32_0 : i32, i32
  }
  func.func @transform_28(%arg0: i32) -> (i32, i32) {
    %c0_i32 = arith.constant 0 : i32
    %c0_i32_0 = arith.constant 0 : i32
    %c0_i32_1 = arith.constant 0 : i32
    return %c0_i32, %c0_i32_0 : i32, i32
  }
  func.func @transform_29(%arg0: i32) -> (i32, i32) {
    %c0_i32 = arith.constant 0 : i32
    %c0_i32_0 = arith.constant 0 : i32
    %c0_i32_1 = arith.constant 0 : i32
    return %c0_i32, %c0_i32_0 : i32, i32
  }
  func.func @transform_30(%arg0: i32) -> (i32, i32) {
    %c0_i32 = arith.constant 0 : i32
    %c0_i32_0 = arith.constant 0 : i32
    %c0_i32_1 = arith.constant 0 : i32
    return %c0_i32, %c0_i32_0 : i32, i32
  }
  func.func @transform_31(%arg0: i32) -> (i32, i32) {
    %c0_i32 = arith.constant 0 : i32
    %c0_i32_0 = arith.constant 0 : i32
    %c0_i32_1 = arith.constant 0 : i32
    return %c0_i32, %c0_i32_0 : i32, i32
  }
  func.func @transform_32(%arg0: i32) -> (i32, i32) {
    %c0_i32 = arith.constant 0 : i32
    %c0_i32_0 = arith.constant 0 : i32
    return %arg0, %c0_i32 : i32, i32
  }
  func.func @transform_33(%arg0: i32) -> (i32, i32) {
    %c0_i32 = arith.constant 0 : i32
    %c0_i32_0 = arith.constant 0 : i32
    return %arg0, %c0_i32 : i32, i32
  }
}

</mosaic_0001>

<llo_original>
// kernel: tpu_custom_call.1
$region0: #{tpu_custom_call.1}
  #allocation0 [shape = 'u32[]', space=smem, size = 0x4, offset = 0x4, fixed_abs, tag = 'smem constant byte address 0x4 - core index']
  #allocation1 [shape = 'u32[144,128]{1,0:T(1,128)}', space=vmem, size = 0x12000, scoped, tag = 'internal scratch']
  #allocation2 [shape = 'f32[1,1]{1,0:T(1,128)S(1)}', space=vmem, size = 0x200, scoped, tag = 'scoped memory for tpu_custom_call.1']
  %s0 = inlined_call_operand.smem [shape: u32[34], index: -1, kind: input, shape index: {}]
  %s1 = sld [smem:[%s0]]
  %s2 = scalar_lea.smem %s0, 1
  %s3 = sld [smem:[%s2]]
  %s4 = scalar_lea.smem %s0, 2
  %s5 = sld [smem:[%s4]]
  %s6 = scalar_lea.smem %s0, 3
  %s7 = sld [smem:[%s6]]
  %s8 = scalar_lea.smem %s0, 4
  %s9 = sld [smem:[%s8]]
  %s10 = scalar_lea.smem %s0, 5
  %s11 = sld [smem:[%s10]]
  %s12 = scalar_lea.smem %s0, 6
  %s13 = sld [smem:[%s12]]
  %s14 = scalar_lea.smem %s0, 7
  %s15 = sld [smem:[%s14]]
  %s16 = scalar_lea.smem %s0, 8
  %s17 = sld [smem:[%s16]]
  %s18 = scalar_lea.smem %s0, 9
  %s19 = sld [smem:[%s18]]
  %s20 = scalar_lea.smem %s0, 10
  %s21 = sld [smem:[%s20]]
  %s22 = scalar_lea.smem %s0, 11
  %s23 = sld [smem:[%s22]]
  %s24 = scalar_lea.smem %s0, 12
  %s25 = sld [smem:[%s24]]
  %s26 = scalar_lea.smem %s0, 13
  %s27 = sld [smem:[%s26]]
  %s28 = scalar_lea.smem %s0, 14
  %s29 = sld [smem:[%s28]]
  %s30 = scalar_lea.smem %s0, 15
  %s31 = sld [smem:[%s30]]
  %s32 = scalar_lea.smem %s0, 16
  %s33 = sld [smem:[%s32]]
  %s34 = scalar_lea.smem %s0, 17
  %s35 = sld [smem:[%s34]]
  %s36 = scalar_lea.smem %s0, 18
  %s37 = sld [smem:[%s36]]
  %s38 = scalar_lea.smem %s0, 19
  %s39 = sld [smem:[%s38]]
  %s40 = scalar_lea.smem %s0, 20
  %s41 = sld [smem:[%s40]]
  %s42 = scalar_lea.smem %s0, 21
  %s43 = sld [smem:[%s42]]
  %s44 = scalar_lea.smem %s0, 22
  %s45 = sld [smem:[%s44]]
  %s46 = scalar_lea.smem %s0, 23
  %s47 = sld [smem:[%s46]]
  %s48 = scalar_lea.smem %s0, 24
  %s49 = sld [smem:[%s48]]
  %s50 = scalar_lea.smem %s0, 25
  %s51 = sld [smem:[%s50]]
  %s52 = scalar_lea.smem %s0, 26
  %s53 = sld [smem:[%s52]]
  %s54 = scalar_lea.smem %s0, 27
  %s55 = sld [smem:[%s54]]
  %s56 = scalar_lea.smem %s0, 28
  %s57 = sld [smem:[%s56]]
  %s58 = scalar_lea.smem %s0, 29
  %s59 = sld [smem:[%s58]]
  %s60 = scalar_lea.smem %s0, 30
  %s61 = sld [smem:[%s60]]
  %s62 = scalar_lea.smem %s0, 31
  %s63 = sld [smem:[%s62]]
  %s64 = scalar_lea.smem %s0, 32
  %s65 = sld [smem:[%s64]]
  %s66 = scalar_lea.smem %s0, 33
  %s67 = sld [smem:[%s66]]
  %68 = xla_tuple %s65, %s67
  %s69 = sld [smem:[#allocation0]]
  $region173: #{tpu_custom_call.1} parent=0
    _
  %s71 = ssub.s32 1, %s69
  %s72 = scalar_select 0, %s71, %s69
  %v73 = vstv %s63
  %74 = vst [vmem:[#allocation2] sm:$0x1] %v73
  $region1: #{tpu_custom_call.1} parent=0
    #allocation3 [shape = 'u8[65536]{0}', space=vmem, size = 0x10000, scoped, tag = 'input window, operand 0']
    #allocation4 [shape = 's32[2]{0}', space=sflag, size = 0x8, scoped, tag = 'scoped memory for tpu_custom_call.1']
    #allocation5 [shape = 's32[2]{0}', space=sflag, size = 0x8, scoped, tag = 'scoped memory for tpu_custom_call.1']
    #allocation6 [shape = 'u8[65536]{0}', space=vmem, size = 0x10000, scoped, tag = 'output window, operand 0']
    #allocation7 [shape = 'u8[32768]{0}', space=vmem, size = 0x8000, scoped, tag = 'output window, operand 1']
    #allocation8 [shape = 's32[2]{0}', space=sflag, size = 0x8, scoped, tag = 'scoped memory for tpu_custom_call.1']
    %75 = vsyncpa [#allocation4], 0
    %s76 = scalar_lea.sflag [#allocation4], 1
    %77 = vsyncpa %s76, 0
    %78 = vsyncpa [#allocation5], 0
    %s79 = scalar_lea.sflag [#allocation5], 1
    %80 = vsyncpa %s79, 0
    %81 = vsyncpa [#allocation8], 0
    %s82 = scalar_lea.sflag [#allocation8], 1
    %83 = vsyncpa %s82, 0
    loop: start=0, step=1, limit=10
    $region2: #{tpu_custom_call.1} parent=1 // loop_pre_header
      _
    $region3: #{tpu_custom_call.1} parent=1 // loop_header
      %s85 = sphi 0, %s89
      %p86 = scmp.ge.s32.totalorder %s85, 10
      %s95 = sphi 0, %s97
      %s98 = sphi 0, %s95
      %s99 = sphi 0, %s98
      %s115 = sphi 0, %s99
      %s119 = sphi 0, %s119
      %s121 = sphi 0, %s119
      %s122 = sphi 0, %s121
      %s136 = sphi 0, %s122
      %s140 = sphi 0, %s140
      %s142 = sphi 0, %s140
      %s143 = sphi 0, %s142
      %s157 = sphi 0, %s143
      %s161 = sphi 0, %s161
      %s163 = sphi 0, %s161
      %s164 = sphi 0, %s163
      %s178 = sphi 0, %s164
      %s182 = sphi 0, %s182
      %s184 = sphi 0, %s182
      %s185 = sphi 0, %s184
      %s199 = sphi 0, %s185
      %s203 = sphi 0, %s203
      %s205 = sphi 0, %s203
      %s206 = sphi 0, %s205
      %s220 = sphi 0, %s206
      %s224 = sphi 0, %s224
      %s226 = sphi 0, %s224
      %s227 = sphi 0, %s226
      %s241 = sphi 0, %s227
      %s245 = sphi 0, %s245
      %s247 = sphi 0, %s245
      %s248 = sphi 0, %s247
      %s262 = sphi 0, %s248
      %s266 = sphi 0, %s266
      %s268 = sphi 0, %s266
      %s269 = sphi 0, %s268
      %s283 = sphi 0, %s269
      %s287 = sphi 0, %s287
      %s289 = sphi 0, %s287
      %s290 = sphi 0, %s289
      %s304 = sphi 0, %s290
      %s308 = sphi 0, %s308
      %s310 = sphi 0, %s308
      %s311 = sphi 0, %s310
      %s325 = sphi 0, %s311
      %s329 = sphi 0, %s329
      %s331 = sphi 0, %s329
      %s332 = sphi 0, %s331
      %s346 = sphi 0, %s332
      %s350 = sphi 0, %s350
      %s352 = sphi 0, %s350
      %s353 = sphi 0, %s352
      %s367 = sphi 0, %s353
      %s371 = sphi 0, %s371
      %s373 = sphi 0, %s371
      %s374 = sphi 0, %s373
      %s388 = sphi 0, %s374
      %s392 = sphi 0, %s392
      %s394 = sphi 0, %s392
      %s395 = sphi 0, %s394
      %s409 = sphi 0, %s395
      %s413 = sphi 0, %s413
      %s415 = sphi 0, %s413
      %s416 = sphi 0, %s415
      %s430 = sphi 0, %s416
      %s434 = sphi 0, %s434
      %s436 = sphi 0, %s434
      %s437 = sphi 0, %s436
      %s451 = sphi 0, %s437
      %s455 = sphi 0, %s455
      %s457 = sphi 0, %s455
      %s458 = sphi 0, %s457
      %s472 = sphi 0, %s458
      %s476 = sphi 0, %s476
      %s478 = sphi 0, %s476
      %s479 = sphi 0, %s478
      %s493 = sphi 0, %s479
      %s497 = sphi 0, %s497
      %s499 = sphi 0, %s497
      %s500 = sphi 0, %s499
      %s514 = sphi 0, %s500
      %s518 = sphi 0, %s518
      %s520 = sphi 0, %s518
      %s521 = sphi 0, %s520
      %s535 = sphi 0, %s521
      %s539 = sphi 0, %s539
      %s541 = sphi 0, %s539
      %s542 = sphi 0, %s541
      %s556 = sphi 0, %s542
      %s560 = sphi 0, %s560
      %s562 = sphi 0, %s560
      %s563 = sphi 0, %s562
      %s577 = sphi 0, %s563
      %s581 = sphi 0, %s581
      %s583 = sphi 0, %s581
      %s584 = sphi 0, %s583
      %s598 = sphi 0, %s584
      %s602 = sphi 0, %s602
      %s604 = sphi 0, %s602
      %s605 = sphi 0, %s604
      %s619 = sphi 0, %s605
      %s623 = sphi 0, %s623
      %s625 = sphi 0, %s623
      %s626 = sphi 0, %s625
      %s640 = sphi 0, %s626
      %s644 = sphi 0, %s644
      %s646 = sphi 0, %s644
      %s647 = sphi 0, %s646
      %s661 = sphi 0, %s647
      %s665 = sphi 0, %s665
      %s667 = sphi 0, %s665
      %s668 = sphi 0, %s667
      %s682 = sphi 0, %s668
      %s686 = sphi 0, %s686
      %s688 = sphi 0, %s686
      %s689 = sphi 0, %s688
      %s703 = sphi 0, %s689
      %s707 = sphi 0, %s707
      %s709 = sphi 0, %s707
      %s710 = sphi 0, %s709
      %s724 = sphi 0, %s710
      %s728 = sphi 0, %s728
      %s730 = sphi 0, %s728
      %s731 = sphi 0, %s730
      %s745 = sphi 0, %s731
      %s749 = sphi 0, %s749
      %s751 = sphi 0, %s749
      %s752 = sphi 0, %s751
      %s766 = sphi 0, %s752
      %s772 = sphi 0, %s774
      %s775 = sphi 0, %s772
      %s776 = sphi 0, %s775
      %s792 = sphi 0, %s776
      %s798 = sphi 0, %s800
      %s801 = sphi 0, %s798
      %s802 = sphi 0, %s801
      %s818 = sphi 0, %s802
    $region4: #{tpu_custom_call.1} parent=1 // loop_header_branch
      %88 = sbr.rel (%p86) target = $region8
    $region5: #{tpu_custom_call.1} parent=1 // loop_body
      %s90 = ssub.s32 %s85, 1
      %s91 = ssub.s32 %s85, 2
      %s92 = sadd.s32 %s85, 1
      %s93 = ssub.s32 %s85, %s92
      %p94 = scmp.eq.s32.totalorder %s93, 0
      %s96 = sadd.s32 %s95, 1
      %s97 = scalar_select %p94, %s95, %s96
      %p100 = pneg %p94
      %p101 = scmp.eq.s32.totalorder %s85, 7
      %p102 = por %p100, %p101
      %p103 = scmp.ne.s32.totalorder %s95, %s98
      %p104 = scmp.eq.s32.totalorder %s85, 0
      %p105 = por %p103, %p104
      %p106 = scmp.ne.s32.totalorder %s95, %s98
      %p107 = scmp.eq.s32.totalorder %s90, 7
      %p108 = por %p106, %p107
      %p109 = scmp.ne.s32.totalorder %s98, %s99
      %p110 = scmp.eq.s32.totalorder %s90, 0
      %p111 = por %p109, %p110
      %p112 = scmp.ne.s32.totalorder %s98, %s99
      %p113 = scmp.eq.s32.totalorder %s91, 7
      %p114 = por %p112, %p113
      %p116 = scmp.ne.s32.totalorder %s99, %s115
      %p117 = scmp.eq.s32.totalorder %s91, 0
      %p118 = por %p116, %p117
      %s120 = sadd.s32 %s119, 1
      %p123 = scmp.eq.s32.totalorder %s85, 7
      %p124 = scmp.ne.s32.totalorder %s119, %s121
      %p125 = scmp.eq.s32.totalorder %s85, 0
      %p126 = por %p124, %p125
      %p127 = scmp.ne.s32.totalorder %s119, %s121
      %p128 = scmp.eq.s32.totalorder %s90, 7
      %p129 = por %p127, %p128
      %p130 = scmp.ne.s32.totalorder %s121, %s122
      %p131 = scmp.eq.s32.totalorder %s90, 0
      %p132 = por %p130, %p131
      %p133 = scmp.ne.s32.totalorder %s121, %s122
      %p134 = scmp.eq.s32.totalorder %s91, 7
      %p135 = por %p133, %p134
      %p137 = scmp.ne.s32.totalorder %s122, %s136
      %p138 = scmp.eq.s32.totalorder %s91, 0
      %p139 = por %p137, %p138
      %s141 = sadd.s32 %s140, 1
      %p144 = scmp.eq.s32.totalorder %s85, 7
      %p145 = scmp.ne.s32.totalorder %s140, %s142
      %p146 = scmp.eq.s32.totalorder %s85, 0
      %p147 = por %p145, %p146
      %p148 = scmp.ne.s32.totalorder %s140, %s142
      %p149 = scmp.eq.s32.totalorder %s90, 7
      %p150 = por %p148, %p149
      %p151 = scmp.ne.s32.totalorder %s142, %s143
      %p152 = scmp.eq.s32.totalorder %s90, 0
      %p153 = por %p151, %p152
      %p154 = scmp.ne.s32.totalorder %s142, %s143
      %p155 = scmp.eq.s32.totalorder %s91, 7
      %p156 = por %p154, %p155
      %p158 = scmp.ne.s32.totalorder %s143, %s157
      %p159 = scmp.eq.s32.totalorder %s91, 0
      %p160 = por %p158, %p159
      %s162 = sadd.s32 %s161, 1
      %p165 = scmp.eq.s32.totalorder %s85, 7
      %p166 = scmp.ne.s32.totalorder %s161, %s163
      %p167 = scmp.eq.s32.totalorder %s85, 0
      %p168 = por %p166, %p167
      %p169 = scmp.ne.s32.totalorder %s161, %s163
      %p170 = scmp.eq.s32.totalorder %s90, 7
      %p171 = por %p169, %p170
      %p172 = scmp.ne.s32.totalorder %s163, %s164
      %p173 = scmp.eq.s32.totalorder %s90, 0
      %p174 = por %p172, %p173
      %p175 = scmp.ne.s32.totalorder %s163, %s164
      %p176 = scmp.eq.s32.totalorder %s91, 7
      %p177 = por %p175, %p176
      %p179 = scmp.ne.s32.totalorder %s164, %s178
      %p180 = scmp.eq.s32.totalorder %s91, 0
      %p181 = por %p179, %p180
      %s183 = sadd.s32 %s182, 1
      %p186 = scmp.eq.s32.totalorder %s85, 7
      %p187 = scmp.ne.s32.totalorder %s182, %s184
      %p188 = scmp.eq.s32.totalorder %s85, 0
      %p189 = por %p187, %p188
      %p190 = scmp.ne.s32.totalorder %s182, %s184
      %p191 = scmp.eq.s32.totalorder %s90, 7
      %p192 = por %p190, %p191
      %p193 = scmp.ne.s32.totalorder %s184, %s185
      %p194 = scmp.eq.s32.totalorder %s90, 0
      %p195 = por %p193, %p194
      %p196 = scmp.ne.s32.totalorder %s184, %s185
      %p197 = scmp.eq.s32.totalorder %s91, 7
      %p198 = por %p196, %p197
      %p200 = scmp.ne.s32.totalorder %s185, %s199
      %p201 = scmp.eq.s32.totalorder %s91, 0
      %p202 = por %p200, %p201
      %s204 = sadd.s32 %s203, 1
      %p207 = scmp.eq.s32.totalorder %s85, 7
      %p208 = scmp.ne.s32.totalorder %s203, %s205
      %p209 = scmp.eq.s32.totalorder %s85, 0
      %p210 = por %p208, %p209
      %p211 = scmp.ne.s32.totalorder %s203, %s205
      %p212 = scmp.eq.s32.totalorder %s90, 7
      %p213 = por %p211, %p212
      %p214 = scmp.ne.s32.totalorder %s205, %s206
      %p215 = scmp.eq.s32.totalorder %s90, 0
      %p216 = por %p214, %p215
      %p217 = scmp.ne.s32.totalorder %s205, %s206
      %p218 = scmp.eq.s32.totalorder %s91, 7
      %p219 = por %p217, %p218
      %p221 = scmp.ne.s32.totalorder %s206, %s220
      %p222 = scmp.eq.s32.totalorder %s91, 0
      %p223 = por %p221, %p222
      %s225 = sadd.s32 %s224, 1
      %p228 = scmp.eq.s32.totalorder %s85, 7
      %p229 = scmp.ne.s32.totalorder %s224, %s226
      %p230 = scmp.eq.s32.totalorder %s85, 0
      %p231 = por %p229, %p230
      %p232 = scmp.ne.s32.totalorder %s224, %s226
      %p233 = scmp.eq.s32.totalorder %s90, 7
      %p234 = por %p232, %p233
      %p235 = scmp.ne.s32.totalorder %s226, %s227
      %p236 = scmp.eq.s32.totalorder %s90, 0
      %p237 = por %p235, %p236
      %p238 = scmp.ne.s32.totalorder %s226, %s227
      %p239 = scmp.eq.s32.totalorder %s91, 7
      %p240 = por %p238, %p239
      %p242 = scmp.ne.s32.totalorder %s227, %s241
      %p243 = scmp.eq.s32.totalorder %s91, 0
      %p244 = por %p242, %p243
      %s246 = sadd.s32 %s245, 1
      %p249 = scmp.eq.s32.totalorder %s85, 7
      %p250 = scmp.ne.s32.totalorder %s245, %s247
      %p251 = scmp.eq.s32.totalorder %s85, 0
      %p252 = por %p250, %p251
      %p253 = scmp.ne.s32.totalorder %s245, %s247
      %p254 = scmp.eq.s32.totalorder %s90, 7
      %p255 = por %p253, %p254
      %p256 = scmp.ne.s32.totalorder %s247, %s248
      %p257 = scmp.eq.s32.totalorder %s90, 0
      %p258 = por %p256, %p257
      %p259 = scmp.ne.s32.totalorder %s247, %s248
      %p260 = scmp.eq.s32.totalorder %s91, 7
      %p261 = por %p259, %p260
      %p263 = scmp.ne.s32.totalorder %s248, %s262
      %p264 = scmp.eq.s32.totalorder %s91, 0
      %p265 = por %p263, %p264
      %s267 = sadd.s32 %s266, 1
      %p270 = scmp.eq.s32.totalorder %s85, 7
      %p271 = scmp.ne.s32.totalorder %s266, %s268
      %p272 = scmp.eq.s32.totalorder %s85, 0
      %p273 = por %p271, %p272
      %p274 = scmp.ne.s32.totalorder %s266, %s268
      %p275 = scmp.eq.s32.totalorder %s90, 7
      %p276 = por %p274, %p275
      %p277 = scmp.ne.s32.totalorder %s268, %s269
      %p278 = scmp.eq.s32.totalorder %s90, 0
      %p279 = por %p277, %p278
      %p280 = scmp.ne.s32.totalorder %s268, %s269
      %p281 = scmp.eq.s32.totalorder %s91, 7
      %p282 = por %p280, %p281
      %p284 = scmp.ne.s32.totalorder %s269, %s283
      %p285 = scmp.eq.s32.totalorder %s91, 0
      %p286 = por %p284, %p285
      %s288 = sadd.s32 %s287, 1
      %p291 = scmp.eq.s32.totalorder %s85, 7
      %p292 = scmp.ne.s32.totalorder %s287, %s289
      %p293 = scmp.eq.s32.totalorder %s85, 0
      %p294 = por %p292, %p293
      %p295 = scmp.ne.s32.totalorder %s287, %s289
      %p296 = scmp.eq.s32.totalorder %s90, 7
      %p297 = por %p295, %p296
      %p298 = scmp.ne.s32.totalorder %s289, %s290
      %p299 = scmp.eq.s32.totalorder %s90, 0
      %p300 = por %p298, %p299
      %p301 = scmp.ne.s32.totalorder %s289, %s290
      %p302 = scmp.eq.s32.totalorder %s91, 7
      %p303 = por %p301, %p302
      %p305 = scmp.ne.s32.totalorder %s290, %s304
      %p306 = scmp.eq.s32.totalorder %s91, 0
      %p307 = por %p305, %p306
      %s309 = sadd.s32 %s308, 1
      %p312 = scmp.eq.s32.totalorder %s85, 7
      %p313 = scmp.ne.s32.totalorder %s308, %s310
      %p314 = scmp.eq.s32.totalorder %s85, 0
      %p315 = por %p313, %p314
      %p316 = scmp.ne.s32.totalorder %s308, %s310
      %p317 = scmp.eq.s32.totalorder %s90, 7
      %p318 = por %p316, %p317
      %p319 = scmp.ne.s32.totalorder %s310, %s311
      %p320 = scmp.eq.s32.totalorder %s90, 0
      %p321 = por %p319, %p320
      %p322 = scmp.ne.s32.totalorder %s310, %s311
      %p323 = scmp.eq.s32.totalorder %s91, 7
      %p324 = por %p322, %p323
      %p326 = scmp.ne.s32.totalorder %s311, %s325
      %p327 = scmp.eq.s32.totalorder %s91, 0
      %p328 = por %p326, %p327
      %s330 = sadd.s32 %s329, 1
      %p333 = scmp.eq.s32.totalorder %s85, 7
      %p334 = scmp.ne.s32.totalorder %s329, %s331
      %p335 = scmp.eq.s32.totalorder %s85, 0
      %p336 = por %p334, %p335
      %p337 = scmp.ne.s32.totalorder %s329, %s331
      %p338 = scmp.eq.s32.totalorder %s90, 7
      %p339 = por %p337, %p338
      %p340 = scmp.ne.s32.totalorder %s331, %s332
      %p341 = scmp.eq.s32.totalorder %s90, 0
      %p342 = por %p340, %p341
      %p343 = scmp.ne.s32.totalorder %s331, %s332
      %p344 = scmp.eq.s32.totalorder %s91, 7
      %p345 = por %p343, %p344
      %p347 = scmp.ne.s32.totalorder %s332, %s346
      %p348 = scmp.eq.s32.totalorder %s91, 0
      %p349 = por %p347, %p348
      %s351 = sadd.s32 %s350, 1
      %p354 = scmp.eq.s32.totalorder %s85, 7
      %p355 = scmp.ne.s32.totalorder %s350, %s352
      %p356 = scmp.eq.s32.totalorder %s85, 0
      %p357 = por %p355, %p356
      %p358 = scmp.ne.s32.totalorder %s350, %s352
      %p359 = scmp.eq.s32.totalorder %s90, 7
      %p360 = por %p358, %p359
      %p361 = scmp.ne.s32.totalorder %s352, %s353
      %p362 = scmp.eq.s32.totalorder %s90, 0
      %p363 = por %p361, %p362
      %p364 = scmp.ne.s32.totalorder %s352, %s353
      %p365 = scmp.eq.s32.totalorder %s91, 7
      %p366 = por %p364, %p365
      %p368 = scmp.ne.s32.totalorder %s353, %s367
      %p369 = scmp.eq.s32.totalorder %s91, 0
      %p370 = por %p368, %p369
      %s372 = sadd.s32 %s371, 1
      %p375 = scmp.eq.s32.totalorder %s85, 7
      %p376 = scmp.ne.s32.totalorder %s371, %s373
      %p377 = scmp.eq.s32.totalorder %s85, 0
      %p378 = por %p376, %p377
      %p379 = scmp.ne.s32.totalorder %s371, %s373
      %p380 = scmp.eq.s32.totalorder %s90, 7
      %p381 = por %p379, %p380
      %p382 = scmp.ne.s32.totalorder %s373, %s374
      %p383 = scmp.eq.s32.totalorder %s90, 0
      %p384 = por %p382, %p383
      %p385 = scmp.ne.s32.totalorder %s373, %s374
      %p386 = scmp.eq.s32.totalorder %s91, 7
      %p387 = por %p385, %p386
      %p389 = scmp.ne.s32.totalorder %s374, %s388
      %p390 = scmp.eq.s32.totalorder %s91, 0
      %p391 = por %p389, %p390
      %s393 = sadd.s32 %s392, 1
      %p396 = scmp.eq.s32.totalorder %s85, 7
      %p397 = scmp.ne.s32.totalorder %s392, %s394
      %p398 = scmp.eq.s32.totalorder %s85, 0
      %p399 = por %p397, %p398
      %p400 = scmp.ne.s32.totalorder %s392, %s394
      %p401 = scmp.eq.s32.totalorder %s90, 7
      %p402 = por %p400, %p401
      %p403 = scmp.ne.s32.totalorder %s394, %s395
      %p404 = scmp.eq.s32.totalorder %s90, 0
      %p405 = por %p403, %p404
      %p406 = scmp.ne.s32.totalorder %s394, %s395
      %p407 = scmp.eq.s32.totalorder %s91, 7
      %p408 = por %p406, %p407
      %p410 = scmp.ne.s32.totalorder %s395, %s409
      %p411 = scmp.eq.s32.totalorder %s91, 0
      %p412 = por %p410, %p411
      %s414 = sadd.s32 %s413, 1
      %p417 = scmp.eq.s32.totalorder %s85, 7
      %p418 = scmp.ne.s32.totalorder %s413, %s415
      %p419 = scmp.eq.s32.totalorder %s85, 0
      %p420 = por %p418, %p419
      %p421 = scmp.ne.s32.totalorder %s413, %s415
      %p422 = scmp.eq.s32.totalorder %s90, 7
      %p423 = por %p421, %p422
      %p424 = scmp.ne.s32.totalorder %s415, %s416
      %p425 = scmp.eq.s32.totalorder %s90, 0
      %p426 = por %p424, %p425
      %p427 = scmp.ne.s32.totalorder %s415, %s416
      %p428 = scmp.eq.s32.totalorder %s91, 7
      %p429 = por %p427, %p428
      %p431 = scmp.ne.s32.totalorder %s416, %s430
      %p432 = scmp.eq.s32.totalorder %s91, 0
      %p433 = por %p431, %p432
      %s435 = sadd.s32 %s434, 1
      %p438 = scmp.eq.s32.totalorder %s85, 7
      %p439 = scmp.ne.s32.totalorder %s434, %s436
      %p440 = scmp.eq.s32.totalorder %s85, 0
      %p441 = por %p439, %p440
      %p442 = scmp.ne.s32.totalorder %s434, %s436
      %p443 = scmp.eq.s32.totalorder %s90, 7
      %p444 = por %p442, %p443
      %p445 = scmp.ne.s32.totalorder %s436, %s437
      %p446 = scmp.eq.s32.totalorder %s90, 0
      %p447 = por %p445, %p446
      %p448 = scmp.ne.s32.totalorder %s436, %s437
      %p449 = scmp.eq.s32.totalorder %s91, 7
      %p450 = por %p448, %p449
      %p452 = scmp.ne.s32.totalorder %s437, %s451
      %p453 = scmp.eq.s32.totalorder %s91, 0
      %p454 = por %p452, %p453
      %s456 = sadd.s32 %s455, 1
      %p459 = scmp.eq.s32.totalorder %s85, 7
      %p460 = scmp.ne.s32.totalorder %s455, %s457
      %p461 = scmp.eq.s32.totalorder %s85, 0
      %p462 = por %p460, %p461
      %p463 = scmp.ne.s32.totalorder %s455, %s457
      %p464 = scmp.eq.s32.totalorder %s90, 7
      %p465 = por %p463, %p464
      %p466 = scmp.ne.s32.totalorder %s457, %s458
      %p467 = scmp.eq.s32.totalorder %s90, 0
      %p468 = por %p466, %p467
      %p469 = scmp.ne.s32.totalorder %s457, %s458
      %p470 = scmp.eq.s32.totalorder %s91, 7
      %p471 = por %p469, %p470
      %p473 = scmp.ne.s32.totalorder %s458, %s472
      %p474 = scmp.eq.s32.totalorder %s91, 0
      %p475 = por %p473, %p474
      %s477 = sadd.s32 %s476, 1
      %p480 = scmp.eq.s32.totalorder %s85, 7
      %p481 = scmp.ne.s32.totalorder %s476, %s478
      %p482 = scmp.eq.s32.totalorder %s85, 0
      %p483 = por %p481, %p482
      %p484 = scmp.ne.s32.totalorder %s476, %s478
      %p485 = scmp.eq.s32.totalorder %s90, 7
      %p486 = por %p484, %p485
      %p487 = scmp.ne.s32.totalorder %s478, %s479
      %p488 = scmp.eq.s32.totalorder %s90, 0
      %p489 = por %p487, %p488
      %p490 = scmp.ne.s32.totalorder %s478, %s479
      %p491 = scmp.eq.s32.totalorder %s91, 7
      %p492 = por %p490, %p491
      %p494 = scmp.ne.s32.totalorder %s479, %s493
      %p495 = scmp.eq.s32.totalorder %s91, 0
      %p496 = por %p494, %p495
      %s498 = sadd.s32 %s497, 1
      %p501 = scmp.eq.s32.totalorder %s85, 7
      %p502 = scmp.ne.s32.totalorder %s497, %s499
      %p503 = scmp.eq.s32.totalorder %s85, 0
      %p504 = por %p502, %p503
      %p505 = scmp.ne.s32.totalorder %s497, %s499
      %p506 = scmp.eq.s32.totalorder %s90, 7
      %p507 = por %p505, %p506
      %p508 = scmp.ne.s32.totalorder %s499, %s500
      %p509 = scmp.eq.s32.totalorder %s90, 0
      %p510 = por %p508, %p509
      %p511 = scmp.ne.s32.totalorder %s499, %s500
      %p512 = scmp.eq.s32.totalorder %s91, 7
      %p513 = por %p511, %p512
      %p515 = scmp.ne.s32.totalorder %s500, %s514
      %p516 = scmp.eq.s32.totalorder %s91, 0
      %p517 = por %p515, %p516
      %s519 = sadd.s32 %s518, 1
      %p522 = scmp.eq.s32.totalorder %s85, 7
      %p523 = scmp.ne.s32.totalorder %s518, %s520
      %p524 = scmp.eq.s32.totalorder %s85, 0
      %p525 = por %p523, %p524
      %p526 = scmp.ne.s32.totalorder %s518, %s520
      %p527 = scmp.eq.s32.totalorder %s90, 7
      %p528 = por %p526, %p527
      %p529 = scmp.ne.s32.totalorder %s520, %s521
      %p530 = scmp.eq.s32.totalorder %s90, 0
      %p531 = por %p529, %p530
      %p532 = scmp.ne.s32.totalorder %s520, %s521
      %p533 = scmp.eq.s32.totalorder %s91, 7
      %p534 = por %p532, %p533
      %p536 = scmp.ne.s32.totalorder %s521, %s535
      %p537 = scmp.eq.s32.totalorder %s91, 0
      %p538 = por %p536, %p537
      %s540 = sadd.s32 %s539, 1
      %p543 = scmp.eq.s32.totalorder %s85, 7
      %p544 = scmp.ne.s32.totalorder %s539, %s541
      %p545 = scmp.eq.s32.totalorder %s85, 0
      %p546 = por %p544, %p545
      %p547 = scmp.ne.s32.totalorder %s539, %s541
      %p548 = scmp.eq.s32.totalorder %s90, 7
      %p549 = por %p547, %p548
      %p550 = scmp.ne.s32.totalorder %s541, %s542
      %p551 = scmp.eq.s32.totalorder %s90, 0
      %p552 = por %p550, %p551
      %p553 = scmp.ne.s32.totalorder %s541, %s542
      %p554 = scmp.eq.s32.totalorder %s91, 7
      %p555 = por %p553, %p554
      %p557 = scmp.ne.s32.totalorder %s542, %s556
      %p558 = scmp.eq.s32.totalorder %s91, 0
      %p559 = por %p557, %p558
      %s561 = sadd.s32 %s560, 1
      %p564 = scmp.eq.s32.totalorder %s85, 7
      %p565 = scmp.ne.s32.totalorder %s560, %s562
      %p566 = scmp.eq.s32.totalorder %s85, 0
      %p567 = por %p565, %p566
      %p568 = scmp.ne.s32.totalorder %s560, %s562
      %p569 = scmp.eq.s32.totalorder %s90, 7
      %p570 = por %p568, %p569
      %p571 = scmp.ne.s32.totalorder %s562, %s563
      %p572 = scmp.eq.s32.totalorder %s90, 0
      %p573 = por %p571, %p572
      %p574 = scmp.ne.s32.totalorder %s562, %s563
      %p575 = scmp.eq.s32.totalorder %s91, 7
      %p576 = por %p574, %p575
      %p578 = scmp.ne.s32.totalorder %s563, %s577
      %p579 = scmp.eq.s32.totalorder %s91, 0
      %p580 = por %p578, %p579
      %s582 = sadd.s32 %s581, 1
      %p585 = scmp.eq.s32.totalorder %s85, 7
      %p586 = scmp.ne.s32.totalorder %s581, %s583
      %p587 = scmp.eq.s32.totalorder %s85, 0
      %p588 = por %p586, %p587
      %p589 = scmp.ne.s32.totalorder %s581, %s583
      %p590 = scmp.eq.s32.totalorder %s90, 7
      %p591 = por %p589, %p590
      %p592 = scmp.ne.s32.totalorder %s583, %s584
      %p593 = scmp.eq.s32.totalorder %s90, 0
      %p594 = por %p592, %p593
      %p595 = scmp.ne.s32.totalorder %s583, %s584
      %p596 = scmp.eq.s32.totalorder %s91, 7
      %p597 = por %p595, %p596
      %p599 = scmp.ne.s32.totalorder %s584, %s598
      %p600 = scmp.eq.s32.totalorder %s91, 0
      %p601 = por %p599, %p600
      %s603 = sadd.s32 %s602, 1
      %p606 = scmp.eq.s32.totalorder %s85, 7
      %p607 = scmp.ne.s32.totalorder %s602, %s604
      %p608 = scmp.eq.s32.totalorder %s85, 0
      %p609 = por %p607, %p608
      %p610 = scmp.ne.s32.totalorder %s602, %s604
      %p611 = scmp.eq.s32.totalorder %s90, 7
      %p612 = por %p610, %p611
      %p613 = scmp.ne.s32.totalorder %s604, %s605
      %p614 = scmp.eq.s32.totalorder %s90, 0
      %p615 = por %p613, %p614
      %p616 = scmp.ne.s32.totalorder %s604, %s605
      %p617 = scmp.eq.s32.totalorder %s91, 7
      %p618 = por %p616, %p617
      %p620 = scmp.ne.s32.totalorder %s605, %s619
      %p621 = scmp.eq.s32.totalorder %s91, 0
      %p622 = por %p620, %p621
      %s624 = sadd.s32 %s623, 1
      %p627 = scmp.eq.s32.totalorder %s85, 7
      %p628 = scmp.ne.s32.totalorder %s623, %s625
      %p629 = scmp.eq.s32.totalorder %s85, 0
      %p630 = por %p628, %p629
      %p631 = scmp.ne.s32.totalorder %s623, %s625
      %p632 = scmp.eq.s32.totalorder %s90, 7
      %p633 = por %p631, %p632
      %p634 = scmp.ne.s32.totalorder %s625, %s626
      %p635 = scmp.eq.s32.totalorder %s90, 0
      %p636 = por %p634, %p635
      %p637 = scmp.ne.s32.totalorder %s625, %s626
      %p638 = scmp.eq.s32.totalorder %s91, 7
      %p639 = por %p637, %p638
      %p641 = scmp.ne.s32.totalorder %s626, %s640
      %p642 = scmp.eq.s32.totalorder %s91, 0
      %p643 = por %p641, %p642
      %s645 = sadd.s32 %s644, 1
      %p648 = scmp.eq.s32.totalorder %s85, 7
      %p649 = scmp.ne.s32.totalorder %s644, %s646
      %p650 = scmp.eq.s32.totalorder %s85, 0
      %p651 = por %p649, %p650
      %p652 = scmp.ne.s32.totalorder %s644, %s646
      %p653 = scmp.eq.s32.totalorder %s90, 7
      %p654 = por %p652, %p653
      %p655 = scmp.ne.s32.totalorder %s646, %s647
      %p656 = scmp.eq.s32.totalorder %s90, 0
      %p657 = por %p655, %p656
      %p658 = scmp.ne.s32.totalorder %s646, %s647
      %p659 = scmp.eq.s32.totalorder %s91, 7
      %p660 = por %p658, %p659
      %p662 = scmp.ne.s32.totalorder %s647, %s661
      %p663 = scmp.eq.s32.totalorder %s91, 0
      %p664 = por %p662, %p663
      %s666 = sadd.s32 %s665, 1
      %p669 = scmp.eq.s32.totalorder %s85, 7
      %p670 = scmp.ne.s32.totalorder %s665, %s667
      %p671 = scmp.eq.s32.totalorder %s85, 0
      %p672 = por %p670, %p671
      %p673 = scmp.ne.s32.totalorder %s665, %s667
      %p674 = scmp.eq.s32.totalorder %s90, 7
      %p675 = por %p673, %p674
      %p676 = scmp.ne.s32.totalorder %s667, %s668
      %p677 = scmp.eq.s32.totalorder %s90, 0
      %p678 = por %p676, %p677
      %p679 = scmp.ne.s32.totalorder %s667, %s668
      %p680 = scmp.eq.s32.totalorder %s91, 7
      %p681 = por %p679, %p680
      %p683 = scmp.ne.s32.totalorder %s668, %s682
      %p684 = scmp.eq.s32.totalorder %s91, 0
      %p685 = por %p683, %p684
      %s687 = sadd.s32 %s686, 1
      %p690 = scmp.eq.s32.totalorder %s85, 7
      %p691 = scmp.ne.s32.totalorder %s686, %s688
      %p692 = scmp.eq.s32.totalorder %s85, 0
      %p693 = por %p691, %p692
      %p694 = scmp.ne.s32.totalorder %s686, %s688
      %p695 = scmp.eq.s32.totalorder %s90, 7
      %p696 = por %p694, %p695
      %p697 = scmp.ne.s32.totalorder %s688, %s689
      %p698 = scmp.eq.s32.totalorder %s90, 0
      %p699 = por %p697, %p698
      %p700 = scmp.ne.s32.totalorder %s688, %s689
      %p701 = scmp.eq.s32.totalorder %s91, 7
      %p702 = por %p700, %p701
      %p704 = scmp.ne.s32.totalorder %s689, %s703
      %p705 = scmp.eq.s32.totalorder %s91, 0
      %p706 = por %p704, %p705
      %s708 = sadd.s32 %s707, 1
      %p711 = scmp.eq.s32.totalorder %s85, 7
      %p712 = scmp.ne.s32.totalorder %s707, %s709
      %p713 = scmp.eq.s32.totalorder %s85, 0
      %p714 = por %p712, %p713
      %p715 = scmp.ne.s32.totalorder %s707, %s709
      %p716 = scmp.eq.s32.totalorder %s90, 7
      %p717 = por %p715, %p716
      %p718 = scmp.ne.s32.totalorder %s709, %s710
      %p719 = scmp.eq.s32.totalorder %s90, 0
      %p720 = por %p718, %p719
      %p721 = scmp.ne.s32.totalorder %s709, %s710
      %p722 = scmp.eq.s32.totalorder %s91, 7
      %p723 = por %p721, %p722
      %p725 = scmp.ne.s32.totalorder %s710, %s724
      %p726 = scmp.eq.s32.totalorder %s91, 0
      %p727 = por %p725, %p726
      %s729 = sadd.s32 %s728, 1
      %p732 = scmp.eq.s32.totalorder %s85, 7
      %p733 = scmp.ne.s32.totalorder %s728, %s730
      %p734 = scmp.eq.s32.totalorder %s85, 0
      %p735 = por %p733, %p734
      %p736 = scmp.ne.s32.totalorder %s728, %s730
      %p737 = scmp.eq.s32.totalorder %s90, 7
      %p738 = por %p736, %p737
      %p739 = scmp.ne.s32.totalorder %s730, %s731
      %p740 = scmp.eq.s32.totalorder %s90, 0
      %p741 = por %p739, %p740
      %p742 = scmp.ne.s32.totalorder %s730, %s731
      %p743 = scmp.eq.s32.totalorder %s91, 7
      %p744 = por %p742, %p743
      %p746 = scmp.ne.s32.totalorder %s731, %s745
      %p747 = scmp.eq.s32.totalorder %s91, 0
      %p748 = por %p746, %p747
      %s750 = sadd.s32 %s749, 1
      %p753 = scmp.eq.s32.totalorder %s85, 7
      %p754 = scmp.ne.s32.totalorder %s749, %s751
      %p755 = scmp.eq.s32.totalorder %s85, 0
      %p756 = por %p754, %p755
      %p757 = scmp.ne.s32.totalorder %s749, %s751
      %p758 = scmp.eq.s32.totalorder %s90, 7
      %p759 = por %p757, %p758
      %p760 = scmp.ne.s32.totalorder %s751, %s752
      %p761 = scmp.eq.s32.totalorder %s90, 0
      %p762 = por %p760, %p761
      %p763 = scmp.ne.s32.totalorder %s751, %s752
      %p764 = scmp.eq.s32.totalorder %s91, 7
      %p765 = por %p763, %p764
      %p767 = scmp.ne.s32.totalorder %s752, %s766
      %p768 = scmp.eq.s32.totalorder %s91, 0
      %p769 = por %p767, %p768
      %s770 = ssub.s32 %s85, %s92
      %p771 = scmp.eq.s32.totalorder %s770, 0
      %s773 = sadd.s32 %s772, 1
      %s774 = scalar_select %p771, %s772, %s773
      %p777 = pneg %p771
      %p778 = scmp.eq.s32.totalorder %s85, 7
      %p779 = por %p777, %p778
      %p780 = scmp.ne.s32.totalorder %s772, %s775
      %p781 = scmp.eq.s32.totalorder %s85, 0
      %p782 = por %p780, %p781
      %p783 = scmp.ne.s32.totalorder %s772, %s775
      %p784 = scmp.eq.s32.totalorder %s90, 7
      %p785 = por %p783, %p784
      %p786 = scmp.ne.s32.totalorder %s775, %s776
      %p787 = scmp.eq.s32.totalorder %s90, 0
      %p788 = por %p786, %p787
      %p789 = scmp.ne.s32.totalorder %s775, %s776
      %p790 = scmp.eq.s32.totalorder %s91, 7
      %p791 = por %p789, %p790
      %p793 = scmp.ne.s32.totalorder %s776, %s792
      %p794 = scmp.eq.s32.totalorder %s91, 0
      %p795 = por %p793, %p794
      %s796 = ssub.s32 %s85, %s92
      %p797 = scmp.eq.s32.totalorder %s796, 0
      %s799 = sadd.s32 %s798, 1
      %s800 = scalar_select %p797, %s798, %s799
      %p803 = pneg %p797
      %p804 = scmp.eq.s32.totalorder %s85, 7
      %p805 = por %p803, %p804
      %p806 = scmp.ne.s32.totalorder %s798, %s801
      %p807 = scmp.eq.s32.totalorder %s85, 0
      %p808 = por %p806, %p807
      %p809 = scmp.ne.s32.totalorder %s798, %s801
      %p810 = scmp.eq.s32.totalorder %s90, 7
      %p811 = por %p809, %p810
      %p812 = scmp.ne.s32.totalorder %s801, %s802
      %p813 = scmp.eq.s32.totalorder %s90, 0
      %p814 = por %p812, %p813
      %p815 = scmp.ne.s32.totalorder %s801, %s802
      %p816 = scmp.eq.s32.totalorder %s91, 7
      %p817 = por %p815, %p816
      %p819 = scmp.ne.s32.totalorder %s802, %s818
      %p820 = scmp.eq.s32.totalorder %s91, 0
      %p821 = por %p819, %p820
      %p822 = scmp.le.s32.totalorder 1, %s85
      %p823 = scmp.lt.s32.totalorder %s85, 9
      %p824 = pnand %p822, %p823
      %p825 = pneg %p824
      // Predicated region
      $region9: #{tpu_custom_call.1} parent=5 // pred_check
        _
      $region10: #{tpu_custom_call.1} parent=5 // pred_check_branch
        %827 = sbr.rel (%p824) target = $region12
      $region11: #{tpu_custom_call.1} parent=5 // pred_region
        %s828 = ssub.s32 %s85, 1
        // Predicated region
        $region13: #{tpu_custom_call.1} parent=11 // pred_check
          %p829 = pneg %p132
        $region14: #{tpu_custom_call.1} parent=11 // pred_check_branch
          %831 = sbr.rel (%p829) target = $region16
        $region15: #{tpu_custom_call.1} parent=11 // pred_region
          _
        $region16: #{tpu_custom_call.1} parent=11 // pred_fallthru
          _
        // Predicated region
        $region17: #{tpu_custom_call.1} parent=11 // pred_check
          %p832 = pneg %p153
        $region18: #{tpu_custom_call.1} parent=11 // pred_check_branch
          %834 = sbr.rel (%p832) target = $region20
        $region19: #{tpu_custom_call.1} parent=11 // pred_region
          _
        $region20: #{tpu_custom_call.1} parent=11 // pred_fallthru
          _
        // Predicated region
        $region21: #{tpu_custom_call.1} parent=11 // pred_check
          %p835 = pneg %p174
        $region22: #{tpu_custom_call.1} parent=11 // pred_check_branch
          %837 = sbr.rel (%p835) target = $region24
        $region23: #{tpu_custom_call.1} parent=11 // pred_region
          _
        $region24: #{tpu_custom_call.1} parent=11 // pred_fallthru
          _
        // Predicated region
        $region25: #{tpu_custom_call.1} parent=11 // pred_check
          %p838 = pneg %p195
        $region26: #{tpu_custom_call.1} parent=11 // pred_check_branch
          %840 = sbr.rel (%p838) target = $region28
        $region27: #{tpu_custom_call.1} parent=11 // pred_region
          _
        $region28: #{tpu_custom_call.1} parent=11 // pred_fallthru
          _
        // Predicated region
        $region29: #{tpu_custom_call.1} parent=11 // pred_check
          %p841 = pneg %p216
        $region30: #{tpu_custom_call.1} parent=11 // pred_check_branch
          %843 = sbr.rel (%p841) target = $region32
        $region31: #{tpu_custom_call.1} parent=11 // pred_region
          _
        $region32: #{tpu_custom_call.1} parent=11 // pred_fallthru
          _
        // Predicated region
        $region33: #{tpu_custom_call.1} parent=11 // pred_check
          %p844 = pneg %p237
        $region34: #{tpu_custom_call.1} parent=11 // pred_check_branch
          %846 = sbr.rel (%p844) target = $region36
        $region35: #{tpu_custom_call.1} parent=11 // pred_region
          _
        $region36: #{tpu_custom_call.1} parent=11 // pred_fallthru
          _
        // Predicated region
        $region37: #{tpu_custom_call.1} parent=11 // pred_check
          %p847 = pneg %p258
        $region38: #{tpu_custom_call.1} parent=11 // pred_check_branch
          %849 = sbr.rel (%p847) target = $region40
        $region39: #{tpu_custom_call.1} parent=11 // pred_region
          _
        $region40: #{tpu_custom_call.1} parent=11 // pred_fallthru
          _
        // Predicated region
        $region41: #{tpu_custom_call.1} parent=11 // pred_check
          %p850 = pneg %p279
        $region42: #{tpu_custom_call.1} parent=11 // pred_check_branch
          %852 = sbr.rel (%p850) target = $region44
        $region43: #{tpu_custom_call.1} parent=11 // pred_region
          _
        $region44: #{tpu_custom_call.1} parent=11 // pred_fallthru
          _
        // Predicated region
        $region45: #{tpu_custom_call.1} parent=11 // pred_check
          %p853 = pneg %p300
        $region46: #{tpu_custom_call.1} parent=11 // pred_check_branch
          %855 = sbr.rel (%p853) target = $region48
        $region47: #{tpu_custom_call.1} parent=11 // pred_region
          _
        $region48: #{tpu_custom_call.1} parent=11 // pred_fallthru
          _
        // Predicated region
        $region49: #{tpu_custom_call.1} parent=11 // pred_check
          %p856 = pneg %p321
        $region50: #{tpu_custom_call.1} parent=11 // pred_check_branch
          %858 = sbr.rel (%p856) target = $region52
        $region51: #{tpu_custom_call.1} parent=11 // pred_region
          _
        $region52: #{tpu_custom_call.1} parent=11 // pred_fallthru
          _
        // Predicated region
        $region53: #{tpu_custom_call.1} parent=11 // pred_check
          %p859 = pneg %p342
        $region54: #{tpu_custom_call.1} parent=11 // pred_check_branch
          %861 = sbr.rel (%p859) target = $region56
        $region55: #{tpu_custom_call.1} parent=11 // pred_region
          _
        $region56: #{tpu_custom_call.1} parent=11 // pred_fallthru
          _
        // Predicated region
        $region57: #{tpu_custom_call.1} parent=11 // pred_check
          %p862 = pneg %p363
        $region58: #{tpu_custom_call.1} parent=11 // pred_check_branch
          %864 = sbr.rel (%p862) target = $region60
        $region59: #{tpu_custom_call.1} parent=11 // pred_region
          _
        $region60: #{tpu_custom_call.1} parent=11 // pred_fallthru
          _
        // Predicated region
        $region61: #{tpu_custom_call.1} parent=11 // pred_check
          %p865 = pneg %p384
        $region62: #{tpu_custom_call.1} parent=11 // pred_check_branch
          %867 = sbr.rel (%p865) target = $region64
        $region63: #{tpu_custom_call.1} parent=11 // pred_region
          _
        $region64: #{tpu_custom_call.1} parent=11 // pred_fallthru
          _
        // Predicated region
        $region65: #{tpu_custom_call.1} parent=11 // pred_check
          %p868 = pneg %p405
        $region66: #{tpu_custom_call.1} parent=11 // pred_check_branch
          %870 = sbr.rel (%p868) target = $region68
        $region67: #{tpu_custom_call.1} parent=11 // pred_region
          _
        $region68: #{tpu_custom_call.1} parent=11 // pred_fallthru
          _
        // Predicated region
        $region69: #{tpu_custom_call.1} parent=11 // pred_check
          %p871 = pneg %p426
        $region70: #{tpu_custom_call.1} parent=11 // pred_check_branch
          %873 = sbr.rel (%p871) target = $region72
        $region71: #{tpu_custom_call.1} parent=11 // pred_region
          _
        $region72: #{tpu_custom_call.1} parent=11 // pred_fallthru
          _
        // Predicated region
        $region73: #{tpu_custom_call.1} parent=11 // pred_check
          %p874 = pneg %p447
        $region74: #{tpu_custom_call.1} parent=11 // pred_check_branch
          %876 = sbr.rel (%p874) target = $region76
        $region75: #{tpu_custom_call.1} parent=11 // pred_region
          _
        $region76: #{tpu_custom_call.1} parent=11 // pred_fallthru
          _
        // Predicated region
        $region77: #{tpu_custom_call.1} parent=11 // pred_check
          %p877 = pneg %p468
        $region78: #{tpu_custom_call.1} parent=11 // pred_check_branch
          %879 = sbr.rel (%p877) target = $region80
        $region79: #{tpu_custom_call.1} parent=11 // pred_region
          _
        $region80: #{tpu_custom_call.1} parent=11 // pred_fallthru
          _
        // Predicated region
        $region81: #{tpu_custom_call.1} parent=11 // pred_check
          %p880 = pneg %p489
        $region82: #{tpu_custom_call.1} parent=11 // pred_check_branch
          %882 = sbr.rel (%p880) target = $region84
        $region83: #{tpu_custom_call.1} parent=11 // pred_region
          _
        $region84: #{tpu_custom_call.1} parent=11 // pred_fallthru
          _
        // Predicated region
        $region85: #{tpu_custom_call.1} parent=11 // pred_check
          %p883 = pneg %p510
        $region86: #{tpu_custom_call.1} parent=11 // pred_check_branch
          %885 = sbr.rel (%p883) target = $region88
        $region87: #{tpu_custom_call.1} parent=11 // pred_region
          _
        $region88: #{tpu_custom_call.1} parent=11 // pred_fallthru
          _
        // Predicated region
        $region89: #{tpu_custom_call.1} parent=11 // pred_check
          %p886 = pneg %p531
        $region90: #{tpu_custom_call.1} parent=11 // pred_check_branch
          %888 = sbr.rel (%p886) target = $region92
        $region91: #{tpu_custom_call.1} parent=11 // pred_region
          _
        $region92: #{tpu_custom_call.1} parent=11 // pred_fallthru
          _
        // Predicated region
        $region93: #{tpu_custom_call.1} parent=11 // pred_check
          %p889 = pneg %p552
        $region94: #{tpu_custom_call.1} parent=11 // pred_check_branch
          %891 = sbr.rel (%p889) target = $region96
        $region95: #{tpu_custom_call.1} parent=11 // pred_region
          _
        $region96: #{tpu_custom_call.1} parent=11 // pred_fallthru
          _
        // Predicated region
        $region97: #{tpu_custom_call.1} parent=11 // pred_check
          %p892 = pneg %p573
        $region98: #{tpu_custom_call.1} parent=11 // pred_check_branch
          %894 = sbr.rel (%p892) target = $region100
        $region99: #{tpu_custom_call.1} parent=11 // pred_region
          _
        $region100: #{tpu_custom_call.1} parent=11 // pred_fallthru
          _
        // Predicated region
        $region101: #{tpu_custom_call.1} parent=11 // pred_check
          %p895 = pneg %p594
        $region102: #{tpu_custom_call.1} parent=11 // pred_check_branch
          %897 = sbr.rel (%p895) target = $region104
        $region103: #{tpu_custom_call.1} parent=11 // pred_region
          _
        $region104: #{tpu_custom_call.1} parent=11 // pred_fallthru
          _
        // Predicated region
        $region105: #{tpu_custom_call.1} parent=11 // pred_check
          %p898 = pneg %p615
        $region106: #{tpu_custom_call.1} parent=11 // pred_check_branch
          %900 = sbr.rel (%p898) target = $region108
        $region107: #{tpu_custom_call.1} parent=11 // pred_region
          _
        $region108: #{tpu_custom_call.1} parent=11 // pred_fallthru
          _
        // Predicated region
        $region109: #{tpu_custom_call.1} parent=11 // pred_check
          %p901 = pneg %p636
        $region110: #{tpu_custom_call.1} parent=11 // pred_check_branch
          %903 = sbr.rel (%p901) target = $region112
        $region111: #{tpu_custom_call.1} parent=11 // pred_region
          _
        $region112: #{tpu_custom_call.1} parent=11 // pred_fallthru
          _
        // Predicated region
        $region113: #{tpu_custom_call.1} parent=11 // pred_check
          %p904 = pneg %p657
        $region114: #{tpu_custom_call.1} parent=11 // pred_check_branch
          %906 = sbr.rel (%p904) target = $region116
        $region115: #{tpu_custom_call.1} parent=11 // pred_region
          _
        $region116: #{tpu_custom_call.1} parent=11 // pred_fallthru
          _
        // Predicated region
        $region117: #{tpu_custom_call.1} parent=11 // pred_check
          %p907 = pneg %p678
        $region118: #{tpu_custom_call.1} parent=11 // pred_check_branch
          %909 = sbr.rel (%p907) target = $region120
        $region119: #{tpu_custom_call.1} parent=11 // pred_region
          _
        $region120: #{tpu_custom_call.1} parent=11 // pred_fallthru
          _
        // Predicated region
        $region121: #{tpu_custom_call.1} parent=11 // pred_check
          %p910 = pneg %p699
        $region122: #{tpu_custom_call.1} parent=11 // pred_check_branch
          %912 = sbr.rel (%p910) target = $region124
        $region123: #{tpu_custom_call.1} parent=11 // pred_region
          _
        $region124: #{tpu_custom_call.1} parent=11 // pred_fallthru
          _
        // Predicated region
        $region125: #{tpu_custom_call.1} parent=11 // pred_check
          %p913 = pneg %p720
        $region126: #{tpu_custom_call.1} parent=11 // pred_check_branch
          %915 = sbr.rel (%p913) target = $region128
        $region127: #{tpu_custom_call.1} parent=11 // pred_region
          _
        $region128: #{tpu_custom_call.1} parent=11 // pred_fallthru
          _
        // Predicated region
        $region129: #{tpu_custom_call.1} parent=11 // pred_check
          %p916 = pneg %p741
        $region130: #{tpu_custom_call.1} parent=11 // pred_check_branch
          %918 = sbr.rel (%p916) target = $region132
        $region131: #{tpu_custom_call.1} parent=11 // pred_region
          _
        $region132: #{tpu_custom_call.1} parent=11 // pred_fallthru
          _
        // Predicated region
        $region133: #{tpu_custom_call.1} parent=11 // pred_check
          %p919 = pneg %p762
        $region134: #{tpu_custom_call.1} parent=11 // pred_check_branch
          %921 = sbr.rel (%p919) target = $region136
        $region135: #{tpu_custom_call.1} parent=11 // pred_region
          _
        $region136: #{tpu_custom_call.1} parent=11 // pred_fallthru
          _
      $region12: #{tpu_custom_call.1} parent=5 // pred_fallthru
        _
      %p922 = scmp.lt.s32.totalorder %s85, 8
      // Predicated region
      $region137: #{tpu_custom_call.1} parent=5 // pred_check
        %p923 = pneg %p922
      $region138: #{tpu_custom_call.1} parent=5 // pred_check_branch
        %925 = sbr.rel (%p923) target = $region140
      $region139: #{tpu_custom_call.1} parent=5 // pred_region
        // Predicated region
        $region141: #{tpu_custom_call.1} parent=139 // pred_check
          %p926 = pneg %p105
        $region142: #{tpu_custom_call.1} parent=139 // pred_check_branch
          %928 = sbr.rel (%p926) target = $region144
        $region143: #{tpu_custom_call.1} parent=139 // pred_region
          %s929 = sand.u32 %s95, 1
          %s930 = scalar_lea.sflag [#allocation4], %s929
          %s931 = sand.u32 %s95, 1
          %s932 = smul.addr %s931, 64
          %s933 = scalar_lea.vmem [#allocation3], %s932
          %s934 = smul.u32 8, %s85
          %s935 = ssub.s32 63, %s934
          %p936 = scmp.lt.s32.totalorder %s935, 8
          %s937 = scalar_select %p936, %s935, 8
          %s938 = smul.u32 128, %s937
          %s940 = ssub.s32 1024, %s938
          %941 = vsyncadd %s930, %s940
          %p942 = scmp.ne.s32.totalorder 0, %s938
          %s943 = smul.addr %s934, 128
          %s944 = scalar_lea.hbm %s1, %s943
          %s945 = smul.u32 8, %s937
          %s946 = sshll.u32 %s933, 4
          %s947 = int_to_ptr.vmem [resolvable:$true] %s946
          %s948 = sshll.u32 %s945, 4
          %952 = dma.hbm_to_vmem [thread:$0]  (%p942), %s944, %s948, %s947, %s930, 128, 128, 8
        $region144: #{tpu_custom_call.1} parent=139 // pred_fallthru
          _
      $region140: #{tpu_custom_call.1} parent=5 // pred_fallthru
        _
      %p953 = scmp.le.s32.totalorder 1, %s85
      %p954 = scmp.lt.s32.totalorder %s85, 9
      %p955 = pnand %p953, %p954
      %p956 = pneg %p955
      // Predicated region
      $region145: #{tpu_custom_call.1} parent=5 // pred_check
        _
      $region146: #{tpu_custom_call.1} parent=5 // pred_check_branch
        %958 = sbr.rel (%p955) target = $region148
      $region147: #{tpu_custom_call.1} parent=5 // pred_region
        %s959 = ssub.s32 %s85, 1
        %s960 = sand.u32 %s98, 1
        %s961 = scalar_lea.sflag [#allocation4], %s960
        %s962 = sand.u32 %s98, 1
        %s963 = smul.addr %s962, 64
        %s964 = scalar_lea.vmem [#allocation3], %s963
        // Predicated region
        $region149: #{tpu_custom_call.1} parent=147 // pred_check
          %p965 = pneg %p111
        $region150: #{tpu_custom_call.1} parent=147 // pred_check_branch
          %967 = sbr.rel (%p965) target = $region152
        $region151: #{tpu_custom_call.1} parent=147 // pred_region
          %968 = dma.done %s961, 1024
        $region152: #{tpu_custom_call.1} parent=147 // pred_fallthru
          _
        %s969 = sand.u32 %s98, 1
        %s970 = scalar_lea.sflag [#allocation4], %s969
        %s971 = sand.u32 %s98, 1
        %s972 = smul.addr %s971, 64
        %s973 = scalar_lea.vmem [#allocation3], %s972
        %p974 = pneg %p111
        %p975 = pneg %p108
        %p976 = pneg %p132
        %p977 = pneg %p129
        %p978 = pneg %p153
        %p979 = pneg %p150
        %p980 = pneg %p174
        %p981 = pneg %p171
        %p982 = pneg %p195
        %p983 = pneg %p192
        %p984 = pneg %p216
        %p985 = pneg %p213
        %p986 = pneg %p237
        %p987 = pneg %p234
        %p988 = pneg %p258
        %p989 = pneg %p255
        %p990 = pneg %p279
        %p991 = pneg %p276
        %p992 = pneg %p300
        %p993 = pneg %p297
        %p994 = pneg %p321
        %p995 = pneg %p318
        %p996 = pneg %p342
        %p997 = pneg %p339
        %p998 = pneg %p363
        %p999 = pneg %p360
        %p1000 = pneg %p384
        %p1001 = pneg %p381
        %p1002 = pneg %p405
        %p1003 = pneg %p402
        %p1004 = pneg %p426
        %p1005 = pneg %p423
        %p1006 = pneg %p447
        %p1007 = pneg %p444
        %p1008 = pneg %p468
        %p1009 = pneg %p465
        %p1010 = pneg %p489
        %p1011 = pneg %p486
        %p1012 = pneg %p510
        %p1013 = pneg %p507
        %p1014 = pneg %p531
        %p1015 = pneg %p528
        %p1016 = pneg %p552
        %p1017 = pneg %p549
        %p1018 = pneg %p573
        %p1019 = pneg %p570
        %p1020 = pneg %p594
        %p1021 = pneg %p591
        %p1022 = pneg %p615
        %p1023 = pneg %p612
        %p1024 = pneg %p636
        %p1025 = pneg %p633
        %p1026 = pneg %p657
        %p1027 = pneg %p654
        %p1028 = pneg %p678
        %p1029 = pneg %p675
        %p1030 = pneg %p699
        %p1031 = pneg %p696
        %p1032 = pneg %p720
        %p1033 = pneg %p717
        %p1034 = pneg %p741
        %p1035 = pneg %p738
        %p1036 = pneg %p762
        %p1037 = pneg %p759
        %p1038 = pneg %p788
        %p1039 = pneg %p785
        %s1040 = sand.u32 %s775, 1
        %s1041 = scalar_lea.sflag [#allocation5], %s1040
        %s1042 = sand.u32 %s775, 1
        %s1043 = smul.addr %s1042, 64
        %s1044 = scalar_lea.vmem [#allocation6], %s1043
        %p1045 = pneg %p814
        %p1046 = pneg %p811
        %s1047 = sand.u32 %s801, 1
        %s1048 = scalar_lea.sflag [#allocation8], %s1047
        %s1049 = sand.u32 %s801, 1
        %s1050 = smul.addr %s1049, 32
        %s1051 = scalar_lea.vmem [#allocation7], %s1050
        %s1052 = smul.u32 8, %s90
        %s1053 = ssub.s32 63, %s1052
        %p1054 = scmp.lt.s32.totalorder %s1053, 8
        %s1055 = scalar_select %p1054, %s1053, 8
        %s1056 = smul.u32 128, %s1055
        %s1057 = smul.u32 8, %s90
        %s1058 = ssub.s32 63, %s1057
        %p1059 = scmp.lt.s32.totalorder %s1058, 8
        %s1060 = scalar_select %p1059, %s1058, 8
        %s1061 = smul.u32 128, %s1060
        %s1062 = smul.u32 8, %s90
        %s1063 = ssub.s32 63, %s1062
        %p1064 = scmp.lt.s32.totalorder %s1063, 8
        %s1065 = scalar_select %p1064, %s1063, 8
        %s1066 = smul.u32 64, %s1065
        %v1068 = vld [vmem:[%s964] sm:$0xff]
        %v1069 = vld [vmem:[%s964 + $0x8] sm:$0xff]
        %v1070 = vld [vmem:[%s964 + $0x10] sm:$0xff]
        %v1071 = vld [vmem:[%s964 + $0x18] sm:$0xff]
        %v1072 = vld [vmem:[%s964 + $0x20] sm:$0xff]
        %v1073 = vld [vmem:[%s964 + $0x28] sm:$0xff]
        %v1074 = vld [vmem:[%s964 + $0x30] sm:$0xff]
        %v1075 = vld [vmem:[%s964 + $0x38] sm:$0xff]
        %v1076 = vpack.c.bf16 %v1069, %v1068
        %v1077 = vpack.c.bf16 %v1071, %v1070
        %v1078 = vpack.c.bf16 %v1073, %v1072
        %v1079 = vpack.c.bf16 %v1075, %v1074
        %v1080 = vld [vmem:[%s3] sm:$0xf]
        %v1081 = vld [vmem:[%s3 + $0x4] sm:$0xf]
        %v1082 = vld [vmem:[%s3 + $0x8] sm:$0xf]
        %v1083 = vld [vmem:[%s3 + $0xc] sm:$0xf]
        %v1084 = vld [vmem:[%s3 + $0x10] sm:$0xf]
        %v1085 = vld [vmem:[%s5] sm:$0x1]
        %v1087 = vlaneseq
        %v1088 = vshrl.u32 %v1087, 7
        %v1089 = vsub.s32 0, %v1088
        %v1090 = vrot.slane %v1085, %v1089
        %v1097 = vunpack.c.l.b16 %v1080
        %v1098 = vunpack.c.l.b16 %v1081
        %v1099 = vunpack.c.l.b16 %v1082
        %v1100 = vunpack.c.l.b16 %v1083
        %v1101 = vunpack.c.l.b16 %v1084
        %v1102 = vpack.c.b16 %v1098, %v1097
        %v1103 = vpack.c.b16 %v1100, %v1099
        %v1104 = vpack.c.b16 %v1101, %v1101
        %vm1107 = vcmask 326656
        %v1109 = vsel %vm1107, %v1076, 0
        %v1112 = vsel %vm1107, %v1077, 0
        %v1115 = vsel %vm1107, %v1078, 0
        %v1118 = vsel %vm1107, %v1079, 0
        %vm1120 = vcmask 1043456
        %v1122 = vsel %vm1120, %v1104, 0
        %1124 = vmatprep.subr.bf16.mxu0 0
        %1125 = vmatpush1.bf16.msra.mxu0 %v1102
        %1126 = vmatprep.subr.bf16.mxu0 0
        %1127 = vmatpush1.bf16.msra.mxu0 %v1103
        %1128 = vmatprep.subr.bf16.mxu0 0
        %1129 = vmatpush1.bf16.msra.mxu0 %v1122
        %1130 = vmatprep.subr.bf16.mxu0 0
        %1131 = vmatpush1.bf16.msra.mxu0 0
        %1132 = vmatprep.subr.bf16.mxu0 0
        %1133 = vmatpush1.bf16.msra.mxu0 0
        %1134 = vmatprep.subr.bf16.mxu0 0
        %1135 = vmatpush1.bf16.msra.mxu0 0
        %1136 = vmatprep.subr.bf16.mxu0 0
        %1137 = vmatpush1.bf16.msra.mxu0 0
        %1138 = vmatprep.subr.bf16.mxu0 0
        %1139 = vmatpush1.bf16.msra.mxu0 0
        %1140 = vmatprep.subr.bf16.mxu0 0
        %1141 = vmatpush1.bf16.msra.mxu0 0
        %1142 = vmatprep.subr.bf16.mxu0 0
        %1143 = vmatpush1.bf16.msra.mxu0 0
        %1144 = vmatprep.subr.bf16.mxu0 0
        %1145 = vmatpush1.bf16.msra.mxu0 0
        %1146 = vmatprep.subr.bf16.mxu0 0
        %1147 = vmatpush1.bf16.msra.mxu0 0
        %1148 = vmatprep.subr.bf16.mxu0 0
        %1149 = vmatpush1.bf16.msra.mxu0 0
        %1150 = vmatprep.subr.bf16.mxu0 0
        %1151 = vmatpush1.bf16.msra.mxu0 0
        %1152 = vmatprep.subr.bf16.mxu0 0
        %1153 = vmatpush1.bf16.msra.mxu0 0
        %1154 = vmatprep.subr.bf16.mxu0 0
        %1155 = vmatpush1.bf16.msra.mxu0 0
        %1156 = vmatprep.mubr.bf16.mxu0 0
        %1157 = vmatmul.mubr.bf16.gmra.mrb[0].mxu0 %v1109
        %v1158 = vpop.f32.mrb[0].mxu0
        %v1159 = vadd.f32 %v1090, %v1158
        %v1160 = vpop.f32.mrb[0].mxu0
        %v1161 = vpop.f32.mrb[0].mxu0
        %v1162 = vadd.f32 %v1090, %v1161
        %v1163 = vpop.f32.mrb[0].mxu0
        %1164 = vmatprep.mubr.bf16.mxu0 0
        %1165 = vmatmul.mubr.bf16.gmra.mrb[0].mxu0 %v1112
        %v1166 = vpop.f32.mrb[0].mxu0
        %v1167 = vadd.f32 %v1090, %v1166
        %v1168 = vpop.f32.mrb[0].mxu0
        %v1169 = vpop.f32.mrb[0].mxu0
        %v1170 = vadd.f32 %v1090, %v1169
        %v1171 = vpop.f32.mrb[0].mxu0
        %1172 = vmatprep.mubr.bf16.mxu0 0
        %1173 = vmatmul.mubr.bf16.gmra.mrb[0].mxu0 %v1115
        %v1174 = vpop.f32.mrb[0].mxu0
        %v1175 = vadd.f32 %v1090, %v1174
        %v1176 = vpop.f32.mrb[0].mxu0
        %v1177 = vpop.f32.mrb[0].mxu0
        %v1178 = vadd.f32 %v1090, %v1177
        %v1179 = vpop.f32.mrb[0].mxu0
        %1180 = vmatprep.mubr.bf16.mxu0 0
        %1181 = vmatmul.mubr.bf16.gmra.mrb[0].mxu0 %v1118
        %v1182 = vpop.f32.mrb[0].mxu0
        %v1183 = vadd.f32 %v1090, %v1182
        %v1184 = vpop.f32.mrb[0].mxu0
        %v1185 = vpop.f32.mrb[0].mxu0
        %v1186 = vadd.f32 %v1090, %v1185
        %v1187 = vpop.f32.mrb[0].mxu0
        %1188 = vdwg.mxu0
        %v1189 = vmax.f32 %v1159, 0.0
        %v1190 = vmax.f32 %v1162, 0.0
        %v1191 = vmax.f32 %v1167, 0.0
        %v1192 = vmax.f32 %v1170, 0.0
        %v1193 = vmax.f32 %v1175, 0.0
        %v1194 = vmax.f32 %v1178, 0.0
        %v1195 = vmax.f32 %v1183, 0.0
        %v1196 = vmax.f32 %v1186, 0.0
        %v1197 = vpack.c.bf16 %v1190, %v1189
        %v1198 = vpack.c.bf16 %v1192, %v1191
        %v1199 = vpack.c.bf16 %v1194, %v1193
        %v1200 = vpack.c.bf16 %v1196, %v1195
        %v1201 = vld [vmem:[%s7] sm:$0xf]
        %v1202 = vld [vmem:[%s7 + $0x4] sm:$0xf]
        %v1203 = vld [vmem:[%s7 + $0x8] sm:$0xf]
        %v1204 = vld [vmem:[%s7 + $0xc] sm:$0xf]
        %v1205 = vld [vmem:[%s7 + $0x10] sm:$0xf]
        %v1206 = vld [vmem:[%s7 + $0x14] sm:$0xf]
        %v1207 = vld [vmem:[%s7 + $0x18] sm:$0xf]
        %v1208 = vld [vmem:[%s7 + $0x1c] sm:$0xf]
        %v1209 = vld [vmem:[%s9] sm:$0x1]
        %v1211 = vlaneseq
        %v1212 = vshrl.u32 %v1211, 7
        %v1213 = vsub.s32 0, %v1212
        %v1214 = vrot.slane %v1209, %v1213
        %v1224 = vunpack.c.l.b16 %v1201
        %v1225 = vunpack.c.l.b16 %v1202
        %v1226 = vunpack.c.l.b16 %v1203
        %v1227 = vunpack.c.l.b16 %v1204
        %v1228 = vunpack.c.l.b16 %v1205
        %v1229 = vunpack.c.l.b16 %v1206
        %v1230 = vunpack.c.l.b16 %v1207
        %v1231 = vunpack.c.l.b16 %v1208
        %v1232 = vpack.c.b16 %v1225, %v1224
        %v1233 = vpack.c.b16 %v1227, %v1226
        %v1234 = vpack.c.b16 %v1229, %v1228
        %v1235 = vpack.c.b16 %v1231, %v1230
        %vm1240 = vcmask 523264
        %v1242 = vsel %vm1240, %v1197, 0
        %v1245 = vsel %vm1240, %v1198, 0
        %v1248 = vsel %vm1240, %v1199, 0
        %v1251 = vsel %vm1240, %v1200, 0
        %1253 = vmatprep.subr.bf16.mxu0 0
        %1254 = vmatpush1.bf16.msra.mxu0 %v1232
        %1255 = vmatprep.subr.bf16.mxu0 0
        %1256 = vmatpush1.bf16.msra.mxu0 %v1233
        %1257 = vmatprep.subr.bf16.mxu0 0
        %1258 = vmatpush1.bf16.msra.mxu0 %v1234
        %1259 = vmatprep.subr.bf16.mxu0 0
        %1260 = vmatpush1.bf16.msra.mxu0 %v1235
        %1261 = vmatprep.subr.bf16.mxu0 0
        %1262 = vmatpush1.bf16.msra.mxu0 0
        %1263 = vmatprep.subr.bf16.mxu0 0
        %1264 = vmatpush1.bf16.msra.mxu0 0
        %1265 = vmatprep.subr.bf16.mxu0 0
        %1266 = vmatpush1.bf16.msra.mxu0 0
        %1267 = vmatprep.subr.bf16.mxu0 0
        %1268 = vmatpush1.bf16.msra.mxu0 0
        %1269 = vmatprep.subr.bf16.mxu0 0
        %1270 = vmatpush1.bf16.msra.mxu0 0
        %1271 = vmatprep.subr.bf16.mxu0 0
        %1272 = vmatpush1.bf16.msra.mxu0 0
        %1273 = vmatprep.subr.bf16.mxu0 0
        %1274 = vmatpush1.bf16.msra.mxu0 0
        %1275 = vmatprep.subr.bf16.mxu0 0
        %1276 = vmatpush1.bf16.msra.mxu0 0
        %1277 = vmatprep.subr.bf16.mxu0 0
        %1278 = vmatpush1.bf16.msra.mxu0 0
        %1279 = vmatprep.subr.bf16.mxu0 0
        %1280 = vmatpush1.bf16.msra.mxu0 0
        %1281 = vmatprep.subr.bf16.mxu0 0
        %1282 = vmatpush1.bf16.msra.mxu0 0
        %1283 = vmatprep.subr.bf16.mxu0 0
        %1284 = vmatpush1.bf16.msra.mxu0 0
        %1285 = vmatprep.mubr.bf16.mxu0 0
        %1286 = vmatmul.mubr.bf16.gmra.mrb[0].mxu0 %v1242
        %v1287 = vpop.f32.mrb[0].mxu0
        %v1288 = vadd.f32 %v1214, %v1287
        %v1289 = vpop.f32.mrb[0].mxu0
        %v1290 = vpop.f32.mrb[0].mxu0
        %v1291 = vadd.f32 %v1214, %v1290
        %v1292 = vpop.f32.mrb[0].mxu0
        %1293 = vmatprep.mubr.bf16.mxu0 0
        %1294 = vmatmul.mubr.bf16.gmra.mrb[0].mxu0 %v1245
        %v1295 = vpop.f32.mrb[0].mxu0
        %v1296 = vadd.f32 %v1214, %v1295
        %v1297 = vpop.f32.mrb[0].mxu0
        %v1298 = vpop.f32.mrb[0].mxu0
        %v1299 = vadd.f32 %v1214, %v1298
        %v1300 = vpop.f32.mrb[0].mxu0
        %1301 = vmatprep.mubr.bf16.mxu0 0
        %1302 = vmatmul.mubr.bf16.gmra.mrb[0].mxu0 %v1248
        %v1303 = vpop.f32.mrb[0].mxu0
        %v1304 = vadd.f32 %v1214, %v1303
        %v1305 = vpop.f32.mrb[0].mxu0
        %v1306 = vpop.f32.mrb[0].mxu0
        %v1307 = vadd.f32 %v1214, %v1306
        %v1308 = vpop.f32.mrb[0].mxu0
        %1309 = vmatprep.mubr.bf16.mxu0 0
        %1310 = vmatmul.mubr.bf16.gmra.mrb[0].mxu0 %v1251
        %v1311 = vpop.f32.mrb[0].mxu0
        %v1312 = vadd.f32 %v1214, %v1311
        %v1313 = vpop.f32.mrb[0].mxu0
        %v1314 = vpop.f32.mrb[0].mxu0
        %v1315 = vadd.f32 %v1214, %v1314
        %v1316 = vpop.f32.mrb[0].mxu0
        %1317 = vdwg.mxu0
        %v1318 = vmax.f32 %v1288, 0.0
        %v1319 = vmax.f32 %v1291, 0.0
        %v1320 = vmax.f32 %v1296, 0.0
        %v1321 = vmax.f32 %v1299, 0.0
        %v1322 = vmax.f32 %v1304, 0.0
        %v1323 = vmax.f32 %v1307, 0.0
        %v1324 = vmax.f32 %v1312, 0.0
        %v1325 = vmax.f32 %v1315, 0.0
        %v1326 = vpack.c.bf16 %v1319, %v1318
        %v1327 = vpack.c.bf16 %v1321, %v1320
        %v1328 = vpack.c.bf16 %v1323, %v1322
        %v1329 = vpack.c.bf16 %v1325, %v1324
        %v1330 = vld [vmem:[%s11] sm:$0xf]
        %v1331 = vld [vmem:[%s11 + $0x4] sm:$0xf]
        %v1332 = vld [vmem:[%s11 + $0x8] sm:$0xf]
        %v1333 = vld [vmem:[%s11 + $0xc] sm:$0xf]
        %v1334 = vld [vmem:[%s13] sm:$0x1]
        %v1336 = vlaneseq
        %v1337 = vshrl.u32 %v1336, 7
        %v1338 = vsub.s32 0, %v1337
        %v1339 = vrot.slane %v1334, %v1338
        %v1345 = vunpack.c.l.b16 %v1330
        %v1346 = vunpack.c.l.b16 %v1331
        %v1347 = vunpack.c.l.b16 %v1332
        %v1348 = vunpack.c.l.b16 %v1333
        %v1349 = vpack.c.b16 %v1346, %v1345
        %v1350 = vpack.c.b16 %v1348, %v1347
        %vm1353 = vcmask 261120
        %v1355 = vsel %vm1353, %v1326, 0
        %v1358 = vsel %vm1353, %v1327, 0
        %v1361 = vsel %vm1353, %v1328, 0
        %v1364 = vsel %vm1353, %v1329, 0
        %1366 = vmatprep.subr.bf16.mxu0 0
        %1367 = vmatpush1.bf16.msra.mxu0 %v1349
        %1368 = vmatprep.subr.bf16.mxu0 0
        %1369 = vmatpush1.bf16.msra.mxu0 %v1350
        %1370 = vmatprep.subr.bf16.mxu0 0
        %1371 = vmatpush1.bf16.msra.mxu0 0
        %1372 = vmatprep.subr.bf16.mxu0 0
        %1373 = vmatpush1.bf16.msra.mxu0 0
        %1374 = vmatprep.subr.bf16.mxu0 0
        %1375 = vmatpush1.bf16.msra.mxu0 0
        %1376 = vmatprep.subr.bf16.mxu0 0
        %1377 = vmatpush1.bf16.msra.mxu0 0
        %1378 = vmatprep.subr.bf16.mxu0 0
        %1379 = vmatpush1.bf16.msra.mxu0 0
        %1380 = vmatprep.subr.bf16.mxu0 0
        %1381 = vmatpush1.bf16.msra.mxu0 0
        %1382 = vmatprep.subr.bf16.mxu0 0
        %1383 = vmatpush1.bf16.msra.mxu0 0
        %1384 = vmatprep.subr.bf16.mxu0 0
        %1385 = vmatpush1.bf16.msra.mxu0 0
        %1386 = vmatprep.subr.bf16.mxu0 0
        %1387 = vmatpush1.bf16.msra.mxu0 0
        %1388 = vmatprep.subr.bf16.mxu0 0
        %1389 = vmatpush1.bf16.msra.mxu0 0
        %1390 = vmatprep.subr.bf16.mxu0 0
        %1391 = vmatpush1.bf16.msra.mxu0 0
        %1392 = vmatprep.subr.bf16.mxu0 0
        %1393 = vmatpush1.bf16.msra.mxu0 0
        %1394 = vmatprep.subr.bf16.mxu0 0
        %1395 = vmatpush1.bf16.msra.mxu0 0
        %1396 = vmatprep.subr.bf16.mxu0 0
        %1397 = vmatpush1.bf16.msra.mxu0 0
        %1398 = vmatprep.mubr.bf16.mxu0 0
        %1399 = vmatmul.mubr.bf16.gmra.mrb[0].mxu0 %v1355
        %v1400 = vpop.f32.mrb[0].mxu0
        %v1401 = vadd.f32 %v1339, %v1400
        %v1402 = vpop.f32.mrb[0].mxu0
        %v1403 = vpop.f32.mrb[0].mxu0
        %v1404 = vadd.f32 %v1339, %v1403
        %v1405 = vpop.f32.mrb[0].mxu0
        %1406 = vmatprep.mubr.bf16.mxu0 0
        %1407 = vmatmul.mubr.bf16.gmra.mrb[0].mxu0 %v1358
        %v1408 = vpop.f32.mrb[0].mxu0
        %v1409 = vadd.f32 %v1339, %v1408
        %v1410 = vpop.f32.mrb[0].mxu0
        %v1411 = vpop.f32.mrb[0].mxu0
        %v1412 = vadd.f32 %v1339, %v1411
        %v1413 = vpop.f32.mrb[0].mxu0
        %1414 = vmatprep.mubr.bf16.mxu0 0
        %1415 = vmatmul.mubr.bf16.gmra.mrb[0].mxu0 %v1361
        %v1416 = vpop.f32.mrb[0].mxu0
        %v1417 = vadd.f32 %v1339, %v1416
        %v1418 = vpop.f32.mrb[0].mxu0
        %v1419 = vpop.f32.mrb[0].mxu0
        %v1420 = vadd.f32 %v1339, %v1419
        %v1421 = vpop.f32.mrb[0].mxu0
        %1422 = vmatprep.mubr.bf16.mxu0 0
        %1423 = vmatmul.mubr.bf16.gmra.mrb[0].mxu0 %v1364
        %v1424 = vpop.f32.mrb[0].mxu0
        %v1425 = vadd.f32 %v1339, %v1424
        %v1426 = vpop.f32.mrb[0].mxu0
        %v1427 = vpop.f32.mrb[0].mxu0
        %v1428 = vadd.f32 %v1339, %v1427
        %v1429 = vpop.f32.mrb[0].mxu0
        %1430 = vdwg.mxu0
        %v1431 = vmul.f32 %v1401, 0.5
        %v1432 = vmul.f32 %v1404, 0.5
        %v1433 = vmul.f32 %v1409, 0.5
        %v1434 = vmul.f32 %v1412, 0.5
        %v1435 = vmul.f32 %v1417, 0.5
        %v1436 = vmul.f32 %v1420, 0.5
        %v1437 = vmul.f32 %v1425, 0.5
        %v1438 = vmul.f32 %v1428, 0.5
        %v1439 = vmul.f32 %v1431, 1.442695
        %v1440 = vpow.pop %v1439
        %v1441 = vmul.f32 %v1432, 1.442695
        %v1442 = vpow.pop %v1441
        %v1443 = vmul.f32 %v1433, 1.442695
        %v1444 = vpow.pop %v1443
        %v1445 = vmul.f32 %v1434, 1.442695
        %v1446 = vpow.pop %v1445
        %v1447 = vmul.f32 %v1435, 1.442695
        %v1448 = vpow.pop %v1447
        %v1449 = vmul.f32 %v1436, 1.442695
        %v1450 = vpow.pop %v1449
        %v1451 = vmul.f32 %v1437, 1.442695
        %v1452 = vpow.pop %v1451
        %v1453 = vmul.f32 %v1438, 1.442695
        %v1454 = vpow.pop %v1453
        %1463 = vrot.lane.b32.xlu0 %v1440, 48
        %v1464 = vpop.permute.xlu0 %1463
        %1465 = vrot.lane.b32.xlu0 %v1442, 48
        %v1466 = vpop.permute.xlu0 %1465
        %1467 = vrot.lane.b32.xlu0 %v1444, 48
        %v1468 = vpop.permute.xlu0 %1467
        %1469 = vrot.lane.b32.xlu0 %v1446, 48
        %v1470 = vpop.permute.xlu0 %1469
        %1471 = vrot.lane.b32.xlu0 %v1448, 48
        %v1472 = vpop.permute.xlu0 %1471
        %1473 = vrot.lane.b32.xlu0 %v1450, 48
        %v1474 = vpop.permute.xlu0 %1473
        %1475 = vrot.lane.b32.xlu0 %v1452, 48
        %v1476 = vpop.permute.xlu0 %1475
        %1477 = vrot.lane.b32.xlu0 %v1454, 48
        %v1478 = vpop.permute.xlu0 %1477
        %v1487 = vmul.f32 %v1068, %v1464
        %v1488 = vmul.f32 %v1069, %v1466
        %v1489 = vmul.f32 %v1070, %v1468
        %v1490 = vmul.f32 %v1071, %v1470
        %v1491 = vmul.f32 %v1072, %v1472
        %v1492 = vmul.f32 %v1073, %v1474
        %v1493 = vmul.f32 %v1074, %v1476
        %v1494 = vmul.f32 %v1075, %v1478
        %1503 = vrot.lane.b32.xlu0 %v1487, 64
        %v1504 = vpop.permute.xlu0 %1503
        %1505 = vrot.lane.b32.xlu0 %v1488, 64
        %v1506 = vpop.permute.xlu0 %1505
        %1507 = vrot.lane.b32.xlu0 %v1489, 64
        %v1508 = vpop.permute.xlu0 %1507
        %1509 = vrot.lane.b32.xlu0 %v1490, 64
        %v1510 = vpop.permute.xlu0 %1509
        %1511 = vrot.lane.b32.xlu0 %v1491, 64
        %v1512 = vpop.permute.xlu0 %1511
        %1513 = vrot.lane.b32.xlu0 %v1492, 64
        %v1514 = vpop.permute.xlu0 %1513
        %1515 = vrot.lane.b32.xlu0 %v1493, 64
        %v1516 = vpop.permute.xlu0 %1515
        %1517 = vrot.lane.b32.xlu0 %v1494, 64
        %v1518 = vpop.permute.xlu0 %1517
        %v1527 = vadd.f32 %v1401, %v1504
        %v1528 = vadd.f32 %v1404, %v1506
        %v1529 = vadd.f32 %v1409, %v1508
        %v1530 = vadd.f32 %v1412, %v1510
        %v1531 = vadd.f32 %v1417, %v1512
        %v1532 = vadd.f32 %v1420, %v1514
        %v1533 = vadd.f32 %v1425, %v1516
        %v1534 = vadd.f32 %v1428, %v1518
        %v1535 = vpack.c.bf16 %v1528, %v1527
        %v1536 = vpack.c.bf16 %v1530, %v1529
        %v1537 = vpack.c.bf16 %v1532, %v1531
        %v1538 = vpack.c.bf16 %v1534, %v1533
        %v1539 = vld [vmem:[%s15] sm:$0xf]
        %v1540 = vld [vmem:[%s15 + $0x4] sm:$0xf]
        %v1541 = vld [vmem:[%s17] sm:$0x1]
        %v1543 = vlaneseq
        %v1544 = vshrl.u32 %v1543, 7
        %v1545 = vsub.s32 0, %v1544
        %v1546 = vrot.slane %v1541, %v1545
        %v1550 = vunpack.c.l.b16 %v1539
        %v1551 = vunpack.c.l.b16 %v1540
        %v1552 = vpack.c.b16 %v1551, %v1550
        %vm1554 = vcmask 130048
        %v1556 = vsel %vm1554, %v1535, 0
        %v1559 = vsel %vm1554, %v1536, 0
        %v1562 = vsel %vm1554, %v1537, 0
        %v1565 = vsel %vm1554, %v1538, 0
        %1567 = vmatprep.subr.bf16.mxu0 0
        %1568 = vmatpush1.bf16.msra.mxu0 %v1552
        %1569 = vmatprep.subr.bf16.mxu0 0
        %1570 = vmatpush1.bf16.msra.mxu0 0
        %1571 = vmatprep.subr.bf16.mxu0 0
        %1572 = vmatpush1.bf16.msra.mxu0 0
        %1573 = vmatprep.subr.bf16.mxu0 0
        %1574 = vmatpush1.bf16.msra.mxu0 0
        %1575 = vmatprep.subr.bf16.mxu0 0
        %1576 = vmatpush1.bf16.msra.mxu0 0
        %1577 = vmatprep.subr.bf16.mxu0 0
        %1578 = vmatpush1.bf16.msra.mxu0 0
        %1579 = vmatprep.subr.bf16.mxu0 0
        %1580 = vmatpush1.bf16.msra.mxu0 0
        %1581 = vmatprep.subr.bf16.mxu0 0
        %1582 = vmatpush1.bf16.msra.mxu0 0
        %1583 = vmatprep.subr.bf16.mxu0 0
        %1584 = vmatpush1.bf16.msra.mxu0 0
        %1585 = vmatprep.subr.bf16.mxu0 0
        %1586 = vmatpush1.bf16.msra.mxu0 0
        %1587 = vmatprep.subr.bf16.mxu0 0
        %1588 = vmatpush1.bf16.msra.mxu0 0
        %1589 = vmatprep.subr.bf16.mxu0 0
        %1590 = vmatpush1.bf16.msra.mxu0 0
        %1591 = vmatprep.subr.bf16.mxu0 0
        %1592 = vmatpush1.bf16.msra.mxu0 0
        %1593 = vmatprep.subr.bf16.mxu0 0
        %1594 = vmatpush1.bf16.msra.mxu0 0
        %1595 = vmatprep.subr.bf16.mxu0 0
        %1596 = vmatpush1.bf16.msra.mxu0 0
        %1597 = vmatprep.subr.bf16.mxu0 0
        %1598 = vmatpush1.bf16.msra.mxu0 0
        %1599 = vmatprep.mubr.bf16.mxu0 0
        %1600 = vmatmul.mubr.bf16.gmra.mrb[0].mxu0 %v1556
        %v1601 = vpop.f32.mrb[0].mxu0
        %v1602 = vadd.f32 %v1546, %v1601
        %v1603 = vpop.f32.mrb[0].mxu0
        %v1604 = vpop.f32.mrb[0].mxu0
        %v1605 = vadd.f32 %v1546, %v1604
        %v1606 = vpop.f32.mrb[0].mxu0
        %1607 = vmatprep.mubr.bf16.mxu0 0
        %1608 = vmatmul.mubr.bf16.gmra.mrb[0].mxu0 %v1559
        %v1609 = vpop.f32.mrb[0].mxu0
        %v1610 = vadd.f32 %v1546, %v1609
        %v1611 = vpop.f32.mrb[0].mxu0
        %v1612 = vpop.f32.mrb[0].mxu0
        %v1613 = vadd.f32 %v1546, %v1612
        %v1614 = vpop.f32.mrb[0].mxu0
        %1615 = vmatprep.mubr.bf16.mxu0 0
        %1616 = vmatmul.mubr.bf16.gmra.mrb[0].mxu0 %v1562
        %v1617 = vpop.f32.mrb[0].mxu0
        %v1618 = vadd.f32 %v1546, %v1617
        %v1619 = vpop.f32.mrb[0].mxu0
        %v1620 = vpop.f32.mrb[0].mxu0
        %v1621 = vadd.f32 %v1546, %v1620
        %v1622 = vpop.f32.mrb[0].mxu0
        %1623 = vmatprep.mubr.bf16.mxu0 0
        %1624 = vmatmul.mubr.bf16.gmra.mrb[0].mxu0 %v1565
        %v1625 = vpop.f32.mrb[0].mxu0
        %v1626 = vadd.f32 %v1546, %v1625
        %v1627 = vpop.f32.mrb[0].mxu0
        %v1628 = vpop.f32.mrb[0].mxu0
        %v1629 = vadd.f32 %v1546, %v1628
        %v1630 = vpop.f32.mrb[0].mxu0
        %1631 = vdwg.mxu0
        %v1632 = vmax.f32 %v1602, 0.0
        %v1633 = vmax.f32 %v1605, 0.0
        %v1634 = vmax.f32 %v1610, 0.0
        %v1635 = vmax.f32 %v1613, 0.0
        %v1636 = vmax.f32 %v1618, 0.0
        %v1637 = vmax.f32 %v1621, 0.0
        %v1638 = vmax.f32 %v1626, 0.0
        %v1639 = vmax.f32 %v1629, 0.0
        %v1640 = vpack.c.bf16 %v1633, %v1632
        %v1641 = vpack.c.bf16 %v1635, %v1634
        %v1642 = vpack.c.bf16 %v1637, %v1636
        %v1643 = vpack.c.bf16 %v1639, %v1638
        %v1644 = vld [vmem:[%s19] sm:$0xf]
        %v1645 = vld [vmem:[%s19 + $0x4] sm:$0xf]
        %v1646 = vld [vmem:[%s19 + $0x8] sm:$0xf]
        %v1647 = vld [vmem:[%s19 + $0xc] sm:$0xf]
        %v1648 = vld [vmem:[%s21] sm:$0x1]
        %v1650 = vlaneseq
        %v1651 = vshrl.u32 %v1650, 7
        %v1652 = vsub.s32 0, %v1651
        %v1653 = vrot.slane %v1648, %v1652
        %v1659 = vunpack.c.l.b16 %v1644
        %v1660 = vunpack.c.l.b16 %v1645
        %v1661 = vunpack.c.l.b16 %v1646
        %v1662 = vunpack.c.l.b16 %v1647
        %v1663 = vpack.c.b16 %v1660, %v1659
        %v1664 = vpack.c.b16 %v1662, %v1661
        %v1668 = vsel %vm1353, %v1640, 0
        %v1671 = vsel %vm1353, %v1641, 0
        %v1674 = vsel %vm1353, %v1642, 0
        %v1677 = vsel %vm1353, %v1643, 0
        %1679 = vmatprep.subr.bf16.mxu0 0
        %1680 = vmatpush1.bf16.msra.mxu0 %v1663
        %1681 = vmatprep.subr.bf16.mxu0 0
        %1682 = vmatpush1.bf16.msra.mxu0 %v1664
        %1683 = vmatprep.subr.bf16.mxu0 0
        %1684 = vmatpush1.bf16.msra.mxu0 0
        %1685 = vmatprep.subr.bf16.mxu0 0
        %1686 = vmatpush1.bf16.msra.mxu0 0
        %1687 = vmatprep.subr.bf16.mxu0 0
        %1688 = vmatpush1.bf16.msra.mxu0 0
        %1689 = vmatprep.subr.bf16.mxu0 0
        %1690 = vmatpush1.bf16.msra.mxu0 0
        %1691 = vmatprep.subr.bf16.mxu0 0
        %1692 = vmatpush1.bf16.msra.mxu0 0
        %1693 = vmatprep.subr.bf16.mxu0 0
        %1694 = vmatpush1.bf16.msra.mxu0 0
        %1695 = vmatprep.subr.bf16.mxu0 0
        %1696 = vmatpush1.bf16.msra.mxu0 0
        %1697 = vmatprep.subr.bf16.mxu0 0
        %1698 = vmatpush1.bf16.msra.mxu0 0
        %1699 = vmatprep.subr.bf16.mxu0 0
        %1700 = vmatpush1.bf16.msra.mxu0 0
        %1701 = vmatprep.subr.bf16.mxu0 0
        %1702 = vmatpush1.bf16.msra.mxu0 0
        %1703 = vmatprep.subr.bf16.mxu0 0
        %1704 = vmatpush1.bf16.msra.mxu0 0
        %1705 = vmatprep.subr.bf16.mxu0 0
        %1706 = vmatpush1.bf16.msra.mxu0 0
        %1707 = vmatprep.subr.bf16.mxu0 0
        %1708 = vmatpush1.bf16.msra.mxu0 0
        %1709 = vmatprep.subr.bf16.mxu0 0
        %1710 = vmatpush1.bf16.msra.mxu0 0
        %1711 = vmatprep.mubr.bf16.mxu0 0
        %1712 = vmatmul.mubr.bf16.gmra.mrb[0].mxu0 %v1668
        %v1713 = vpop.f32.mrb[0].mxu0
        %v1714 = vadd.f32 %v1653, %v1713
        %v1715 = vpop.f32.mrb[0].mxu0
        %v1716 = vpop.f32.mrb[0].mxu0
        %v1717 = vadd.f32 %v1653, %v1716
        %v1718 = vpop.f32.mrb[0].mxu0
        %1719 = vmatprep.mubr.bf16.mxu0 0
        %1720 = vmatmul.mubr.bf16.gmra.mrb[0].mxu0 %v1671
        %v1721 = vpop.f32.mrb[0].mxu0
        %v1722 = vadd.f32 %v1653, %v1721
        %v1723 = vpop.f32.mrb[0].mxu0
        %v1724 = vpop.f32.mrb[0].mxu0
        %v1725 = vadd.f32 %v1653, %v1724
        %v1726 = vpop.f32.mrb[0].mxu0
        %1727 = vmatprep.mubr.bf16.mxu0 0
        %1728 = vmatmul.mubr.bf16.gmra.mrb[0].mxu0 %v1674
        %v1729 = vpop.f32.mrb[0].mxu0
        %v1730 = vadd.f32 %v1653, %v1729
        %v1731 = vpop.f32.mrb[0].mxu0
        %v1732 = vpop.f32.mrb[0].mxu0
        %v1733 = vadd.f32 %v1653, %v1732
        %v1734 = vpop.f32.mrb[0].mxu0
        %1735 = vmatprep.mubr.bf16.mxu0 0
        %1736 = vmatmul.mubr.bf16.gmra.mrb[0].mxu0 %v1677
        %v1737 = vpop.f32.mrb[0].mxu0
        %v1738 = vadd.f32 %v1653, %v1737
        %v1739 = vpop.f32.mrb[0].mxu0
        %v1740 = vpop.f32.mrb[0].mxu0
        %v1741 = vadd.f32 %v1653, %v1740
        %v1742 = vpop.f32.mrb[0].mxu0
        %1743 = vdwg.mxu0
        %v1744 = vmax.f32 %v1714, 0.0
        %v1745 = vmax.f32 %v1717, 0.0
        %v1746 = vmax.f32 %v1722, 0.0
        %v1747 = vmax.f32 %v1725, 0.0
        %v1748 = vmax.f32 %v1730, 0.0
        %v1749 = vmax.f32 %v1733, 0.0
        %v1750 = vmax.f32 %v1738, 0.0
        %v1751 = vmax.f32 %v1741, 0.0
        %v1752 = vpack.c.bf16 %v1745, %v1744
        %v1753 = vpack.c.bf16 %v1747, %v1746
        %v1754 = vpack.c.bf16 %v1749, %v1748
        %v1755 = vpack.c.bf16 %v1751, %v1750
        %v1756 = vld [vmem:[%s23] sm:$0xf]
        %v1757 = vld [vmem:[%s23 + $0x4] sm:$0xf]
        %v1758 = vld [vmem:[%s23 + $0x8] sm:$0xf]
        %v1759 = vld [vmem:[%s23 + $0xc] sm:$0xf]
        %v1760 = vld [vmem:[%s23 + $0x10] sm:$0xf]
        %v1761 = vld [vmem:[%s23 + $0x14] sm:$0xf]
        %v1762 = vld [vmem:[%s23 + $0x18] sm:$0xf]
        %v1763 = vld [vmem:[%s23 + $0x1c] sm:$0xf]
        %v1764 = vld [vmem:[%s25] sm:$0x1]
        %v1766 = vlaneseq
        %v1767 = vshrl.u32 %v1766, 7
        %v1768 = vsub.s32 0, %v1767
        %v1769 = vrot.slane %v1764, %v1768
        %v1779 = vunpack.c.l.b16 %v1756
        %v1780 = vunpack.c.l.b16 %v1757
        %v1781 = vunpack.c.l.b16 %v1758
        %v1782 = vunpack.c.l.b16 %v1759
        %v1783 = vunpack.c.l.b16 %v1760
        %v1784 = vunpack.c.l.b16 %v1761
        %v1785 = vunpack.c.l.b16 %v1762
        %v1786 = vunpack.c.l.b16 %v1763
        %v1787 = vpack.c.b16 %v1780, %v1779
        %v1788 = vpack.c.b16 %v1782, %v1781
        %v1789 = vpack.c.b16 %v1784, %v1783
        %v1790 = vpack.c.b16 %v1786, %v1785
        %v1796 = vsel %vm1240, %v1752, 0
        %v1799 = vsel %vm1240, %v1753, 0
        %v1802 = vsel %vm1240, %v1754, 0
        %v1805 = vsel %vm1240, %v1755, 0
        %1807 = vmatprep.subr.bf16.mxu0 0
        %1808 = vmatpush1.bf16.msra.mxu0 %v1787
        %1809 = vmatprep.subr.bf16.mxu0 0
        %1810 = vmatpush1.bf16.msra.mxu0 %v1788
        %1811 = vmatprep.subr.bf16.mxu0 0
        %1812 = vmatpush1.bf16.msra.mxu0 %v1789
        %1813 = vmatprep.subr.bf16.mxu0 0
        %1814 = vmatpush1.bf16.msra.mxu0 %v1790
        %1815 = vmatprep.subr.bf16.mxu0 0
        %1816 = vmatpush1.bf16.msra.mxu0 0
        %1817 = vmatprep.subr.bf16.mxu0 0
        %1818 = vmatpush1.bf16.msra.mxu0 0
        %1819 = vmatprep.subr.bf16.mxu0 0
        %1820 = vmatpush1.bf16.msra.mxu0 0
        %1821 = vmatprep.subr.bf16.mxu0 0
        %1822 = vmatpush1.bf16.msra.mxu0 0
        %1823 = vmatprep.subr.bf16.mxu0 0
        %1824 = vmatpush1.bf16.msra.mxu0 0
        %1825 = vmatprep.subr.bf16.mxu0 0
        %1826 = vmatpush1.bf16.msra.mxu0 0
        %1827 = vmatprep.subr.bf16.mxu0 0
        %1828 = vmatpush1.bf16.msra.mxu0 0
        %1829 = vmatprep.subr.bf16.mxu0 0
        %1830 = vmatpush1.bf16.msra.mxu0 0
        %1831 = vmatprep.subr.bf16.mxu0 0
        %1832 = vmatpush1.bf16.msra.mxu0 0
        %1833 = vmatprep.subr.bf16.mxu0 0
        %1834 = vmatpush1.bf16.msra.mxu0 0
        %1835 = vmatprep.subr.bf16.mxu0 0
        %1836 = vmatpush1.bf16.msra.mxu0 0
        %1837 = vmatprep.subr.bf16.mxu0 0
        %1838 = vmatpush1.bf16.msra.mxu0 0
        %1839 = vmatprep.mubr.bf16.mxu0 0
        %1840 = vmatmul.mubr.bf16.gmra.mrb[0].mxu0 %v1796
        %v1841 = vpop.f32.mrb[0].mxu0
        %v1842 = vadd.f32 %v1769, %v1841
        %v1843 = vpop.f32.mrb[0].mxu0
        %v1844 = vpop.f32.mrb[0].mxu0
        %v1845 = vadd.f32 %v1769, %v1844
        %v1846 = vpop.f32.mrb[0].mxu0
        %1847 = vmatprep.mubr.bf16.mxu0 0
        %1848 = vmatmul.mubr.bf16.gmra.mrb[0].mxu0 %v1799
        %v1849 = vpop.f32.mrb[0].mxu0
        %v1850 = vadd.f32 %v1769, %v1849
        %v1851 = vpop.f32.mrb[0].mxu0
        %v1852 = vpop.f32.mrb[0].mxu0
        %v1853 = vadd.f32 %v1769, %v1852
        %v1854 = vpop.f32.mrb[0].mxu0
        %1855 = vmatprep.mubr.bf16.mxu0 0
        %1856 = vmatmul.mubr.bf16.gmra.mrb[0].mxu0 %v1802
        %v1857 = vpop.f32.mrb[0].mxu0
        %v1858 = vadd.f32 %v1769, %v1857
        %v1859 = vpop.f32.mrb[0].mxu0
        %v1860 = vpop.f32.mrb[0].mxu0
        %v1861 = vadd.f32 %v1769, %v1860
        %v1862 = vpop.f32.mrb[0].mxu0
        %1863 = vmatprep.mubr.bf16.mxu0 0
        %1864 = vmatmul.mubr.bf16.gmra.mrb[0].mxu0 %v1805
        %v1865 = vpop.f32.mrb[0].mxu0
        %v1866 = vadd.f32 %v1769, %v1865
        %v1867 = vpop.f32.mrb[0].mxu0
        %v1868 = vpop.f32.mrb[0].mxu0
        %v1869 = vadd.f32 %v1769, %v1868
        %v1870 = vpop.f32.mrb[0].mxu0
        %1871 = vdwg.mxu0
        %v1872 = vld [vmem:[%s27] sm:$0xf]
        %v1873 = vld [vmem:[%s27 + $0x4] sm:$0xf]
        %v1874 = vld [vmem:[%s27 + $0x8] sm:$0xf]
        %v1875 = vld [vmem:[%s29] sm:$0x1]
        %v1877 = vlaneseq
        %v1878 = vshrl.u32 %v1877, 7
        %v1879 = vsub.s32 0, %v1878
        %v1880 = vrot.slane %v1875, %v1879
        %1886 = vrot.lane.b32.xlu0 %v1076, 88
        %v1887 = vpop.permute.xlu0 %1886
        %1888 = vrot.lane.b32.xlu0 %v1077, 88
        %v1889 = vpop.permute.xlu0 %1888
        %1890 = vrot.lane.b32.xlu0 %v1078, 88
        %v1891 = vpop.permute.xlu0 %1890
        %1892 = vrot.lane.b32.xlu0 %v1079, 88
        %v1893 = vpop.permute.xlu0 %1892
        %v1897 = vunpack.c.l.b16 %v1872
        %v1898 = vunpack.c.l.b16 %v1873
        %v1899 = vunpack.c.l.b16 %v1874
        %v1900 = vpack.c.b16 %v1898, %v1897
        %v1901 = vpack.c.b16 %v1899, %v1899
        %vm1903 = vcmask 195584
        %v1905 = vsel %vm1903, %v1887, 0
        %v1908 = vsel %vm1903, %v1889, 0
        %v1911 = vsel %vm1903, %v1891, 0
        %v1914 = vsel %vm1903, %v1893, 0
        %v1917 = vsel %vm1120, %v1901, 0
        %1919 = vmatprep.subr.bf16.mxu0 0
        %1920 = vmatpush1.bf16.msra.mxu0 %v1900
        %1921 = vmatprep.subr.bf16.mxu0 0
        %1922 = vmatpush1.bf16.msra.mxu0 %v1917
        %1923 = vmatprep.subr.bf16.mxu0 0
        %1924 = vmatpush1.bf16.msra.mxu0 0
        %1925 = vmatprep.subr.bf16.mxu0 0
        %1926 = vmatpush1.bf16.msra.mxu0 0
        %1927 = vmatprep.subr.bf16.mxu0 0
        %1928 = vmatpush1.bf16.msra.mxu0 0
        %1929 = vmatprep.subr.bf16.mxu0 0
        %1930 = vmatpush1.bf16.msra.mxu0 0
        %1931 = vmatprep.subr.bf16.mxu0 0
        %1932 = vmatpush1.bf16.msra.mxu0 0
        %1933 = vmatprep.subr.bf16.mxu0 0
        %1934 = vmatpush1.bf16.msra.mxu0 0
        %1935 = vmatprep.subr.bf16.mxu0 0
        %1936 = vmatpush1.bf16.msra.mxu0 0
        %1937 = vmatprep.subr.bf16.mxu0 0
        %1938 = vmatpush1.bf16.msra.mxu0 0
        %1939 = vmatprep.subr.bf16.mxu0 0
        %1940 = vmatpush1.bf16.msra.mxu0 0
        %1941 = vmatprep.subr.bf16.mxu0 0
        %1942 = vmatpush1.bf16.msra.mxu0 0
        %1943 = vmatprep.subr.bf16.mxu0 0
        %1944 = vmatpush1.bf16.msra.mxu0 0
        %1945 = vmatprep.subr.bf16.mxu0 0
        %1946 = vmatpush1.bf16.msra.mxu0 0
        %1947 = vmatprep.subr.bf16.mxu0 0
        %1948 = vmatpush1.bf16.msra.mxu0 0
        %1949 = vmatprep.subr.bf16.mxu0 0
        %1950 = vmatpush1.bf16.msra.mxu0 0
        %1951 = vmatprep.mubr.bf16.mxu0 0
        %1952 = vmatmul.mubr.bf16.gmra.mrb[0].mxu0 %v1905
        %v1953 = vpop.f32.mrb[0].mxu0
        %v1954 = vadd.f32 %v1880, %v1953
        %v1955 = vpop.f32.mrb[0].mxu0
        %v1956 = vpop.f32.mrb[0].mxu0
        %v1957 = vadd.f32 %v1880, %v1956
        %v1958 = vpop.f32.mrb[0].mxu0
        %1959 = vmatprep.mubr.bf16.mxu0 0
        %1960 = vmatmul.mubr.bf16.gmra.mrb[0].mxu0 %v1908
        %v1961 = vpop.f32.mrb[0].mxu0
        %v1962 = vadd.f32 %v1880, %v1961
        %v1963 = vpop.f32.mrb[0].mxu0
        %v1964 = vpop.f32.mrb[0].mxu0
        %v1965 = vadd.f32 %v1880, %v1964
        %v1966 = vpop.f32.mrb[0].mxu0
        %1967 = vmatprep.mubr.bf16.mxu0 0
        %1968 = vmatmul.mubr.bf16.gmra.mrb[0].mxu0 %v1911
        %v1969 = vpop.f32.mrb[0].mxu0
        %v1970 = vadd.f32 %v1880, %v1969
        %v1971 = vpop.f32.mrb[0].mxu0
        %v1972 = vpop.f32.mrb[0].mxu0
        %v1973 = vadd.f32 %v1880, %v1972
        %v1974 = vpop.f32.mrb[0].mxu0
        %1975 = vmatprep.mubr.bf16.mxu0 0
        %1976 = vmatmul.mubr.bf16.gmra.mrb[0].mxu0 %v1914
        %v1977 = vpop.f32.mrb[0].mxu0
        %v1978 = vadd.f32 %v1880, %v1977
        %v1979 = vpop.f32.mrb[0].mxu0
        %v1980 = vpop.f32.mrb[0].mxu0
        %v1981 = vadd.f32 %v1880, %v1980
        %v1982 = vpop.f32.mrb[0].mxu0
        %1983 = vdwg.mxu0
        %v1984 = vmax.f32 %v1954, 0.0
        %v1985 = vmax.f32 %v1957, 0.0
        %v1986 = vmax.f32 %v1962, 0.0
        %v1987 = vmax.f32 %v1965, 0.0
        %v1988 = vmax.f32 %v1970, 0.0
        %v1989 = vmax.f32 %v1973, 0.0
        %v1990 = vmax.f32 %v1978, 0.0
        %v1991 = vmax.f32 %v1981, 0.0
        %v1992 = vpack.c.bf16 %v1985, %v1984
        %v1993 = vpack.c.bf16 %v1987, %v1986
        %v1994 = vpack.c.bf16 %v1989, %v1988
        %v1995 = vpack.c.bf16 %v1991, %v1990
        %v1996 = vld [vmem:[%s31] sm:$0xf]
        %v1997 = vld [vmem:[%s31 + $0x4] sm:$0xf]
        %v1998 = vld [vmem:[%s31 + $0x8] sm:$0xf]
        %v1999 = vld [vmem:[%s31 + $0xc] sm:$0xf]
        %v2000 = vld [vmem:[%s31 + $0x10] sm:$0xf]
        %v2001 = vld [vmem:[%s31 + $0x14] sm:$0xf]
        %v2002 = vld [vmem:[%s31 + $0x18] sm:$0xf]
        %v2003 = vld [vmem:[%s31 + $0x1c] sm:$0xf]
        %v2004 = vld [vmem:[%s33] sm:$0x1]
        %v2006 = vlaneseq
        %v2007 = vshrl.u32 %v2006, 7
        %v2008 = vsub.s32 0, %v2007
        %v2009 = vrot.slane %v2004, %v2008
        %v2019 = vunpack.c.l.b16 %v1996
        %v2020 = vunpack.c.l.b16 %v1997
        %v2021 = vunpack.c.l.b16 %v1998
        %v2022 = vunpack.c.l.b16 %v1999
        %v2023 = vunpack.c.l.b16 %v2000
        %v2024 = vunpack.c.l.b16 %v2001
        %v2025 = vunpack.c.l.b16 %v2002
        %v2026 = vunpack.c.l.b16 %v2003
        %v2027 = vpack.c.b16 %v2020, %v2019
        %v2028 = vpack.c.b16 %v2022, %v2021
        %v2029 = vpack.c.b16 %v2024, %v2023
        %v2030 = vpack.c.b16 %v2026, %v2025
        %v2036 = vsel %vm1240, %v1992, 0
        %v2039 = vsel %vm1240, %v1993, 0
        %v2042 = vsel %vm1240, %v1994, 0
        %v2045 = vsel %vm1240, %v1995, 0
        %2047 = vmatprep.subr.bf16.mxu0 0
        %2048 = vmatpush1.bf16.msra.mxu0 %v2027
        %2049 = vmatprep.subr.bf16.mxu0 0
        %2050 = vmatpush1.bf16.msra.mxu0 %v2028
        %2051 = vmatprep.subr.bf16.mxu0 0
        %2052 = vmatpush1.bf16.msra.mxu0 %v2029
        %2053 = vmatprep.subr.bf16.mxu0 0
        %2054 = vmatpush1.bf16.msra.mxu0 %v2030
        %2055 = vmatprep.subr.bf16.mxu0 0
        %2056 = vmatpush1.bf16.msra.mxu0 0
        %2057 = vmatprep.subr.bf16.mxu0 0
        %2058 = vmatpush1.bf16.msra.mxu0 0
        %2059 = vmatprep.subr.bf16.mxu0 0
        %2060 = vmatpush1.bf16.msra.mxu0 0
        %2061 = vmatprep.subr.bf16.mxu0 0
        %2062 = vmatpush1.bf16.msra.mxu0 0
        %2063 = vmatprep.subr.bf16.mxu0 0
        %2064 = vmatpush1.bf16.msra.mxu0 0
        %2065 = vmatprep.subr.bf16.mxu0 0
        %2066 = vmatpush1.bf16.msra.mxu0 0
        %2067 = vmatprep.subr.bf16.mxu0 0
        %2068 = vmatpush1.bf16.msra.mxu0 0
        %2069 = vmatprep.subr.bf16.mxu0 0
        %2070 = vmatpush1.bf16.msra.mxu0 0
        %2071 = vmatprep.subr.bf16.mxu0 0
        %2072 = vmatpush1.bf16.msra.mxu0 0
        %2073 = vmatprep.subr.bf16.mxu0 0
        %2074 = vmatpush1.bf16.msra.mxu0 0
        %2075 = vmatprep.subr.bf16.mxu0 0
        %2076 = vmatpush1.bf16.msra.mxu0 0
        %2077 = vmatprep.subr.bf16.mxu0 0
        %2078 = vmatpush1.bf16.msra.mxu0 0
        %2079 = vmatprep.mubr.bf16.mxu0 0
        %2080 = vmatmul.mubr.bf16.gmra.mrb[0].mxu0 %v2036
        %v2081 = vpop.f32.mrb[0].mxu0
        %v2082 = vadd.f32 %v2009, %v2081
        %v2083 = vpop.f32.mrb[0].mxu0
        %v2084 = vpop.f32.mrb[0].mxu0
        %v2085 = vadd.f32 %v2009, %v2084
        %v2086 = vpop.f32.mrb[0].mxu0
        %2087 = vmatprep.mubr.bf16.mxu0 0
        %2088 = vmatmul.mubr.bf16.gmra.mrb[0].mxu0 %v2039
        %v2089 = vpop.f32.mrb[0].mxu0
        %v2090 = vadd.f32 %v2009, %v2089
        %v2091 = vpop.f32.mrb[0].mxu0
        %v2092 = vpop.f32.mrb[0].mxu0
        %v2093 = vadd.f32 %v2009, %v2092
        %v2094 = vpop.f32.mrb[0].mxu0
        %2095 = vmatprep.mubr.bf16.mxu0 0
        %2096 = vmatmul.mubr.bf16.gmra.mrb[0].mxu0 %v2042
        %v2097 = vpop.f32.mrb[0].mxu0
        %v2098 = vadd.f32 %v2009, %v2097
        %v2099 = vpop.f32.mrb[0].mxu0
        %v2100 = vpop.f32.mrb[0].mxu0
        %v2101 = vadd.f32 %v2009, %v2100
        %v2102 = vpop.f32.mrb[0].mxu0
        %2103 = vmatprep.mubr.bf16.mxu0 0
        %2104 = vmatmul.mubr.bf16.gmra.mrb[0].mxu0 %v2045
        %v2105 = vpop.f32.mrb[0].mxu0
        %v2106 = vadd.f32 %v2009, %v2105
        %v2107 = vpop.f32.mrb[0].mxu0
        %v2108 = vpop.f32.mrb[0].mxu0
        %v2109 = vadd.f32 %v2009, %v2108
        %v2110 = vpop.f32.mrb[0].mxu0
        %2111 = vdwg.mxu0
        %v2112 = vmax.f32 %v2082, 0.0
        %v2113 = vmax.f32 %v2085, 0.0
        %v2114 = vmax.f32 %v2090, 0.0
        %v2115 = vmax.f32 %v2093, 0.0
        %v2116 = vmax.f32 %v2098, 0.0
        %v2117 = vmax.f32 %v2101, 0.0
        %v2118 = vmax.f32 %v2106, 0.0
        %v2119 = vmax.f32 %v2109, 0.0
        %v2120 = vpack.c.bf16 %v2113, %v2112
        %v2121 = vpack.c.bf16 %v2115, %v2114
        %v2122 = vpack.c.bf16 %v2117, %v2116
        %v2123 = vpack.c.bf16 %v2119, %v2118
        %v2124 = vld [vmem:[%s35] sm:$0xf]
        %v2125 = vld [vmem:[%s35 + $0x4] sm:$0xf]
        %v2126 = vld [vmem:[%s35 + $0x8] sm:$0xf]
        %v2127 = vld [vmem:[%s35 + $0xc] sm:$0xf]
        %v2128 = vld [vmem:[%s37] sm:$0x1]
        %v2130 = vlaneseq
        %v2131 = vshrl.u32 %v2130, 7
        %v2132 = vsub.s32 0, %v2131
        %v2133 = vrot.slane %v2128, %v2132
        %v2139 = vunpack.c.l.b16 %v2124
        %v2140 = vunpack.c.l.b16 %v2125
        %v2141 = vunpack.c.l.b16 %v2126
        %v2142 = vunpack.c.l.b16 %v2127
        %v2143 = vpack.c.b16 %v2140, %v2139
        %v2144 = vpack.c.b16 %v2142, %v2141
        %v2148 = vsel %vm1353, %v2120, 0
        %v2151 = vsel %vm1353, %v2121, 0
        %v2154 = vsel %vm1353, %v2122, 0
        %v2157 = vsel %vm1353, %v2123, 0
        %2159 = vmatprep.subr.bf16.mxu0 0
        %2160 = vmatpush1.bf16.msra.mxu0 %v2143
        %2161 = vmatprep.subr.bf16.mxu0 0
        %2162 = vmatpush1.bf16.msra.mxu0 %v2144
        %2163 = vmatprep.subr.bf16.mxu0 0
        %2164 = vmatpush1.bf16.msra.mxu0 0
        %2165 = vmatprep.subr.bf16.mxu0 0
        %2166 = vmatpush1.bf16.msra.mxu0 0
        %2167 = vmatprep.subr.bf16.mxu0 0
        %2168 = vmatpush1.bf16.msra.mxu0 0
        %2169 = vmatprep.subr.bf16.mxu0 0
        %2170 = vmatpush1.bf16.msra.mxu0 0
        %2171 = vmatprep.subr.bf16.mxu0 0
        %2172 = vmatpush1.bf16.msra.mxu0 0
        %2173 = vmatprep.subr.bf16.mxu0 0
        %2174 = vmatpush1.bf16.msra.mxu0 0
        %2175 = vmatprep.subr.bf16.mxu0 0
        %2176 = vmatpush1.bf16.msra.mxu0 0
        %2177 = vmatprep.subr.bf16.mxu0 0
        %2178 = vmatpush1.bf16.msra.mxu0 0
        %2179 = vmatprep.subr.bf16.mxu0 0
        %2180 = vmatpush1.bf16.msra.mxu0 0
        %2181 = vmatprep.subr.bf16.mxu0 0
        %2182 = vmatpush1.bf16.msra.mxu0 0
        %2183 = vmatprep.subr.bf16.mxu0 0
        %2184 = vmatpush1.bf16.msra.mxu0 0
        %2185 = vmatprep.subr.bf16.mxu0 0
        %2186 = vmatpush1.bf16.msra.mxu0 0
        %2187 = vmatprep.subr.bf16.mxu0 0
        %2188 = vmatpush1.bf16.msra.mxu0 0
        %2189 = vmatprep.subr.bf16.mxu0 0
        %2190 = vmatpush1.bf16.msra.mxu0 0
        %2191 = vmatprep.mubr.bf16.mxu0 0
        %2192 = vmatmul.mubr.bf16.gmra.mrb[0].mxu0 %v2148
        %v2193 = vpop.f32.mrb[0].mxu0
        %v2194 = vadd.f32 %v2133, %v2193
        %v2195 = vpop.f32.mrb[0].mxu0
        %v2196 = vpop.f32.mrb[0].mxu0
        %v2197 = vadd.f32 %v2133, %v2196
        %v2198 = vpop.f32.mrb[0].mxu0
        %2199 = vmatprep.mubr.bf16.mxu0 0
        %2200 = vmatmul.mubr.bf16.gmra.mrb[0].mxu0 %v2151
        %v2201 = vpop.f32.mrb[0].mxu0
        %v2202 = vadd.f32 %v2133, %v2201
        %v2203 = vpop.f32.mrb[0].mxu0
        %v2204 = vpop.f32.mrb[0].mxu0
        %v2205 = vadd.f32 %v2133, %v2204
        %v2206 = vpop.f32.mrb[0].mxu0
        %2207 = vmatprep.mubr.bf16.mxu0 0
        %2208 = vmatmul.mubr.bf16.gmra.mrb[0].mxu0 %v2154
        %v2209 = vpop.f32.mrb[0].mxu0
        %v2210 = vadd.f32 %v2133, %v2209
        %v2211 = vpop.f32.mrb[0].mxu0
        %v2212 = vpop.f32.mrb[0].mxu0
        %v2213 = vadd.f32 %v2133, %v2212
        %v2214 = vpop.f32.mrb[0].mxu0
        %2215 = vmatprep.mubr.bf16.mxu0 0
        %2216 = vmatmul.mubr.bf16.gmra.mrb[0].mxu0 %v2157
        %v2217 = vpop.f32.mrb[0].mxu0
        %v2218 = vadd.f32 %v2133, %v2217
        %v2219 = vpop.f32.mrb[0].mxu0
        %v2220 = vpop.f32.mrb[0].mxu0
        %v2221 = vadd.f32 %v2133, %v2220
        %v2222 = vpop.f32.mrb[0].mxu0
        %2223 = vdwg.mxu0
        %v2224 = vmul.f32 %v2194, 0.5
        %v2225 = vmul.f32 %v2197, 0.5
        %v2226 = vmul.f32 %v2202, 0.5
        %v2227 = vmul.f32 %v2205, 0.5
        %v2228 = vmul.f32 %v2210, 0.5
        %v2229 = vmul.f32 %v2213, 0.5
        %v2230 = vmul.f32 %v2218, 0.5
        %v2231 = vmul.f32 %v2221, 0.5
        %v2232 = vmul.f32 %v2224, 1.442695
        %v2233 = vpow.pop %v2232
        %v2234 = vmul.f32 %v2225, 1.442695
        %v2235 = vpow.pop %v2234
        %v2236 = vmul.f32 %v2226, 1.442695
        %v2237 = vpow.pop %v2236
        %v2238 = vmul.f32 %v2227, 1.442695
        %v2239 = vpow.pop %v2238
        %v2240 = vmul.f32 %v2228, 1.442695
        %v2241 = vpow.pop %v2240
        %v2242 = vmul.f32 %v2229, 1.442695
        %v2243 = vpow.pop %v2242
        %v2244 = vmul.f32 %v2230, 1.442695
        %v2245 = vpow.pop %v2244
        %v2246 = vmul.f32 %v2231, 1.442695
        %v2247 = vpow.pop %v2246
        %2256 = vrot.lane.b32.xlu0 %v2233, 64
        %v2257 = vpop.permute.xlu0 %2256
        %2258 = vrot.lane.b32.xlu0 %v2235, 64
        %v2259 = vpop.permute.xlu0 %2258
        %2260 = vrot.lane.b32.xlu0 %v2237, 64
        %v2261 = vpop.permute.xlu0 %2260
        %2262 = vrot.lane.b32.xlu0 %v2239, 64
        %v2263 = vpop.permute.xlu0 %2262
        %2264 = vrot.lane.b32.xlu0 %v2241, 64
        %v2265 = vpop.permute.xlu0 %2264
        %2266 = vrot.lane.b32.xlu0 %v2243, 64
        %v2267 = vpop.permute.xlu0 %2266
        %2268 = vrot.lane.b32.xlu0 %v2245, 64
        %v2269 = vpop.permute.xlu0 %2268
        %2270 = vrot.lane.b32.xlu0 %v2247, 64
        %v2271 = vpop.permute.xlu0 %2270
        %v2280 = vmul.f32 %v1068, %v2257
        %v2281 = vmul.f32 %v1069, %v2259
        %v2282 = vmul.f32 %v1070, %v2261
        %v2283 = vmul.f32 %v1071, %v2263
        %v2284 = vmul.f32 %v1072, %v2265
        %v2285 = vmul.f32 %v1073, %v2267
        %v2286 = vmul.f32 %v1074, %v2269
        %v2287 = vmul.f32 %v1075, %v2271
        %2296 = vrot.lane.b32.xlu0 %v2280, 48
        %v2297 = vpop.permute.xlu0 %2296
        %2298 = vrot.lane.b32.xlu0 %v2281, 48
        %v2299 = vpop.permute.xlu0 %2298
        %2300 = vrot.lane.b32.xlu0 %v2282, 48
        %v2301 = vpop.permute.xlu0 %2300
        %2302 = vrot.lane.b32.xlu0 %v2283, 48
        %v2303 = vpop.permute.xlu0 %2302
        %2304 = vrot.lane.b32.xlu0 %v2284, 48
        %v2305 = vpop.permute.xlu0 %2304
        %2306 = vrot.lane.b32.xlu0 %v2285, 48
        %v2307 = vpop.permute.xlu0 %2306
        %2308 = vrot.lane.b32.xlu0 %v2286, 48
        %v2309 = vpop.permute.xlu0 %2308
        %2310 = vrot.lane.b32.xlu0 %v2287, 48
        %v2311 = vpop.permute.xlu0 %2310
        %v2320 = vadd.f32 %v2194, %v2297
        %v2321 = vadd.f32 %v2197, %v2299
        %v2322 = vadd.f32 %v2202, %v2301
        %v2323 = vadd.f32 %v2205, %v2303
        %v2324 = vadd.f32 %v2210, %v2305
        %v2325 = vadd.f32 %v2213, %v2307
        %v2326 = vadd.f32 %v2218, %v2309
        %v2327 = vadd.f32 %v2221, %v2311
        %v2328 = vpack.c.bf16 %v2321, %v2320
        %v2329 = vpack.c.bf16 %v2323, %v2322
        %v2330 = vpack.c.bf16 %v2325, %v2324
        %v2331 = vpack.c.bf16 %v2327, %v2326
        %v2332 = vld [vmem:[%s39] sm:$0xf]
        %v2333 = vld [vmem:[%s39 + $0x4] sm:$0xf]
        %v2334 = vld [vmem:[%s41] sm:$0x1]
        %v2336 = vlaneseq
        %v2337 = vshrl.u32 %v2336, 7
        %v2338 = vsub.s32 0, %v2337
        %v2339 = vrot.slane %v2334, %v2338
        %v2343 = vunpack.c.l.b16 %v2332
        %v2344 = vunpack.c.l.b16 %v2333
        %v2345 = vpack.c.b16 %v2344, %v2343
        %v2348 = vsel %vm1554, %v2328, 0
        %v2351 = vsel %vm1554, %v2329, 0
        %v2354 = vsel %vm1554, %v2330, 0
        %v2357 = vsel %vm1554, %v2331, 0
        %2359 = vmatprep.subr.bf16.mxu0 0
        %2360 = vmatpush1.bf16.msra.mxu0 %v2345
        %2361 = vmatprep.subr.bf16.mxu0 0
        %2362 = vmatpush1.bf16.msra.mxu0 0
        %2363 = vmatprep.subr.bf16.mxu0 0
        %2364 = vmatpush1.bf16.msra.mxu0 0
        %2365 = vmatprep.subr.bf16.mxu0 0
        %2366 = vmatpush1.bf16.msra.mxu0 0
        %2367 = vmatprep.subr.bf16.mxu0 0
        %2368 = vmatpush1.bf16.msra.mxu0 0
        %2369 = vmatprep.subr.bf16.mxu0 0
        %2370 = vmatpush1.bf16.msra.mxu0 0
        %2371 = vmatprep.subr.bf16.mxu0 0
        %2372 = vmatpush1.bf16.msra.mxu0 0
        %2373 = vmatprep.subr.bf16.mxu0 0
        %2374 = vmatpush1.bf16.msra.mxu0 0
        %2375 = vmatprep.subr.bf16.mxu0 0
        %2376 = vmatpush1.bf16.msra.mxu0 0
        %2377 = vmatprep.subr.bf16.mxu0 0
        %2378 = vmatpush1.bf16.msra.mxu0 0
        %2379 = vmatprep.subr.bf16.mxu0 0
        %2380 = vmatpush1.bf16.msra.mxu0 0
        %2381 = vmatprep.subr.bf16.mxu0 0
        %2382 = vmatpush1.bf16.msra.mxu0 0
        %2383 = vmatprep.subr.bf16.mxu0 0
        %2384 = vmatpush1.bf16.msra.mxu0 0
        %2385 = vmatprep.subr.bf16.mxu0 0
        %2386 = vmatpush1.bf16.msra.mxu0 0
        %2387 = vmatprep.subr.bf16.mxu0 0
        %2388 = vmatpush1.bf16.msra.mxu0 0
        %2389 = vmatprep.subr.bf16.mxu0 0
        %2390 = vmatpush1.bf16.msra.mxu0 0
        %2391 = vmatprep.mubr.bf16.mxu0 0
        %2392 = vmatmul.mubr.bf16.gmra.mrb[0].mxu0 %v2348
        %v2393 = vpop.f32.mrb[0].mxu0
        %v2394 = vadd.f32 %v2339, %v2393
        %v2395 = vpop.f32.mrb[0].mxu0
        %v2396 = vpop.f32.mrb[0].mxu0
        %v2397 = vadd.f32 %v2339, %v2396
        %v2398 = vpop.f32.mrb[0].mxu0
        %2399 = vmatprep.mubr.bf16.mxu0 0
        %2400 = vmatmul.mubr.bf16.gmra.mrb[0].mxu0 %v2351
        %v2401 = vpop.f32.mrb[0].mxu0
        %v2402 = vadd.f32 %v2339, %v2401
        %v2403 = vpop.f32.mrb[0].mxu0
        %v2404 = vpop.f32.mrb[0].mxu0
        %v2405 = vadd.f32 %v2339, %v2404
        %v2406 = vpop.f32.mrb[0].mxu0
        %2407 = vmatprep.mubr.bf16.mxu0 0
        %2408 = vmatmul.mubr.bf16.gmra.mrb[0].mxu0 %v2354
        %v2409 = vpop.f32.mrb[0].mxu0
        %v2410 = vadd.f32 %v2339, %v2409
        %v2411 = vpop.f32.mrb[0].mxu0
        %v2412 = vpop.f32.mrb[0].mxu0
        %v2413 = vadd.f32 %v2339, %v2412
        %v2414 = vpop.f32.mrb[0].mxu0
        %2415 = vmatprep.mubr.bf16.mxu0 0
        %2416 = vmatmul.mubr.bf16.gmra.mrb[0].mxu0 %v2357
        %v2417 = vpop.f32.mrb[0].mxu0
        %v2418 = vadd.f32 %v2339, %v2417
        %v2419 = vpop.f32.mrb[0].mxu0
        %v2420 = vpop.f32.mrb[0].mxu0
        %v2421 = vadd.f32 %v2339, %v2420
        %v2422 = vpop.f32.mrb[0].mxu0
        %2423 = vdwg.mxu0
        %v2424 = vmax.f32 %v2394, 0.0
        %v2425 = vmax.f32 %v2397, 0.0
        %v2426 = vmax.f32 %v2402, 0.0
        %v2427 = vmax.f32 %v2405, 0.0
        %v2428 = vmax.f32 %v2410, 0.0
        %v2429 = vmax.f32 %v2413, 0.0
        %v2430 = vmax.f32 %v2418, 0.0
        %v2431 = vmax.f32 %v2421, 0.0
        %v2432 = vpack.c.bf16 %v2425, %v2424
        %v2433 = vpack.c.bf16 %v2427, %v2426
        %v2434 = vpack.c.bf16 %v2429, %v2428
        %v2435 = vpack.c.bf16 %v2431, %v2430
        %v2436 = vld [vmem:[%s43] sm:$0xf]
        %v2437 = vld [vmem:[%s43 + $0x4] sm:$0xf]
        %v2438 = vld [vmem:[%s43 + $0x8] sm:$0xf]
        %v2439 = vld [vmem:[%s43 + $0xc] sm:$0xf]
        %v2440 = vld [vmem:[%s45] sm:$0x1]
        %v2442 = vlaneseq
        %v2443 = vshrl.u32 %v2442, 7
        %v2444 = vsub.s32 0, %v2443
        %v2445 = vrot.slane %v2440, %v2444
        %v2451 = vunpack.c.l.b16 %v2436
        %v2452 = vunpack.c.l.b16 %v2437
        %v2453 = vunpack.c.l.b16 %v2438
        %v2454 = vunpack.c.l.b16 %v2439
        %v2455 = vpack.c.b16 %v2452, %v2451
        %v2456 = vpack.c.b16 %v2454, %v2453
        %v2460 = vsel %vm1353, %v2432, 0
        %v2463 = vsel %vm1353, %v2433, 0
        %v2466 = vsel %vm1353, %v2434, 0
        %v2469 = vsel %vm1353, %v2435, 0
        %2471 = vmatprep.subr.bf16.mxu0 0
        %2472 = vmatpush1.bf16.msra.mxu0 %v2455
        %2473 = vmatprep.subr.bf16.mxu0 0
        %2474 = vmatpush1.bf16.msra.mxu0 %v2456
        %2475 = vmatprep.subr.bf16.mxu0 0
        %2476 = vmatpush1.bf16.msra.mxu0 0
        %2477 = vmatprep.subr.bf16.mxu0 0
        %2478 = vmatpush1.bf16.msra.mxu0 0
        %2479 = vmatprep.subr.bf16.mxu0 0
        %2480 = vmatpush1.bf16.msra.mxu0 0
        %2481 = vmatprep.subr.bf16.mxu0 0
        %2482 = vmatpush1.bf16.msra.mxu0 0
        %2483 = vmatprep.subr.bf16.mxu0 0
        %2484 = vmatpush1.bf16.msra.mxu0 0
        %2485 = vmatprep.subr.bf16.mxu0 0
        %2486 = vmatpush1.bf16.msra.mxu0 0
        %2487 = vmatprep.subr.bf16.mxu0 0
        %2488 = vmatpush1.bf16.msra.mxu0 0
        %2489 = vmatprep.subr.bf16.mxu0 0
        %2490 = vmatpush1.bf16.msra.mxu0 0
        %2491 = vmatprep.subr.bf16.mxu0 0
        %2492 = vmatpush1.bf16.msra.mxu0 0
        %2493 = vmatprep.subr.bf16.mxu0 0
        %2494 = vmatpush1.bf16.msra.mxu0 0
        %2495 = vmatprep.subr.bf16.mxu0 0
        %2496 = vmatpush1.bf16.msra.mxu0 0
        %2497 = vmatprep.subr.bf16.mxu0 0
        %2498 = vmatpush1.bf16.msra.mxu0 0
        %2499 = vmatprep.subr.bf16.mxu0 0
        %2500 = vmatpush1.bf16.msra.mxu0 0
        %2501 = vmatprep.subr.bf16.mxu0 0
        %2502 = vmatpush1.bf16.msra.mxu0 0
        %2503 = vmatprep.mubr.bf16.mxu0 0
        %2504 = vmatmul.mubr.bf16.gmra.mrb[0].mxu0 %v2460
        %v2505 = vpop.f32.mrb[0].mxu0
        %v2506 = vadd.f32 %v2445, %v2505
        %v2507 = vpop.f32.mrb[0].mxu0
        %v2508 = vpop.f32.mrb[0].mxu0
        %v2509 = vadd.f32 %v2445, %v2508
        %v2510 = vpop.f32.mrb[0].mxu0
        %2511 = vmatprep.mubr.bf16.mxu0 0
        %2512 = vmatmul.mubr.bf16.gmra.mrb[0].mxu0 %v2463
        %v2513 = vpop.f32.mrb[0].mxu0
        %v2514 = vadd.f32 %v2445, %v2513
        %v2515 = vpop.f32.mrb[0].mxu0
        %v2516 = vpop.f32.mrb[0].mxu0
        %v2517 = vadd.f32 %v2445, %v2516
        %v2518 = vpop.f32.mrb[0].mxu0
        %2519 = vmatprep.mubr.bf16.mxu0 0
        %2520 = vmatmul.mubr.bf16.gmra.mrb[0].mxu0 %v2466
        %v2521 = vpop.f32.mrb[0].mxu0
        %v2522 = vadd.f32 %v2445, %v2521
        %v2523 = vpop.f32.mrb[0].mxu0
        %v2524 = vpop.f32.mrb[0].mxu0
        %v2525 = vadd.f32 %v2445, %v2524
        %v2526 = vpop.f32.mrb[0].mxu0
        %2527 = vmatprep.mubr.bf16.mxu0 0
        %2528 = vmatmul.mubr.bf16.gmra.mrb[0].mxu0 %v2469
        %v2529 = vpop.f32.mrb[0].mxu0
        %v2530 = vadd.f32 %v2445, %v2529
        %v2531 = vpop.f32.mrb[0].mxu0
        %v2532 = vpop.f32.mrb[0].mxu0
        %v2533 = vadd.f32 %v2445, %v2532
        %v2534 = vpop.f32.mrb[0].mxu0
        %2535 = vdwg.mxu0
        %v2536 = vmax.f32 %v2506, 0.0
        %v2537 = vmax.f32 %v2509, 0.0
        %v2538 = vmax.f32 %v2514, 0.0
        %v2539 = vmax.f32 %v2517, 0.0
        %v2540 = vmax.f32 %v2522, 0.0
        %v2541 = vmax.f32 %v2525, 0.0
        %v2542 = vmax.f32 %v2530, 0.0
        %v2543 = vmax.f32 %v2533, 0.0
        %v2544 = vpack.c.bf16 %v2537, %v2536
        %v2545 = vpack.c.bf16 %v2539, %v2538
        %v2546 = vpack.c.bf16 %v2541, %v2540
        %v2547 = vpack.c.bf16 %v2543, %v2542
        %v2548 = vld [vmem:[%s47] sm:$0xf]
        %v2549 = vld [vmem:[%s47 + $0x4] sm:$0xf]
        %v2550 = vld [vmem:[%s47 + $0x8] sm:$0xf]
        %v2551 = vld [vmem:[%s47 + $0xc] sm:$0xf]
        %v2552 = vld [vmem:[%s47 + $0x10] sm:$0xf]
        %v2553 = vld [vmem:[%s47 + $0x14] sm:$0xf]
        %v2554 = vld [vmem:[%s47 + $0x18] sm:$0xf]
        %v2555 = vld [vmem:[%s47 + $0x1c] sm:$0xf]
        %v2556 = vld [vmem:[%s49] sm:$0x1]
        %v2558 = vlaneseq
        %v2559 = vshrl.u32 %v2558, 7
        %v2560 = vsub.s32 0, %v2559
        %v2561 = vrot.slane %v2556, %v2560
        %v2571 = vunpack.c.l.b16 %v2548
        %v2572 = vunpack.c.l.b16 %v2549
        %v2573 = vunpack.c.l.b16 %v2550
        %v2574 = vunpack.c.l.b16 %v2551
        %v2575 = vunpack.c.l.b16 %v2552
        %v2576 = vunpack.c.l.b16 %v2553
        %v2577 = vunpack.c.l.b16 %v2554
        %v2578 = vunpack.c.l.b16 %v2555
        %v2579 = vpack.c.b16 %v2572, %v2571
        %v2580 = vpack.c.b16 %v2574, %v2573
        %v2581 = vpack.c.b16 %v2576, %v2575
        %v2582 = vpack.c.b16 %v2578, %v2577
        %v2588 = vsel %vm1240, %v2544, 0
        %v2591 = vsel %vm1240, %v2545, 0
        %v2594 = vsel %vm1240, %v2546, 0
        %v2597 = vsel %vm1240, %v2547, 0
        %2599 = vmatprep.subr.bf16.mxu0 0
        %2600 = vmatpush1.bf16.msra.mxu0 %v2579
        %2601 = vmatprep.subr.bf16.mxu0 0
        %2602 = vmatpush1.bf16.msra.mxu0 %v2580
        %2603 = vmatprep.subr.bf16.mxu0 0
        %2604 = vmatpush1.bf16.msra.mxu0 %v2581
        %2605 = vmatprep.subr.bf16.mxu0 0
        %2606 = vmatpush1.bf16.msra.mxu0 %v2582
        %2607 = vmatprep.subr.bf16.mxu0 0
        %2608 = vmatpush1.bf16.msra.mxu0 0
        %2609 = vmatprep.subr.bf16.mxu0 0
        %2610 = vmatpush1.bf16.msra.mxu0 0
        %2611 = vmatprep.subr.bf16.mxu0 0
        %2612 = vmatpush1.bf16.msra.mxu0 0
        %2613 = vmatprep.subr.bf16.mxu0 0
        %2614 = vmatpush1.bf16.msra.mxu0 0
        %2615 = vmatprep.subr.bf16.mxu0 0
        %2616 = vmatpush1.bf16.msra.mxu0 0
        %2617 = vmatprep.subr.bf16.mxu0 0
        %2618 = vmatpush1.bf16.msra.mxu0 0
        %2619 = vmatprep.subr.bf16.mxu0 0
        %2620 = vmatpush1.bf16.msra.mxu0 0
        %2621 = vmatprep.subr.bf16.mxu0 0
        %2622 = vmatpush1.bf16.msra.mxu0 0
        %2623 = vmatprep.subr.bf16.mxu0 0
        %2624 = vmatpush1.bf16.msra.mxu0 0
        %2625 = vmatprep.subr.bf16.mxu0 0
        %2626 = vmatpush1.bf16.msra.mxu0 0
        %2627 = vmatprep.subr.bf16.mxu0 0
        %2628 = vmatpush1.bf16.msra.mxu0 0
        %2629 = vmatprep.subr.bf16.mxu0 0
        %2630 = vmatpush1.bf16.msra.mxu0 0
        %2631 = vmatprep.mubr.bf16.mxu0 0
        %2632 = vmatmul.mubr.bf16.gmra.mrb[0].mxu0 %v2588
        %v2633 = vpop.f32.mrb[0].mxu0
        %v2634 = vadd.f32 %v2561, %v2633
        %v2635 = vpop.f32.mrb[0].mxu0
        %v2636 = vpop.f32.mrb[0].mxu0
        %v2637 = vadd.f32 %v2561, %v2636
        %v2638 = vpop.f32.mrb[0].mxu0
        %2639 = vmatprep.mubr.bf16.mxu0 0
        %2640 = vmatmul.mubr.bf16.gmra.mrb[0].mxu0 %v2591
        %v2641 = vpop.f32.mrb[0].mxu0
        %v2642 = vadd.f32 %v2561, %v2641
        %v2643 = vpop.f32.mrb[0].mxu0
        %v2644 = vpop.f32.mrb[0].mxu0
        %v2645 = vadd.f32 %v2561, %v2644
        %v2646 = vpop.f32.mrb[0].mxu0
        %2647 = vmatprep.mubr.bf16.mxu0 0
        %2648 = vmatmul.mubr.bf16.gmra.mrb[0].mxu0 %v2594
        %v2649 = vpop.f32.mrb[0].mxu0
        %v2650 = vadd.f32 %v2561, %v2649
        %v2651 = vpop.f32.mrb[0].mxu0
        %v2652 = vpop.f32.mrb[0].mxu0
        %v2653 = vadd.f32 %v2561, %v2652
        %v2654 = vpop.f32.mrb[0].mxu0
        %2655 = vmatprep.mubr.bf16.mxu0 0
        %2656 = vmatmul.mubr.bf16.gmra.mrb[0].mxu0 %v2597
        %v2657 = vpop.f32.mrb[0].mxu0
        %v2658 = vadd.f32 %v2561, %v2657
        %v2659 = vpop.f32.mrb[0].mxu0
        %v2660 = vpop.f32.mrb[0].mxu0
        %v2661 = vadd.f32 %v2561, %v2660
        %v2662 = vpop.f32.mrb[0].mxu0
        %2663 = vdwg.mxu0
        %v2664 = vpack.c.bf16 %v1404, %v1401
        %v2665 = vpack.c.bf16 %v1412, %v1409
        %v2666 = vpack.c.bf16 %v1420, %v1417
        %v2667 = vpack.c.bf16 %v1428, %v1425
        %v2668 = vld [vmem:[%s51] sm:$0xf]
        %v2669 = vld [vmem:[%s51 + $0x4] sm:$0xf]
        %v2670 = vpack.c.bf16 %v2197, %v2194
        %v2671 = vpack.c.bf16 %v2205, %v2202
        %v2672 = vpack.c.bf16 %v2213, %v2210
        %v2673 = vpack.c.bf16 %v2221, %v2218
        %v2674 = vld [vmem:[%s53] sm:$0xf]
        %v2675 = vld [vmem:[%s53 + $0x4] sm:$0xf]
        %v2678 = vunpack.c.l.b16 %v2674
        %v2679 = vunpack.c.l.b16 %v2675
        %v2680 = vpack.c.b16 %v2679, %v2678
        %v2683 = vsel %vm1554, %v2670, 0
        %v2686 = vsel %vm1554, %v2671, 0
        %v2689 = vsel %vm1554, %v2672, 0
        %v2692 = vsel %vm1554, %v2673, 0
        %2694 = vmatprep.subr.bf16.mxu0 0
        %2695 = vmatpush1.bf16.msra.mxu0 %v2680
        %2696 = vmatprep.subr.bf16.mxu0 0
        %2697 = vmatpush1.bf16.msra.mxu0 0
        %2698 = vmatprep.subr.bf16.mxu0 0
        %2699 = vmatpush1.bf16.msra.mxu0 0
        %2700 = vmatprep.subr.bf16.mxu0 0
        %2701 = vmatpush1.bf16.msra.mxu0 0
        %2702 = vmatprep.subr.bf16.mxu0 0
        %2703 = vmatpush1.bf16.msra.mxu0 0
        %2704 = vmatprep.subr.bf16.mxu0 0
        %2705 = vmatpush1.bf16.msra.mxu0 0
        %2706 = vmatprep.subr.bf16.mxu0 0
        %2707 = vmatpush1.bf16.msra.mxu0 0
        %2708 = vmatprep.subr.bf16.mxu0 0
        %2709 = vmatpush1.bf16.msra.mxu0 0
        %2710 = vmatprep.subr.bf16.mxu0 0
        %2711 = vmatpush1.bf16.msra.mxu0 0
        %2712 = vmatprep.subr.bf16.mxu0 0
        %2713 = vmatpush1.bf16.msra.mxu0 0
        %2714 = vmatprep.subr.bf16.mxu0 0
        %2715 = vmatpush1.bf16.msra.mxu0 0
        %2716 = vmatprep.subr.bf16.mxu0 0
        %2717 = vmatpush1.bf16.msra.mxu0 0
        %2718 = vmatprep.subr.bf16.mxu0 0
        %2719 = vmatpush1.bf16.msra.mxu0 0
        %2720 = vmatprep.subr.bf16.mxu0 0
        %2721 = vmatpush1.bf16.msra.mxu0 0
        %2722 = vmatprep.subr.bf16.mxu0 0
        %2723 = vmatpush1.bf16.msra.mxu0 0
        %2724 = vmatprep.subr.bf16.mxu0 0
        %2725 = vmatpush1.bf16.msra.mxu0 0
        %2726 = vmatprep.mubr.bf16.mxu0 0
        %2727 = vmatmul.mubr.bf16.gmra.mrb[0].mxu0 %v2683
        %v2728 = vpop.f32.mrb[0].mxu0
        %v2729 = vadd.f32 0.0, %v2728
        %v2730 = vpop.f32.mrb[0].mxu0
        %v2731 = vpop.f32.mrb[0].mxu0
        %v2732 = vadd.f32 0.0, %v2731
        %v2733 = vpop.f32.mrb[0].mxu0
        %2734 = vmatprep.mubr.bf16.mxu0 0
        %2735 = vmatmul.mubr.bf16.gmra.mrb[0].mxu0 %v2686
        %v2736 = vpop.f32.mrb[0].mxu0
        %v2737 = vadd.f32 0.0, %v2736
        %v2738 = vpop.f32.mrb[0].mxu0
        %v2739 = vpop.f32.mrb[0].mxu0
        %v2740 = vadd.f32 0.0, %v2739
        %v2741 = vpop.f32.mrb[0].mxu0
        %2742 = vmatprep.mubr.bf16.mxu0 0
        %2743 = vmatmul.mubr.bf16.gmra.mrb[0].mxu0 %v2689
        %v2744 = vpop.f32.mrb[0].mxu0
        %v2745 = vadd.f32 0.0, %v2744
        %v2746 = vpop.f32.mrb[0].mxu0
        %v2747 = vpop.f32.mrb[0].mxu0
        %v2748 = vadd.f32 0.0, %v2747
        %v2749 = vpop.f32.mrb[0].mxu0
        %2750 = vmatprep.mubr.bf16.mxu0 0
        %2751 = vmatmul.mubr.bf16.gmra.mrb[0].mxu0 %v2692
        %v2752 = vpop.f32.mrb[0].mxu0
        %v2753 = vadd.f32 0.0, %v2752
        %v2754 = vpop.f32.mrb[0].mxu0
        %v2755 = vpop.f32.mrb[0].mxu0
        %v2756 = vadd.f32 0.0, %v2755
        %v2757 = vpop.f32.mrb[0].mxu0
        %2758 = vdwg.mxu0
        %v2761 = vunpack.c.l.b16 %v2668
        %v2762 = vunpack.c.l.b16 %v2669
        %v2763 = vpack.c.b16 %v2762, %v2761
        %v2766 = vsel %vm1554, %v2664, 0
        %v2769 = vsel %vm1554, %v2665, 0
        %v2772 = vsel %vm1554, %v2666, 0
        %v2775 = vsel %vm1554, %v2667, 0
        %2777 = vmatprep.subr.bf16.mxu0 0
        %2778 = vmatpush1.bf16.msra.mxu0 %v2763
        %2779 = vmatprep.subr.bf16.mxu0 0
        %2780 = vmatpush1.bf16.msra.mxu0 0
        %2781 = vmatprep.subr.bf16.mxu0 0
        %2782 = vmatpush1.bf16.msra.mxu0 0
        %2783 = vmatprep.subr.bf16.mxu0 0
        %2784 = vmatpush1.bf16.msra.mxu0 0
        %2785 = vmatprep.subr.bf16.mxu0 0
        %2786 = vmatpush1.bf16.msra.mxu0 0
        %2787 = vmatprep.subr.bf16.mxu0 0
        %2788 = vmatpush1.bf16.msra.mxu0 0
        %2789 = vmatprep.subr.bf16.mxu0 0
        %2790 = vmatpush1.bf16.msra.mxu0 0
        %2791 = vmatprep.subr.bf16.mxu0 0
        %2792 = vmatpush1.bf16.msra.mxu0 0
        %2793 = vmatprep.subr.bf16.mxu0 0
        %2794 = vmatpush1.bf16.msra.mxu0 0
        %2795 = vmatprep.subr.bf16.mxu0 0
        %2796 = vmatpush1.bf16.msra.mxu0 0
        %2797 = vmatprep.subr.bf16.mxu0 0
        %2798 = vmatpush1.bf16.msra.mxu0 0
        %2799 = vmatprep.subr.bf16.mxu0 0
        %2800 = vmatpush1.bf16.msra.mxu0 0
        %2801 = vmatprep.subr.bf16.mxu0 0
        %2802 = vmatpush1.bf16.msra.mxu0 0
        %2803 = vmatprep.subr.bf16.mxu0 0
        %2804 = vmatpush1.bf16.msra.mxu0 0
        %2805 = vmatprep.subr.bf16.mxu0 0
        %2806 = vmatpush1.bf16.msra.mxu0 0
        %2807 = vmatprep.subr.bf16.mxu0 0
        %2808 = vmatpush1.bf16.msra.mxu0 0
        %2809 = vmatprep.mubr.bf16.mxu0 0
        %2810 = vmatmul.mubr.bf16.gmra.mrb[0].mxu0 %v2766
        %v2811 = vpop.f32.mrb[0].mxu0
        %v2812 = vadd.f32 %v2729, %v2811
        %v2813 = vpop.f32.mrb[0].mxu0
        %v2814 = vpop.f32.mrb[0].mxu0
        %v2815 = vadd.f32 %v2732, %v2814
        %v2816 = vpop.f32.mrb[0].mxu0
        %2817 = vmatprep.mubr.bf16.mxu0 0
        %2818 = vmatmul.mubr.bf16.gmra.mrb[0].mxu0 %v2769
        %v2819 = vpop.f32.mrb[0].mxu0
        %v2820 = vadd.f32 %v2737, %v2819
        %v2821 = vpop.f32.mrb[0].mxu0
        %v2822 = vpop.f32.mrb[0].mxu0
        %v2823 = vadd.f32 %v2740, %v2822
        %v2824 = vpop.f32.mrb[0].mxu0
        %2825 = vmatprep.mubr.bf16.mxu0 0
        %2826 = vmatmul.mubr.bf16.gmra.mrb[0].mxu0 %v2772
        %v2827 = vpop.f32.mrb[0].mxu0
        %v2828 = vadd.f32 %v2745, %v2827
        %v2829 = vpop.f32.mrb[0].mxu0
        %v2830 = vpop.f32.mrb[0].mxu0
        %v2831 = vadd.f32 %v2748, %v2830
        %v2832 = vpop.f32.mrb[0].mxu0
        %2833 = vmatprep.mubr.bf16.mxu0 0
        %2834 = vmatmul.mubr.bf16.gmra.mrb[0].mxu0 %v2775
        %v2835 = vpop.f32.mrb[0].mxu0
        %v2836 = vadd.f32 %v2753, %v2835
        %v2837 = vpop.f32.mrb[0].mxu0
        %v2838 = vpop.f32.mrb[0].mxu0
        %v2839 = vadd.f32 %v2756, %v2838
        %v2840 = vpop.f32.mrb[0].mxu0
        %2841 = vdwg.mxu0
        %v2842 = vld [vmem:[%s55] sm:$0x1]
        %v2844 = vlaneseq
        %v2845 = vshrl.u32 %v2844, 7
        %v2846 = vsub.s32 0, %v2845
        %v2847 = vrot.slane %v2842, %v2846
        %v2849 = vadd.f32 %v2812, %v2847
        %v2850 = vadd.f32 %v2815, %v2847
        %v2851 = vadd.f32 %v2820, %v2847
        %v2852 = vadd.f32 %v2823, %v2847
        %v2853 = vadd.f32 %v2828, %v2847
        %v2854 = vadd.f32 %v2831, %v2847
        %v2855 = vadd.f32 %v2836, %v2847
        %v2856 = vadd.f32 %v2839, %v2847
        %v2857 = vmax.f32 %v2849, 0.0
        %v2858 = vmax.f32 %v2850, 0.0
        %v2859 = vmax.f32 %v2851, 0.0
        %v2860 = vmax.f32 %v2852, 0.0
        %v2861 = vmax.f32 %v2853, 0.0
        %v2862 = vmax.f32 %v2854, 0.0
        %v2863 = vmax.f32 %v2855, 0.0
        %v2864 = vmax.f32 %v2856, 0.0
        %v2865 = vpack.c.bf16 %v2858, %v2857
        %v2866 = vpack.c.bf16 %v2860, %v2859
        %v2867 = vpack.c.bf16 %v2862, %v2861
        %v2868 = vpack.c.bf16 %v2864, %v2863
        %v2869 = vld [vmem:[%s57] sm:$0xf]
        %v2870 = vld [vmem:[%s57 + $0x4] sm:$0xf]
        %v2871 = vld [vmem:[%s57 + $0x8] sm:$0xf]
        %v2872 = vld [vmem:[%s57 + $0xc] sm:$0xf]
        %v2873 = vld [vmem:[%s59] sm:$0x1]
        %v2875 = vlaneseq
        %v2876 = vshrl.u32 %v2875, 7
        %v2877 = vsub.s32 0, %v2876
        %v2878 = vrot.slane %v2873, %v2877
        %v2884 = vunpack.c.l.b16 %v2869
        %v2885 = vunpack.c.l.b16 %v2870
        %v2886 = vunpack.c.l.b16 %v2871
        %v2887 = vunpack.c.l.b16 %v2872
        %v2888 = vpack.c.b16 %v2885, %v2884
        %v2889 = vpack.c.b16 %v2887, %v2886
        %v2893 = vsel %vm1353, %v2865, 0
        %v2896 = vsel %vm1353, %v2866, 0
        %v2899 = vsel %vm1353, %v2867, 0
        %v2902 = vsel %vm1353, %v2868, 0
        %2904 = vmatprep.subr.bf16.mxu0 0
        %2905 = vmatpush1.bf16.msra.mxu0 %v2888
        %2906 = vmatprep.subr.bf16.mxu0 0
        %2907 = vmatpush1.bf16.msra.mxu0 %v2889
        %2908 = vmatprep.subr.bf16.mxu0 0
        %2909 = vmatpush1.bf16.msra.mxu0 0
        %2910 = vmatprep.subr.bf16.mxu0 0
        %2911 = vmatpush1.bf16.msra.mxu0 0
        %2912 = vmatprep.subr.bf16.mxu0 0
        %2913 = vmatpush1.bf16.msra.mxu0 0
        %2914 = vmatprep.subr.bf16.mxu0 0
        %2915 = vmatpush1.bf16.msra.mxu0 0
        %2916 = vmatprep.subr.bf16.mxu0 0
        %2917 = vmatpush1.bf16.msra.mxu0 0
        %2918 = vmatprep.subr.bf16.mxu0 0
        %2919 = vmatpush1.bf16.msra.mxu0 0
        %2920 = vmatprep.subr.bf16.mxu0 0
        %2921 = vmatpush1.bf16.msra.mxu0 0
        %2922 = vmatprep.subr.bf16.mxu0 0
        %2923 = vmatpush1.bf16.msra.mxu0 0
        %2924 = vmatprep.subr.bf16.mxu0 0
        %2925 = vmatpush1.bf16.msra.mxu0 0
        %2926 = vmatprep.subr.bf16.mxu0 0
        %2927 = vmatpush1.bf16.msra.mxu0 0
        %2928 = vmatprep.subr.bf16.mxu0 0
        %2929 = vmatpush1.bf16.msra.mxu0 0
        %2930 = vmatprep.subr.bf16.mxu0 0
        %2931 = vmatpush1.bf16.msra.mxu0 0
        %2932 = vmatprep.subr.bf16.mxu0 0
        %2933 = vmatpush1.bf16.msra.mxu0 0
        %2934 = vmatprep.subr.bf16.mxu0 0
        %2935 = vmatpush1.bf16.msra.mxu0 0
        %2936 = vmatprep.mubr.bf16.mxu0 0
        %2937 = vmatmul.mubr.bf16.gmra.mrb[0].mxu0 %v2893
        %v2938 = vpop.f32.mrb[0].mxu0
        %v2939 = vadd.f32 %v2878, %v2938
        %v2940 = vpop.f32.mrb[0].mxu0
        %v2941 = vpop.f32.mrb[0].mxu0
        %v2942 = vadd.f32 %v2878, %v2941
        %v2943 = vpop.f32.mrb[0].mxu0
        %2944 = vmatprep.mubr.bf16.mxu0 0
        %2945 = vmatmul.mubr.bf16.gmra.mrb[0].mxu0 %v2896
        %v2946 = vpop.f32.mrb[0].mxu0
        %v2947 = vadd.f32 %v2878, %v2946
        %v2948 = vpop.f32.mrb[0].mxu0
        %v2949 = vpop.f32.mrb[0].mxu0
        %v2950 = vadd.f32 %v2878, %v2949
        %v2951 = vpop.f32.mrb[0].mxu0
        %2952 = vmatprep.mubr.bf16.mxu0 0
        %2953 = vmatmul.mubr.bf16.gmra.mrb[0].mxu0 %v2899
        %v2954 = vpop.f32.mrb[0].mxu0
        %v2955 = vadd.f32 %v2878, %v2954
        %v2956 = vpop.f32.mrb[0].mxu0
        %v2957 = vpop.f32.mrb[0].mxu0
        %v2958 = vadd.f32 %v2878, %v2957
        %v2959 = vpop.f32.mrb[0].mxu0
        %2960 = vmatprep.mubr.bf16.mxu0 0
        %2961 = vmatmul.mubr.bf16.gmra.mrb[0].mxu0 %v2902
        %v2962 = vpop.f32.mrb[0].mxu0
        %v2963 = vadd.f32 %v2878, %v2962
        %v2964 = vpop.f32.mrb[0].mxu0
        %v2965 = vpop.f32.mrb[0].mxu0
        %v2966 = vadd.f32 %v2878, %v2965
        %v2967 = vpop.f32.mrb[0].mxu0
        %2968 = vdwg.mxu0
        %v2969 = vmax.f32 %v2939, 0.0
        %v2970 = vmax.f32 %v2942, 0.0
        %v2971 = vmax.f32 %v2947, 0.0
        %v2972 = vmax.f32 %v2950, 0.0
        %v2973 = vmax.f32 %v2955, 0.0
        %v2974 = vmax.f32 %v2958, 0.0
        %v2975 = vmax.f32 %v2963, 0.0
        %v2976 = vmax.f32 %v2966, 0.0
        %v2977 = vpack.c.bf16 %v2970, %v2969
        %v2978 = vpack.c.bf16 %v2972, %v2971
        %v2979 = vpack.c.bf16 %v2974, %v2973
        %v2980 = vpack.c.bf16 %v2976, %v2975
        %v2981 = vunpack.c.l.bf16 %v2977
        %v2982 = vunpack.c.h.bf16 %v2977
        %v2983 = vunpack.c.l.bf16 %v2978
        %v2984 = vunpack.c.h.bf16 %v2978
        %v2985 = vunpack.c.l.bf16 %v2979
        %v2986 = vunpack.c.h.bf16 %v2979
        %v2987 = vunpack.c.l.bf16 %v2980
        %v2988 = vunpack.c.h.bf16 %v2980
        %v2989 = vld [vmem:[%s61] sm:$0x1]
        %v2991 = vlaneseq
        %v2992 = vshrl.u32 %v2991, 7
        %v2993 = vsub.s32 0, %v2992
        %v2994 = vrot.slane %v2989, %v2993
        %v2996 = vmul.f32 %v2981, %v2994
        %v2997 = vmul.f32 %v2982, %v2994
        %v2998 = vmul.f32 %v2983, %v2994
        %v2999 = vmul.f32 %v2984, %v2994
        %v3000 = vmul.f32 %v2985, %v2994
        %v3001 = vmul.f32 %v2986, %v2994
        %v3002 = vmul.f32 %v2987, %v2994
        %v3003 = vmul.f32 %v2988, %v2994
        %v3004 = vsel %vm1353, %v2996, 0.0
        %3005 = vadd.xlane.f32.xlu0 %v3004
        %v3006 = vpop.xlane.xlu0 %3005
        %v3007 = vsel %vm1353, %v2997, 0.0
        %3008 = vadd.xlane.f32.xlu0 %v3007
        %v3009 = vpop.xlane.xlu0 %3008
        %v3010 = vsel %vm1353, %v2998, 0.0
        %3011 = vadd.xlane.f32.xlu0 %v3010
        %v3012 = vpop.xlane.xlu0 %3011
        %v3013 = vsel %vm1353, %v2999, 0.0
        %3014 = vadd.xlane.f32.xlu0 %v3013
        %v3015 = vpop.xlane.xlu0 %3014
        %v3016 = vsel %vm1353, %v3000, 0.0
        %3017 = vadd.xlane.f32.xlu0 %v3016
        %v3018 = vpop.xlane.xlu0 %3017
        %v3019 = vsel %vm1353, %v3001, 0.0
        %3020 = vadd.xlane.f32.xlu0 %v3019
        %v3021 = vpop.xlane.xlu0 %3020
        %v3022 = vsel %vm1353, %v3002, 0.0
        %3023 = vadd.xlane.f32.xlu0 %v3022
        %v3024 = vpop.xlane.xlu0 %3023
        %v3025 = vsel %vm1353, %v3003, 0.0
        %3026 = vadd.xlane.f32.xlu0 %v3025
        %v3027 = vpop.xlane.xlu0 %3026
        %v3028 = vld [vmem:[#allocation2] sm:$0x1]
        %v3030 = vlaneseq
        %v3031 = vshrl.u32 %v3030, 7
        %v3032 = vsub.s32 0, %v3031
        %v3033 = vrot.slane %v3028, %v3032
        %v3035 = vadd.f32 %v3006, %v3033
        %v3036 = vadd.f32 %v3009, %v3033
        %v3037 = vadd.f32 %v3012, %v3033
        %v3038 = vadd.f32 %v3015, %v3033
        %v3039 = vadd.f32 %v3018, %v3033
        %v3040 = vadd.f32 %v3021, %v3033
        %v3041 = vadd.f32 %v3024, %v3033
        %v3042 = vadd.f32 %v3027, %v3033
        %3051 = vrot.lane.b32.xlu0 %v1401, 1
        %v3052 = vpop.permute.xlu0 %3051
        %3053 = vrot.lane.b32.xlu0 %v1404, 1
        %v3054 = vpop.permute.xlu0 %3053
        %3055 = vrot.lane.b32.xlu0 %v1409, 1
        %v3056 = vpop.permute.xlu0 %3055
        %3057 = vrot.lane.b32.xlu0 %v1412, 1
        %v3058 = vpop.permute.xlu0 %3057
        %3059 = vrot.lane.b32.xlu0 %v1417, 1
        %v3060 = vpop.permute.xlu0 %3059
        %3061 = vrot.lane.b32.xlu0 %v1420, 1
        %v3062 = vpop.permute.xlu0 %3061
        %3063 = vrot.lane.b32.xlu0 %v1425, 1
        %v3064 = vpop.permute.xlu0 %3063
        %3065 = vrot.lane.b32.xlu0 %v1428, 1
        %v3066 = vpop.permute.xlu0 %3065
        %3083 = vrot.lane.b32.xlu0 %v2194, 33
        %v3084 = vpop.permute.xlu0 %3083
        %3085 = vrot.lane.b32.xlu0 %v2197, 33
        %v3086 = vpop.permute.xlu0 %3085
        %3087 = vrot.lane.b32.xlu0 %v2202, 33
        %v3088 = vpop.permute.xlu0 %3087
        %3089 = vrot.lane.b32.xlu0 %v2205, 33
        %v3090 = vpop.permute.xlu0 %3089
        %3091 = vrot.lane.b32.xlu0 %v2210, 33
        %v3092 = vpop.permute.xlu0 %3091
        %3093 = vrot.lane.b32.xlu0 %v2213, 33
        %v3094 = vpop.permute.xlu0 %3093
        %3095 = vrot.lane.b32.xlu0 %v2218, 33
        %v3096 = vpop.permute.xlu0 %3095
        %3097 = vrot.lane.b32.xlu0 %v2221, 33
        %v3098 = vpop.permute.xlu0 %3097
        %vm3107 = vcmask 7168
        %v3108 = vsel %vm3107, %v3035, %v3052
        %v3109 = vsel %vm3107, %v3036, %v3054
        %v3110 = vsel %vm3107, %v3037, %v3056
        %v3111 = vsel %vm3107, %v3038, %v3058
        %v3112 = vsel %vm3107, %v3039, %v3060
        %v3113 = vsel %vm3107, %v3040, %v3062
        %v3114 = vsel %vm3107, %v3041, %v3064
        %v3115 = vsel %vm3107, %v3042, %v3066
        %vm3116 = vcmask 269312
        %v3117 = vsel %vm3116, %v3108, %v3084
        %v3118 = vsel %vm3116, %v3109, %v3086
        %v3119 = vsel %vm3116, %v3110, %v3088
        %v3120 = vsel %vm3116, %v3111, %v3090
        %v3121 = vsel %vm3116, %v3112, %v3092
        %v3122 = vsel %vm3116, %v3113, %v3094
        %v3123 = vsel %vm3116, %v3114, %v3096
        %v3124 = vsel %vm3116, %v3115, %v3098
        %vm3125 = vcmask 531456
        %v3126 = vsel %vm3125, %v3117, 0.0
        %v3127 = vsel %vm3125, %v3118, 0.0
        %v3128 = vsel %vm3125, %v3119, 0.0
        %v3129 = vsel %vm3125, %v3120, 0.0
        %v3130 = vsel %vm3125, %v3121, 0.0
        %v3131 = vsel %vm3125, %v3122, 0.0
        %v3132 = vsel %vm3125, %v3123, 0.0
        %v3133 = vsel %vm3125, %v3124, 0.0
        %3134 = vst [vmem:[%s1044] sm:$0xff] %v3126
        %3135 = vst [vmem:[%s1044 + $0x8] sm:$0xff] %v3127
        %3136 = vst [vmem:[%s1044 + $0x10] sm:$0xff] %v3128
        %3137 = vst [vmem:[%s1044 + $0x18] sm:$0xff] %v3129
        %3138 = vst [vmem:[%s1044 + $0x20] sm:$0xff] %v3130
        %3139 = vst [vmem:[%s1044 + $0x28] sm:$0xff] %v3131
        %3140 = vst [vmem:[%s1044 + $0x30] sm:$0xff] %v3132
        %3141 = vst [vmem:[%s1044 + $0x38] sm:$0xff] %v3133
        %3150 = vrot.lane.b32.xlu0 %v2634, 40
        %v3151 = vpop.permute.xlu0 %3150
        %3152 = vrot.lane.b32.xlu0 %v2637, 40
        %v3153 = vpop.permute.xlu0 %3152
        %3154 = vrot.lane.b32.xlu0 %v2642, 40
        %v3155 = vpop.permute.xlu0 %3154
        %3156 = vrot.lane.b32.xlu0 %v2645, 40
        %v3157 = vpop.permute.xlu0 %3156
        %3158 = vrot.lane.b32.xlu0 %v2650, 40
        %v3159 = vpop.permute.xlu0 %3158
        %3160 = vrot.lane.b32.xlu0 %v2653, 40
        %v3161 = vpop.permute.xlu0 %3160
        %3162 = vrot.lane.b32.xlu0 %v2658, 40
        %v3163 = vpop.permute.xlu0 %3162
        %3164 = vrot.lane.b32.xlu0 %v2661, 40
        %v3165 = vpop.permute.xlu0 %3164
        %v3174 = vsel %vm1107, %v1842, %v3151
        %v3175 = vsel %vm1107, %v1845, %v3153
        %v3176 = vsel %vm1107, %v1850, %v3155
        %v3177 = vsel %vm1107, %v1853, %v3157
        %v3178 = vsel %vm1107, %v1858, %v3159
        %v3179 = vsel %vm1107, %v1861, %v3161
        %v3180 = vsel %vm1107, %v1866, %v3163
        %v3181 = vsel %vm1107, %v1869, %v3165
        %v3182 = vsel %vm1240, %v3174, 0.0
        %v3183 = vsel %vm1240, %v3175, 0.0
        %v3184 = vsel %vm1240, %v3176, 0.0
        %v3185 = vsel %vm1240, %v3177, 0.0
        %v3186 = vsel %vm1240, %v3178, 0.0
        %v3187 = vsel %vm1240, %v3179, 0.0
        %v3188 = vsel %vm1240, %v3180, 0.0
        %v3189 = vsel %vm1240, %v3181, 0.0
        %v3190 = vpack.c.bf16 %v3183, %v3182
        %v3191 = vpack.c.bf16 %v3185, %v3184
        %v3192 = vpack.c.bf16 %v3187, %v3186
        %v3193 = vpack.c.bf16 %v3189, %v3188
        %v3198 = vunpack.c.l.b16 %v3190
        %v3199 = vunpack.c.h.b16 %v3190
        %v3200 = vunpack.c.l.b16 %v3191
        %v3201 = vunpack.c.h.b16 %v3191
        %v3202 = vunpack.c.l.b16 %v3192
        %v3203 = vunpack.c.h.b16 %v3192
        %v3204 = vunpack.c.l.b16 %v3193
        %v3205 = vunpack.c.h.b16 %v3193
        %v3206 = vpack.c.b16 %v3198, %v3198
        %v3207 = vpack.c.b16 %v3199, %v3199
        %v3208 = vpack.c.b16 %v3200, %v3200
        %v3209 = vpack.c.b16 %v3201, %v3201
        %v3210 = vpack.c.b16 %v3202, %v3202
        %v3211 = vpack.c.b16 %v3203, %v3203
        %v3212 = vpack.c.b16 %v3204, %v3204
        %v3213 = vpack.c.b16 %v3205, %v3205
        %3222 = vst [vmem:[%s1051] sm:$0xf] %v3206
        %3223 = vst [vmem:[%s1051 + $0x4] sm:$0xf] %v3207
        %3224 = vst [vmem:[%s1051 + $0x8] sm:$0xf] %v3208
        %3225 = vst [vmem:[%s1051 + $0xc] sm:$0xf] %v3209
        %3226 = vst [vmem:[%s1051 + $0x10] sm:$0xf] %v3210
        %3227 = vst [vmem:[%s1051 + $0x14] sm:$0xf] %v3211
        %3228 = vst [vmem:[%s1051 + $0x18] sm:$0xf] %v3212
        %3229 = vst [vmem:[%s1051 + $0x1c] sm:$0xf] %v3213
        %s3230 = sand.u32 %s775, 1
        %s3231 = scalar_lea.sflag [#allocation5], %s3230
        %s3232 = sand.u32 %s775, 1
        %s3233 = smul.addr %s3232, 64
        %s3234 = scalar_lea.vmem [#allocation6], %s3233
        %s3235 = sand.u32 %s801, 1
        %s3236 = scalar_lea.sflag [#allocation8], %s3235
        %s3237 = sand.u32 %s801, 1
        %s3238 = smul.addr %s3237, 32
        %s3239 = scalar_lea.vmem [#allocation7], %s3238
        // Predicated region
        $region153: #{tpu_custom_call.1} parent=147 // pred_check
          %p3240 = pneg %p785
        $region154: #{tpu_custom_call.1} parent=147 // pred_check_branch
          %3242 = sbr.rel (%p3240) target = $region156
        $region155: #{tpu_custom_call.1} parent=147 // pred_region
          %s3243 = smul.u32 8, %s90
          %s3244 = ssub.s32 63, %s3243
          %p3245 = scmp.lt.s32.totalorder %s3244, 8
          %s3246 = scalar_select %p3245, %s3244, 8
          %s3247 = smul.u32 128, %s3246
          %s3249 = ssub.s32 1024, %s3247
          %3250 = vsyncadd %s3231, %s3249
          %p3251 = scmp.ne.s32.totalorder 0, %s3247
          %s3252 = smul.addr %s3243, 128
          %s3253 = scalar_lea.hbm %s65, %s3252
          %s3254 = smul.u32 8, %s3246
          %s3255 = sshll.u32 %s3234, 4
          %s3256 = int_to_ptr.vmem [resolvable:$true] %s3255
          %s3257 = sshll.u32 %s3254, 4
          %3261 = dma.vmem_to_hbm [thread:$0]  (%p3251), %s3256, %s3257, %s3253, %s3231, 128, 128, 8
        $region156: #{tpu_custom_call.1} parent=147 // pred_fallthru
          _
        // Predicated region
        $region157: #{tpu_custom_call.1} parent=147 // pred_check
          %p3262 = pneg %p811
        $region158: #{tpu_custom_call.1} parent=147 // pred_check_branch
          %3264 = sbr.rel (%p3262) target = $region160
        $region159: #{tpu_custom_call.1} parent=147 // pred_region
          %s3265 = smul.u32 8, %s90
          %s3266 = ssub.s32 63, %s3265
          %p3267 = scmp.lt.s32.totalorder %s3266, 8
          %s3268 = scalar_select %p3267, %s3266, 8
          %s3269 = smul.u32 64, %s3268
          %s3271 = ssub.s32 512, %s3269
          %3272 = vsyncadd %s3236, %s3271
          %p3273 = scmp.ne.s32.totalorder 0, %s3269
          %s3274 = smul.addr %s3265, 64
          %s3275 = scalar_lea.hbm %s67, %s3274
          %s3276 = smul.u32 4, %s3268
          %s3277 = sshll.u32 %s3239, 4
          %s3278 = int_to_ptr.vmem [resolvable:$true] %s3277
          %s3279 = sshll.u32 %s3276, 4
          %3283 = dma.vmem_to_hbm [thread:$0]  (%p3273), %s3278, %s3279, %s3275, %s3236, 64, 64, 4
        $region160: #{tpu_custom_call.1} parent=147 // pred_fallthru
          _
      $region148: #{tpu_custom_call.1} parent=5 // pred_fallthru
        _
      %p3284 = scmp.le.s32.totalorder 2, %s85
      // Predicated region
      $region161: #{tpu_custom_call.1} parent=5 // pred_check
        %p3285 = pneg %p3284
      $region162: #{tpu_custom_call.1} parent=5 // pred_check_branch
        %3287 = sbr.rel (%p3285) target = $region164
      $region163: #{tpu_custom_call.1} parent=5 // pred_region
        %s3288 = ssub.s32 %s85, 2
        // Predicated region
        $region165: #{tpu_custom_call.1} parent=163 // pred_check
          %p3289 = pneg %p791
        $region166: #{tpu_custom_call.1} parent=163 // pred_check_branch
          %3291 = sbr.rel (%p3289) target = $region168
        $region167: #{tpu_custom_call.1} parent=163 // pred_region
          %s3292 = sand.u32 %s776, 1
          %s3293 = scalar_lea.sflag [#allocation5], %s3292
          %s3294 = sand.u32 %s776, 1
          %s3295 = smul.addr %s3294, 64
          %s3296 = scalar_lea.vmem [#allocation6], %s3295
          %3297 = dma.done %s3293, 1024
        $region168: #{tpu_custom_call.1} parent=163 // pred_fallthru
          _
        // Predicated region
        $region169: #{tpu_custom_call.1} parent=163 // pred_check
          %p3298 = pneg %p817
        $region170: #{tpu_custom_call.1} parent=163 // pred_check_branch
          %3300 = sbr.rel (%p3298) target = $region172
        $region171: #{tpu_custom_call.1} parent=163 // pred_region
          %s3301 = sand.u32 %s802, 1
          %s3302 = scalar_lea.sflag [#allocation8], %s3301
          %s3303 = sand.u32 %s802, 1
          %s3304 = smul.addr %s3303, 32
          %s3305 = scalar_lea.vmem [#allocation7], %s3304
          %3306 = dma.done %s3302, 512
        $region172: #{tpu_custom_call.1} parent=163 // pred_fallthru
          _
      $region164: #{tpu_custom_call.1} parent=5 // pred_fallthru
        _
    $region6: #{tpu_custom_call.1} parent=1 // loop_footer
      %s89 = sadd.s32 1, %s85
    $region7: #{tpu_custom_call.1} parent=1 // loop_footer_branch
      %84 = sbr.rel target = $region3
    $region8: #{tpu_custom_call.1} parent=1 // loop_exit
      _
    %3307 = vsyncpa [#allocation4], 1
    %s3308 = scalar_lea.sflag [#allocation4], 1
    %3309 = vsyncpa %s3308, 1
    %3310 = vsyncpa [#allocation5], 1
    %s3311 = scalar_lea.sflag [#allocation5], 1
    %3312 = vsyncpa %s3311, 1
    %3313 = vsyncpa [#allocation8], 1
    %s3314 = scalar_lea.sflag [#allocation8], 1
    %3315 = vsyncpa %s3314, 1

</llo_original>
